<compile_context>
chip_gen: v7x
topology: tpu7x:2x2x1
jax: 0.10.0
libtpu: 0.0.40
codegen_flags: <defaults>
</compile_context>

<pallas_src>
import functools
import math

import jax
import jax.numpy as jnp
from jax import lax
from jax.experimental import pallas as pl
from jax.experimental.pallas import tpu as pltpu

BF16 = jnp.bfloat16

_WEIGHT_SPEC_KWARGS = None    # probed once (outside jit)
_CHIP_CONFIG = None           # queried once


# --------------------------------------------------------------------------
# Chip-aware configuration and capability probing
# --------------------------------------------------------------------------
def _chip_config():
    """VMEM cap + max q-tile, chosen from the physical VMEM size."""
    global _CHIP_CONFIG
    if _CHIP_CONFIG is not None:
        return _CHIP_CONFIG
    phys = 64 * 1024 * 1024
    try:
        phys = int(pltpu.get_tpu_info().vmem_capacity_bytes)
    except Exception:
        pass
    if phys >= 128 * 1024 * 1024:
        # v5e / v6e: use most of the 128 MiB, big activation tiles.
        _CHIP_CONFIG = dict(vmem_limit=100 * 1024 * 1024, max_tq=512)
    else:
        # v7x-class (64 MiB physical): leave compiler headroom, smaller tiles.
        _CHIP_CONFIG = dict(vmem_limit=48 * 1024 * 1024, max_tq=128)
    return _CHIP_CONFIG


def _weight_pipeline_kwargs():
    """BlockSpec kwargs that single-buffer constant-index weight operands
    (pl.Buffered(1)), if the installed Pallas supports and honors it."""
    global _WEIGHT_SPEC_KWARGS
    if _WEIGHT_SPEC_KWARGS is not None:
        return dict(_WEIGHT_SPEC_KWARGS)
    kwargs = {}
    if hasattr(pl, "Buffered"):
        try:
            def _probe(w_ref, x_ref, o_ref):
                o_ref[...] = x_ref[...] + w_ref[...]

            out = pl.pallas_call(
                _probe,
                out_shape=jax.ShapeDtypeStruct((16, 128), jnp.float32),
                grid=(2,),
                in_specs=[
                    pl.BlockSpec((8, 128), lambda i: (0, 0),
                                 pipeline_mode=pl.Buffered(1)),
                    pl.BlockSpec((8, 128), lambda i: (i, 0)),
                ],
                out_specs=pl.BlockSpec((8, 128), lambda i: (i, 0)),
            )(jnp.ones((8, 128), jnp.float32), jnp.ones((16, 128), jnp.float32))
            out = jax.block_until_ready(out)
            if bool(jnp.all(out == 2.0)):
                kwargs = {"pipeline_mode": pl.Buffered(1)}
        except Exception:
            kwargs = {}
    _WEIGHT_SPEC_KWARGS = kwargs
    return dict(kwargs)


def _round_up(x, m):
    return (x + m - 1) // m * m


def _seq_tile(T, max_tq):
    for t in (512, 256, 128):
        if t <= max_tq and T % t == 0:
            return t
    return T


def _vocab_tile(Vp):
    for t in (2048, 1024, 512, 256, 128):
        if Vp % t == 0:
            return t
    return Vp


# --------------------------------------------------------------------------
# In-kernel helpers (f32 element-wise math)
# --------------------------------------------------------------------------
def _layernorm(x, w, b, eps=1e-5):
    mu = jnp.mean(x, axis=-1, keepdims=True)
    xc = x - mu
    var = jnp.mean(xc * xc, axis=-1, keepdims=True)
    return xc * lax.rsqrt(var + eps) * w + b


def _gelu_tanh(x):
    # GELU with tanh approximation, matching nn.GELU(approximate='tanh')
    c = math.sqrt(2.0 / math.pi)
    return 0.5 * x * (1.0 + jnp.tanh(c * (x + 0.044715 * x * x * x)))


# --------------------------------------------------------------------------
# Kernel 1: LayerNorm1 + fused QKV projection; writes q (H,tq,hd) and
# lane-dense K/V (H,hd,tq) directly (no wrapper-side relayout / HBM round trip)
# --------------------------------------------------------------------------
def ln_qkv_kernel(x_ref, lnw_ref, lnb_ref, wqkv_ref, bqkv_ref,
                  q_ref, k_ref, v_ref):
    x = x_ref[0]                                        # (tq, C) f32
    xn = _layernorm(x, lnw_ref[0], lnb_ref[0])
    qkv = jnp.dot(xn.astype(BF16), wqkv_ref[...],
                  preferred_element_type=jnp.float32) + bqkv_ref[0]   # (tq,3C)
    H = q_ref.shape[1]
    hd = q_ref.shape[3]
    C = H * hd
    # Per-head stores in the layouts the attention kernel consumes:
    #   q: (H, tq, hd); k, v: (H, hd, T) -- T on the lane dim (dense >=128).
    for h in range(H):
        q_ref[0, h] = qkv[:, 0 * C + h * hd: 0 * C + (h + 1) * hd].astype(BF16)
        k_ref[0, h] = qkv[:, 1 * C + h * hd: 1 * C + (h + 1) * hd].T.astype(BF16)
        v_ref[0, h] = qkv[:, 2 * C + h * hd: 2 * C + (h + 1) * hd].T.astype(BF16)


# --------------------------------------------------------------------------
# Kernel 2: causal attention (batched over heads, lane-dense K/V) + single
# (tq,C)x(C,C) out-projection + MLP + residuals.  Grid = (B, num_q_tiles);
# K/V for the full sequence stay resident across the q-tile axis.
# --------------------------------------------------------------------------
def attn_mlp_kernel(x_ref, q_ref, k_ref, v_ref, wo_ref, bo_ref,
                    ln2w_ref, ln2b_ref, wfc_ref, bfc_ref, wpr_ref, bpr_ref,
                    out_ref, y_scr):
    x = x_ref[0]                                        # (tq, C)   f32 residual
    q = q_ref[0]                                        # (H, tq, hd) bf16
    k = k_ref[0]                                        # (H, hd, T)  bf16
    v = v_ref[0]                                        # (H, hd, T)  bf16
    H, tq, hd = q.shape
    T = k.shape[2]
    scale = 1.0 / math.sqrt(hd)

    # scores for all heads in one batched matmul: (H,tq,hd) x (H,hd,T)
    s = lax.dot_general(q, k, (((2,), (1,)), ((0,), (0,))),
                        preferred_element_type=jnp.float32) * scale   # (H,tq,T)

    qi = pl.program_id(1)
    row = qi * tq + lax.broadcasted_iota(jnp.int32, (tq, T), 0)
    col = lax.broadcasted_iota(jnp.int32, (tq, T), 1)
    s = jnp.where(row >= col, s, -1e30)

    m = jnp.max(s, axis=-1, keepdims=True)
    p = jnp.exp(s - m)
    denom = jnp.sum(p, axis=-1, keepdims=True)
    p = p * pl.reciprocal(denom, approx=True)                          # EUP slot

    # attention output, contraction over T (RHS-transposed, MXU-native)
    y = lax.dot_general(p.astype(BF16), v, (((2,), (2,)), ((0,), (0,))),
                        preferred_element_type=jnp.float32)            # (H,tq,hd)

    # merge heads into (tq, C) via VMEM scratch column stores, then a single
    # out-projection matmul with contraction dim C (no (H,tq,C) intermediate).
    for h in range(H):
        y_scr[:, h * hd:(h + 1) * hd] = y[h].astype(BF16)
    attn = jnp.dot(y_scr[...], wo_ref[...],
                   preferred_element_type=jnp.float32) + bo_ref[0]     # (tq, C)
    x1 = x + attn

    # ---- MLP branch ----
    xn2 = _layernorm(x1, ln2w_ref[0], ln2b_ref[0])
    h1 = jnp.dot(xn2.astype(BF16), wfc_ref[...],
                 preferred_element_type=jnp.float32) + bfc_ref[0]
    h1 = _gelu_tanh(h1)
    mlp = jnp.dot(h1.astype(BF16), wpr_ref[...],
                  preferred_element_type=jnp.float32) + bpr_ref[0]

    out_ref[0] = x1 + mlp


# --------------------------------------------------------------------------
# Kernel 3a: final LayerNorm (once per token tile, emits bf16 activations)
# Kernel 3b: tied lm_head; wte kept as (Vp, C), contracted RHS-transposed;
#            vocab axis is OUTERMOST so each wte tile is loaded once and
#            reused across all (batch, q-tile) steps.
# --------------------------------------------------------------------------
def lnf_kernel(x_ref, lnw_ref, lnb_ref, o_ref):
    o_ref[0] = _layernorm(x_ref[0], lnw_ref[0], lnb_ref[0]).astype(BF16)


def head_kernel(xn_ref, wte_ref, o_ref):
    o_ref[0] = lax.dot_general(xn_ref[0], wte_ref[...],
                               (((1,), (1,)), ((), ())),
                               preferred_element_type=jnp.float32)


# --------------------------------------------------------------------------
# Wrappers
# --------------------------------------------------------------------------
def run_block(x, lp, n_head):
    B, T, C = x.shape
    H = n_head
    hd = C // H
    cfg = _chip_config()
    tq = _seq_tile(T, cfg["max_tq"])
    nt = T // tq
    wkw = _weight_pipeline_kwargs()          # Buffered(1) for constant weights

    cparams = pltpu.CompilerParams(
        dimension_semantics=("parallel", "parallel"),
        vmem_limit_bytes=cfg["vmem_limit"])

    # ---- LayerNorm1 + QKV projection, head-split layouts written in-kernel ----
    q, k, v = pl.pallas_call(
        ln_qkv_kernel,
        out_shape=(jax.ShapeDtypeStruct((B, H, T, hd), BF16),
                   jax.ShapeDtypeStruct((B, H, hd, T), BF16),
                   jax.ShapeDtypeStruct((B, H, hd, T), BF16)),
        grid=(B, nt),
        in_specs=[
            pl.BlockSpec((1, tq, C), lambda b, t: (b, t, 0)),
            pl.BlockSpec((1, C), lambda b, t: (0, 0), **wkw),
            pl.BlockSpec((1, C), lambda b, t: (0, 0), **wkw),
            pl.BlockSpec((C, 3 * C), lambda b, t: (0, 0), **wkw),
            pl.BlockSpec((1, 3 * C), lambda b, t: (0, 0), **wkw),
        ],
        out_specs=(
            pl.BlockSpec((1, H, tq, hd), lambda b, t: (b, 0, t, 0)),
            pl.BlockSpec((1, H, hd, tq), lambda b, t: (b, 0, 0, t)),
            pl.BlockSpec((1, H, hd, tq), lambda b, t: (b, 0, 0, t)),
        ),
        compiler_params=cparams,
    )(x, lp["ln1_w"], lp["ln1_b"], lp["w_qkv"], lp["b_qkv"])

    # ---- attention + out-proj + MLP + residuals ----
    return pl.pallas_call(
        attn_mlp_kernel,
        out_shape=jax.ShapeDtypeStruct((B, T, C), jnp.float32),
        grid=(B, nt),
        in_specs=[
            pl.BlockSpec((1, tq, C), lambda b, t: (b, t, 0)),          # residual
            pl.BlockSpec((1, H, tq, hd), lambda b, t: (b, 0, t, 0)),   # q tile
            pl.BlockSpec((1, H, hd, T), lambda b, t: (b, 0, 0, 0)),    # k (full T)
            pl.BlockSpec((1, H, hd, T), lambda b, t: (b, 0, 0, 0)),    # v (full T)
            pl.BlockSpec((C, C), lambda b, t: (0, 0), **wkw),          # w_attn_proj
            pl.BlockSpec((1, C), lambda b, t: (0, 0), **wkw),          # b_attn_proj
            pl.BlockSpec((1, C), lambda b, t: (0, 0), **wkw),          # ln2_w
            pl.BlockSpec((1, C), lambda b, t: (0, 0), **wkw),          # ln2_b
            pl.BlockSpec((C, 4 * C), lambda b, t: (0, 0), **wkw),      # w_fc
            pl.BlockSpec((1, 4 * C), lambda b, t: (0, 0), **wkw),      # b_fc
            pl.BlockSpec((4 * C, C), lambda b, t: (0, 0), **wkw),      # w_mlp_proj
            pl.BlockSpec((1, C), lambda b, t: (0, 0), **wkw),          # b_mlp_proj
        ],
        out_specs=pl.BlockSpec((1, tq, C), lambda b, t: (b, t, 0)),
        scratch_shapes=[pltpu.VMEM((tq, C), BF16)],
        compiler_params=cparams,
    )(x, q, k, v, lp["w_attn_proj"], lp["b_attn_proj"], lp["ln2_w"], lp["ln2_b"],
      lp["w_fc"], lp["b_fc"], lp["w_mlp_proj"], lp["b_mlp_proj"])


def run_head(x, lnf_w, lnf_b, wte_head):
    B, T, C = x.shape
    Vp = wte_head.shape[0]
    cfg = _chip_config()
    tq = _seq_tile(T, cfg["max_tq"])
    nt = T // tq
    tv = _vocab_tile(Vp)
    nv = Vp // tv
    wkw = _weight_pipeline_kwargs()

    # final LayerNorm once per token; bf16 output halves x re-stream traffic.
    xn = pl.pallas_call(
        lnf_kernel,
        out_shape=jax.ShapeDtypeStruct((B, T, C), BF16),
        grid=(B, nt),
        in_specs=[pl.BlockSpec((1, tq, C), lambda b, t: (b, t, 0)),
                  pl.BlockSpec((1, C), lambda b, t: (0, 0), **wkw),
                  pl.BlockSpec((1, C), lambda b, t: (0, 0), **wkw)],
        out_specs=pl.BlockSpec((1, tq, C), lambda b, t: (b, t, 0)),
        compiler_params=pltpu.CompilerParams(
            dimension_semantics=("parallel", "parallel"),
            vmem_limit_bytes=cfg["vmem_limit"]),
    )(x, lnf_w, lnf_b)

    # vocab axis outermost: the (tv, C) wte tile stays VMEM-resident across
    # all (b, t) steps (index map constant in the inner axes -> no re-DMA).
    return pl.pallas_call(
        head_kernel,
        out_shape=jax.ShapeDtypeStruct((B, T, Vp), jnp.float32),
        grid=(nv, B, nt),
        in_specs=[pl.BlockSpec((1, tq, C), lambda vi, b, t: (b, t, 0)),
                  pl.BlockSpec((tv, C), lambda vi, b, t: (vi, 0))],
        out_specs=pl.BlockSpec((1, tq, tv), lambda vi, b, t: (b, t, vi)),
        compiler_params=pltpu.CompilerParams(
            dimension_semantics=("parallel", "arbitrary", "arbitrary"),
            vmem_limit_bytes=cfg["vmem_limit"]),
    )(xn, wte_head)


# --------------------------------------------------------------------------
# One-time parameter preparation (run OUTSIDE jit): bf16 weight casts, vocab
# padding for the tied head, capability probes.  Avoids per-forward convert /
# transpose HLOs that re-read every weight from HBM each call.
# --------------------------------------------------------------------------
def prepare_params(params):
    _weight_pipeline_kwargs()     # probe Buffered(1) support once, eagerly
    _chip_config()                # query chip info once, eagerly
    wte = params["wte"]
    V, C = wte.shape
    Vp = _round_up(V, 128)
    wte_head = wte.astype(BF16)
    if Vp != V:
        wte_head = jnp.pad(wte_head, ((0, Vp - V), (0, 0)))
    blocks = []
    for lp in params["blocks"]:
        blocks.append(dict(
            ln1_w=lp["ln1_w"], ln1_b=lp["ln1_b"],
            w_qkv=lp["w_qkv"].astype(BF16), b_qkv=lp["b_qkv"],
            w_attn_proj=lp["w_attn_proj"].astype(BF16),
            b_attn_proj=lp["b_attn_proj"],
            ln2_w=lp["ln2_w"], ln2_b=lp["ln2_b"],
            w_fc=lp["w_fc"].astype(BF16), b_fc=lp["b_fc"],
            w_mlp_proj=lp["w_mlp_proj"].astype(BF16),
            b_mlp_proj=lp["b_mlp_proj"],
        ))
    return dict(wte=wte, wpe=params["wpe"], blocks=blocks,
                lnf_w=params["lnf_w"], lnf_b=params["lnf_b"],
                wte_head=wte_head)


def gpt_forward(idx, prep, n_head):
    """Forward pass. idx: int32 [B, T] token ids. Returns logits [B, T, V]."""
    B, T = idx.shape
    wte, wpe = prep["wte"], prep["wpe"]
    V = wte.shape[0]
    assert T <= wpe.shape[0]
    # Embedding gathers (plain-JAX glue; no clean tile-shaped Pallas pattern).
    tok_emb = jnp.take(wte, idx, axis=0)                  # (B, T, C)
    x = tok_emb + wpe[:T][None, :, :]
    for lp in prep["blocks"]:
        x = run_block(x, lp, n_head)
    logits = run_head(x, prep["lnf_w"], prep["lnf_b"], prep["wte_head"])
    if logits.shape[-1] != V:
        logits = logits[:, :, :V]          # drop vocab padding
    return logits


# --------------------------------------------------------------------------
# Pure-JAX f32 reference (mirrors the PyTorch semantics) for correctness check.
# --------------------------------------------------------------------------
def gpt_forward_ref(idx, params, n_head):
    B, T = idx.shape
    wte, wpe = params["wte"], params["wpe"]
    x = jnp.take(wte, idx, axis=0) + wpe[:T][None]
    for lp in params["blocks"]:
        C = x.shape[-1]
        hd = C // n_head
        xn = _layernorm(x, lp["ln1_w"][0], lp["ln1_b"][0])
        qkv = xn @ lp["w_qkv"] + lp["b_qkv"][0]
        q, k, v = jnp.split(qkv, 3, axis=-1)
        q = q.reshape(B, T, n_head, hd).transpose(0, 2, 1, 3)
        k = k.reshape(B, T, n_head, hd).transpose(0, 2, 1, 3)
        v = v.reshape(B, T, n_head, hd).transpose(0, 2, 1, 3)
        att = jnp.einsum("bhqd,bhkd->bhqk", q, k) / math.sqrt(hd)
        mask = jnp.tril(jnp.ones((T, T), bool))
        att = jnp.where(mask, att, -jnp.inf)
        att = jax.nn.softmax(att, axis=-1)
        y = jnp.einsum("bhqk,bhkd->bhqd", att, v)
        y = y.transpose(0, 2, 1, 3).reshape(B, T, C)
        y = y @ lp["w_attn_proj"] + lp["b_attn_proj"][0]
        x = x + y
        xn2 = _layernorm(x, lp["ln2_w"][0], lp["ln2_b"][0])
        h = _gelu_tanh(xn2 @ lp["w_fc"] + lp["b_fc"][0])
        x = x + h @ lp["w_mlp_proj"] + lp["b_mlp_proj"][0]
    xn = _layernorm(x, params["lnf_w"][0], params["lnf_b"][0])
    return xn @ wte.T


# --------------------------------------------------------------------------
# Deterministic parameter construction (matches nanoGPT init semantics).
# --------------------------------------------------------------------------
def init_params(key, vocab_size, block_size, n_layer, n_head, n_embd):
    C = n_embd
    std = 0.02
    std_proj = 0.02 * (2 * n_layer) ** -0.5
    keys = jax.random.split(key, 2 + 6 * n_layer)
    wte = std * jax.random.normal(keys[0], (vocab_size, C), jnp.float32)
    wpe = std * jax.random.normal(keys[1], (block_size, C), jnp.float32)
    blocks = []
    for l in range(n_layer):
        k = keys[2 + 6 * l: 2 + 6 * (l + 1)]
        blocks.append(dict(
            ln1_w=jnp.ones((1, C), jnp.float32),
            ln1_b=jnp.zeros((1, C), jnp.float32),
            w_qkv=std * jax.random.normal(k[0], (C, 3 * C), jnp.float32),
            b_qkv=jnp.zeros((1, 3 * C), jnp.float32),
            w_attn_proj=std_proj * jax.random.normal(k[1], (C, C), jnp.float32),
            b_attn_proj=jnp.zeros((1, C), jnp.float32),
            ln2_w=jnp.ones((1, C), jnp.float32),
            ln2_b=jnp.zeros((1, C), jnp.float32),
            w_fc=std * jax.random.normal(k[2], (C, 4 * C), jnp.float32),
            b_fc=jnp.zeros((1, 4 * C), jnp.float32),
            w_mlp_proj=std_proj * jax.random.normal(k[3], (4 * C, C), jnp.float32),
            b_mlp_proj=jnp.zeros((1, C), jnp.float32),
        ))
    return dict(
        wte=wte, wpe=wpe, blocks=blocks,
        lnf_w=jnp.ones((1, C), jnp.float32),
        lnf_b=jnp.zeros((1, C), jnp.float32),
    )


if __name__ == "__main__":
    # Small GPT config
    vocab_size, block_size = 64, 16
    n_layer, n_head, n_embd = 2, 4, 32
    B, T = 2, 8

    key = jax.random.PRNGKey(0)
    pkey, ikey = jax.random.split(key)
    params = init_params(pkey, vocab_size, block_size, n_layer, n_head, n_embd)
    idx = jax.random.randint(ikey, (B, T), 0, vocab_size, dtype=jnp.int32)

    prep = prepare_params(params)           # one-time bf16/pad/probe, outside jit
    fwd = jax.jit(functools.partial(gpt_forward, n_head=n_head))
    logits = fwd(idx, prep)
    logits = jax.block_until_ready(logits)

    ref = gpt_forward_ref(idx, params, n_head)
    assert logits.shape == (B, T, vocab_size)
    # bf16 MXU inputs (f32 accumulation) -> loosen the comparison tolerance.
    assert jnp.allclose(logits, ref, rtol=2e-2, atol=2e-2), "mismatch vs reference"
    print("KERNEL_OK")
</pallas_src>

<mosaic_0001>
module attributes {stable_mosaic.version = 11 : i64} {
  func.func @_probe(%arg0: i32, %arg1: memref<8x128xf32, #tpu.memory_space<vmem>>, %arg2: memref<8x128xf32, #tpu.memory_space<vmem>>, %arg3: memref<8x128xf32, #tpu.memory_space<vmem>>) attributes {dimension_semantics = [#tpu.dimension_semantics<arbitrary>], iteration_bounds = array<i64: 2>, scalar_prefetch = 0 : i64, scratch_operands = 0 : i64, tpu.core_type = #tpu.core_type<tc>, window_params = [{pipeline_mode = #tpu.pipeline_mode<synchronous>, transform_indices = @transform_0, window_bounds = array<i64: 8, 128>}, {transform_indices = @transform_1, window_bounds = array<i64: 8, 128>}, {transform_indices = @transform_2, window_bounds = array<i64: 8, 128>}]} {
    %c0 = arith.constant 0 : index
    %c0_0 = arith.constant 0 : index
    %0 = vector.load %arg2[%c0, %c0_0] : memref<8x128xf32, #tpu.memory_space<vmem>>, vector<8x128xf32>
    %c0_1 = arith.constant 0 : index
    %c0_2 = arith.constant 0 : index
    %1 = vector.load %arg1[%c0_1, %c0_2] : memref<8x128xf32, #tpu.memory_space<vmem>>, vector<8x128xf32>
    %2 = arith.addf %0, %1 : vector<8x128xf32>
    %c0_3 = arith.constant 0 : index
    %c0_4 = arith.constant 0 : index
    %3 = vector.load %arg3[%c0_3, %c0_4] : memref<8x128xf32, #tpu.memory_space<vmem>>, vector<8x128xf32>
    tpu.vector_store %arg3[%c0_3, %c0_4], %2 {strides = array<i32>} : memref<8x128xf32, #tpu.memory_space<vmem>>, vector<8x128xf32>,
    return
  }
  func.func @transform_0(%arg0: i32) -> (i32, i32) {
    %c0_i32 = arith.constant 0 : i32
    %c0_i32_0 = arith.constant 0 : i32
    %c0_i32_1 = arith.constant 0 : i32
    return %c0_i32, %c0_i32_0 : i32, i32
  }
  func.func @transform_1(%arg0: i32) -> (i32, i32) {
    %c0_i32 = arith.constant 0 : i32
    %c0_i32_0 = arith.constant 0 : i32
    return %arg0, %c0_i32 : i32, i32
  }
  func.func @transform_2(%arg0: i32) -> (i32, i32) {
    %c0_i32 = arith.constant 0 : i32
    %c0_i32_0 = arith.constant 0 : i32
    return %arg0, %c0_i32 : i32, i32
  }
}

module attributes {stable_mosaic.version = 11 : i64} {
  func.func @lnf_kernel(%arg0: i32, %arg1: i32, %arg2: memref<1x8x32xf32, #tpu.memory_space<vmem>>, %arg3: memref<1x32xf32, #tpu.memory_space<vmem>>, %arg4: memref<1x32xf32, #tpu.memory_space<vmem>>, %arg5: memref<1x8x32xbf16, #tpu.memory_space<vmem>>) attributes {dimension_semantics = [#tpu.dimension_semantics<parallel>, #tpu.dimension_semantics<parallel>], iteration_bounds = array<i64: 2, 1>, scalar_prefetch = 0 : i64, scratch_operands = 0 : i64, tpu.core_type = #tpu.core_type<tc>, window_params = [{transform_indices = @transform_0, window_bounds = array<i64: 1, 8, 32>}, {pipeline_mode = #tpu.pipeline_mode<synchronous>, transform_indices = @transform_1, window_bounds = array<i64: 1, 32>}, {pipeline_mode = #tpu.pipeline_mode<synchronous>, transform_indices = @transform_2, window_bounds = array<i64: 1, 32>}, {transform_indices = @transform_3, window_bounds = array<i64: 1, 8, 32>}]} {
    %c0 = arith.constant 0 : index
    %c0_0 = arith.constant 0 : index
    %c0_1 = arith.constant 0 : index
    %0 = vector.load %arg2[%c0, %c0_0, %c0_1] : memref<1x8x32xf32, #tpu.memory_space<vmem>>, vector<1x8x32xf32>
    %1 = vector.shape_cast %0 : vector<1x8x32xf32> to vector<8x32xf32>
    %c0_2 = arith.constant 0 : index
    %c0_3 = arith.constant 0 : index
    %2 = vector.load %arg3[%c0_2, %c0_3] : memref<1x32xf32, #tpu.memory_space<vmem>>, vector<1x32xf32>
    %3 = vector.shape_cast %2 : vector<1x32xf32> to vector<32xf32>
    %c0_4 = arith.constant 0 : index
    %c0_5 = arith.constant 0 : index
    %4 = vector.load %arg4[%c0_4, %c0_5] : memref<1x32xf32, #tpu.memory_space<vmem>>, vector<1x32xf32>
    %5 = vector.shape_cast %4 : vector<1x32xf32> to vector<32xf32>
    %cst = arith.constant dense<0.000000e+00> : vector<8xf32>
    %6 = vector.multi_reduction <add>, %1, %cst [1] : vector<8x32xf32> to vector<8xf32>
    %7 = vector.shape_cast %6 : vector<8xf32> to vector<8x1xf32>
    %cst_6 = arith.constant 3.200000e+01 : f32
    %8 = vector.broadcast %cst_6 : f32 to vector<8x1xf32>
    %9 = arith.divf %7, %8 : vector<8x1xf32>
    %10 = vector.broadcast %9 : vector<8x1xf32> to vector<8x32xf32>
    %11 = arith.subf %1, %10 : vector<8x32xf32>
    %12 = arith.mulf %11, %11 : vector<8x32xf32>
    %cst_7 = arith.constant dense<0.000000e+00> : vector<8xf32>
    %13 = vector.multi_reduction <add>, %12, %cst_7 [1] : vector<8x32xf32> to vector<8xf32>
    %14 = vector.shape_cast %13 : vector<8xf32> to vector<8x1xf32>
    %cst_8 = arith.constant 3.200000e+01 : f32
    %15 = vector.broadcast %cst_8 : f32 to vector<8x1xf32>
    %16 = arith.divf %14, %15 : vector<8x1xf32>
    %cst_9 = arith.constant 9.99999974E-6 : f32
    %17 = vector.broadcast %cst_9 : f32 to vector<8x1xf32>
    %18 = arith.addf %16, %17 : vector<8x1xf32>
    %19 = math.rsqrt %18 : vector<8x1xf32>
    %20 = vector.broadcast %19 : vector<8x1xf32> to vector<8x32xf32>
    %21 = arith.mulf %11, %20 : vector<8x32xf32>
    %22 = vector.shape_cast %3 : vector<32xf32> to vector<1x32xf32>
    %23 = vector.broadcast %22 : vector<1x32xf32> to vector<8x32xf32>
    %24 = arith.mulf %21, %23 : vector<8x32xf32>
    %25 = vector.shape_cast %5 : vector<32xf32> to vector<1x32xf32>
    %26 = vector.broadcast %25 : vector<1x32xf32> to vector<8x32xf32>
    %27 = arith.addf %24, %26 : vector<8x32xf32>
    %28 = arith.truncf %27 : vector<8x32xf32> to vector<8x32xbf16>
    %c0_10 = arith.constant 0 : index
    %c0_11 = arith.constant 0 : index
    %c0_12 = arith.constant 0 : index
    %29 = vector.load %arg5[%c0_10, %c0_11, %c0_12] : memref<1x8x32xbf16, #tpu.memory_space<vmem>>, vector<1x8x32xbf16>
    %30 = vector.shape_cast %29 : vector<1x8x32xbf16> to vector<8x32xbf16>
    %31 = vector.shape_cast %28 : vector<8x32xbf16> to vector<1x8x32xbf16>
    tpu.vector_store %arg5[%c0_10, %c0_11, %c0_12], %31 {strides = array<i32>} : memref<1x8x32xbf16, #tpu.memory_space<vmem>>, vector<1x8x32xbf16>,
    return
  }
  func.func @transform_0(%arg0: i32, %arg1: i32) -> (i32, i32, i32) {
    %c0_i32 = arith.constant 0 : i32
    %c0_i32_0 = arith.constant 0 : i32
    return %arg0, %arg1, %c0_i32 : i32, i32, i32
  }
  func.func @transform_1(%arg0: i32, %arg1: i32) -> (i32, i32) {
    %c0_i32 = arith.constant 0 : i32
    %c0_i32_0 = arith.constant 0 : i32
    %c0_i32_1 = arith.constant 0 : i32
    return %c0_i32, %c0_i32_0 : i32, i32
  }
  func.func @transform_2(%arg0: i32, %arg1: i32) -> (i32, i32) {
    %c0_i32 = arith.constant 0 : i32
    %c0_i32_0 = arith.constant 0 : i32
    %c0_i32_1 = arith.constant 0 : i32
    return %c0_i32, %c0_i32_0 : i32, i32
  }
  func.func @transform_3(%arg0: i32, %arg1: i32) -> (i32, i32, i32) {
    %c0_i32 = arith.constant 0 : i32
    %c0_i32_0 = arith.constant 0 : i32
    return %arg0, %arg1, %c0_i32 : i32, i32, i32
  }
}

module attributes {stable_mosaic.version = 11 : i64} {
  func.func @attn_mlp_kernel(%arg0: i32, %arg1: i32, %arg2: memref<1x8x32xf32, #tpu.memory_space<vmem>>, %arg3: memref<1x4x8x8xbf16, #tpu.memory_space<vmem>>, %arg4: memref<1x4x8x8xbf16, #tpu.memory_space<vmem>>, %arg5: memref<1x4x8x8xbf16, #tpu.memory_space<vmem>>, %arg6: memref<32x32xbf16, #tpu.memory_space<vmem>>, %arg7: memref<1x32xf32, #tpu.memory_space<vmem>>, %arg8: memref<1x32xf32, #tpu.memory_space<vmem>>, %arg9: memref<1x32xf32, #tpu.memory_space<vmem>>, %arg10: memref<32x128xbf16, #tpu.memory_space<vmem>>, %arg11: memref<1x128xf32, #tpu.memory_space<vmem>>, %arg12: memref<128x32xbf16, #tpu.memory_space<vmem>>, %arg13: memref<1x32xf32, #tpu.memory_space<vmem>>, %arg14: memref<1x8x32xf32, #tpu.memory_space<vmem>>, %arg15: memref<8x32xbf16, #tpu.memory_space<vmem>>) attributes {dimension_semantics = [#tpu.dimension_semantics<parallel>, #tpu.dimension_semantics<parallel>], iteration_bounds = array<i64: 2, 1>, scalar_prefetch = 0 : i64, scratch_operands = 1 : i64, tpu.core_type = #tpu.core_type<tc>, window_params = [{transform_indices = @transform_0, window_bounds = array<i64: 1, 8, 32>}, {transform_indices = @transform_1, window_bounds = array<i64: 1, 4, 8, 8>}, {transform_indices = @transform_2, window_bounds = array<i64: 1, 4, 8, 8>}, {transform_indices = @transform_3, window_bounds = array<i64: 1, 4, 8, 8>}, {pipeline_mode = #tpu.pipeline_mode<synchronous>, transform_indices = @transform_4, window_bounds = array<i64: 32, 32>}, {pipeline_mode = #tpu.pipeline_mode<synchronous>, transform_indices = @transform_5, window_bounds = array<i64: 1, 32>}, {pipeline_mode = #tpu.pipeline_mode<synchronous>, transform_indices = @transform_6, window_bounds = array<i64: 1, 32>}, {pipeline_mode = #tpu.pipeline_mode<synchronous>, transform_indices = @transform_7, window_bounds = array<i64: 1, 32>}, {pipeline_mode = #tpu.pipeline_mode<synchronous>, transform_indices = @transform_8, window_bounds = array<i64: 32, 128>}, {pipeline_mode = #tpu.pipeline_mode<synchronous>, transform_indices = @transform_9, window_bounds = array<i64: 1, 128>}, {pipeline_mode = #tpu.pipeline_mode<synchronous>, transform_indices = @transform_10, window_bounds = array<i64: 128, 32>}, {pipeline_mode = #tpu.pipeline_mode<synchronous>, transform_indices = @transform_11, window_bounds = array<i64: 1, 32>}, {transform_indices = @transform_12, window_bounds = array<i64: 1, 8, 32>}]} {
    %c0 = arith.constant 0 : index
    %c0_0 = arith.constant 0 : index
    %c0_1 = arith.constant 0 : index
    %0 = vector.load %arg2[%c0, %c0_0, %c0_1] : memref<1x8x32xf32, #tpu.memory_space<vmem>>, vector<1x8x32xf32>
    %1 = vector.shape_cast %0 : vector<1x8x32xf32> to vector<8x32xf32>
    %c0_2 = arith.constant 0 : index
    %c0_3 = arith.constant 0 : index
    %c0_4 = arith.constant 0 : index
    %c0_5 = arith.constant 0 : index
    %2 = vector.load %arg3[%c0_2, %c0_3, %c0_4, %c0_5] : memref<1x4x8x8xbf16, #tpu.memory_space<vmem>>, vector<1x4x8x8xbf16>
    %3 = vector.shape_cast %2 : vector<1x4x8x8xbf16> to vector<4x8x8xbf16>
    %c0_6 = arith.constant 0 : index
    %c0_7 = arith.constant 0 : index
    %c0_8 = arith.constant 0 : index
    %c0_9 = arith.constant 0 : index
    %4 = vector.load %arg4[%c0_6, %c0_7, %c0_8, %c0_9] : memref<1x4x8x8xbf16, #tpu.memory_space<vmem>>, vector<1x4x8x8xbf16>
    %5 = vector.shape_cast %4 : vector<1x4x8x8xbf16> to vector<4x8x8xbf16>
    %c0_10 = arith.constant 0 : index
    %c0_11 = arith.constant 0 : index
    %c0_12 = arith.constant 0 : index
    %c0_13 = arith.constant 0 : index
    %6 = vector.load %arg5[%c0_10, %c0_11, %c0_12, %c0_13] : memref<1x4x8x8xbf16, #tpu.memory_space<vmem>>, vector<1x4x8x8xbf16>
    %7 = vector.shape_cast %6 : vector<1x4x8x8xbf16> to vector<4x8x8xbf16>
    %cst = arith.constant dense<0.000000e+00> : vector<4x8x8xf32>
    %8 = tpu.matmul %3, %5, %cst {dimension_numbers = #tpu.dot_dimension_numbers<[2], [1], [1], [2], [0, 0, 0, 1, 1, 2], [0], [0]>} : vector<4x8x8xbf16>, vector<4x8x8xbf16>, vector<4x8x8xf32> -> vector<4x8x8xf32>
    %cst_14 = arith.constant 0.353553385 : f32
    %9 = vector.broadcast %cst_14 : f32 to vector<4x8x8xf32>
    %10 = arith.mulf %8, %9 : vector<4x8x8xf32>
    %c8_i32 = arith.constant 8 : i32
    %11 = arith.muli %arg1, %c8_i32 : i32
    %12 = tpu.iota {dimensions = array<i32: 0>} : vector<8x8xi32>
    %13 = vector.broadcast %11 : i32 to vector<8x8xi32>
    %14 = arith.addi %13, %12 : vector<8x8xi32>
    %15 = tpu.iota {dimensions = array<i32: 1>} : vector<8x8xi32>
    %16 = arith.cmpi sge, %14, %15 : vector<8x8xi32>
    %cst_15 = arith.constant -1.000000e+30 : f32
    %17 = vector.shape_cast %16 : vector<8x8xi1> to vector<1x8x8xi1>
    %18 = vector.broadcast %17 : vector<1x8x8xi1> to vector<4x8x8xi1>
    %19 = vector.broadcast %cst_15 : f32 to vector<4x8x8xf32>
    %20 = arith.select %18, %10, %19 : vector<4x8x8xi1>, vector<4x8x8xf32>
    %cst_16 = arith.constant dense<0xFF800000> : vector<4x8xf32>
    %21 = vector.multi_reduction <maximumf>, %20, %cst_16 [2] : vector<4x8x8xf32> to vector<4x8xf32>
    %22 = vector.shape_cast %21 : vector<4x8xf32> to vector<4x8x1xf32>
    %23 = vector.broadcast %22 : vector<4x8x1xf32> to vector<4x8x8xf32>
    %24 = arith.subf %20, %23 : vector<4x8x8xf32>
    %25 = math.exp %24 : vector<4x8x8xf32>
    %cst_17 = arith.constant dense<0.000000e+00> : vector<4x8xf32>
    %26 = vector.multi_reduction <add>, %25, %cst_17 [2] : vector<4x8x8xf32> to vector<4x8xf32>
    %27 = vector.shape_cast %26 : vector<4x8xf32> to vector<4x8x1xf32>
    %28 = tpu.reciprocal %27 {approx = true} : vector<4x8x1xf32> -> vector<4x8x1xf32>
    %29 = vector.broadcast %28 : vector<4x8x1xf32> to vector<4x8x8xf32>
    %30 = arith.mulf %25, %29 : vector<4x8x8xf32>
    %31 = arith.truncf %30 : vector<4x8x8xf32> to vector<4x8x8xbf16>
    %cst_18 = arith.constant dense<0.000000e+00> : vector<4x8x8xf32>
    %32 = tpu.matmul %31, %7, %cst_18 {dimension_numbers = #tpu.dot_dimension_numbers<[2], [2], [1], [1], [0, 0, 0, 1, 1, 1], [0], [0]>} : vector<4x8x8xbf16>, vector<4x8x8xbf16>, vector<4x8x8xf32> -> vector<4x8x8xf32>
    %33 = vector.extract_strided_slice %32 {offsets = [0, 0, 0], sizes = [1, 8, 8], strides = [1, 1, 1]} : vector<4x8x8xf32> to vector<1x8x8xf32>
    %34 = vector.shape_cast %33 : vector<1x8x8xf32> to vector<8x8xf32>
    %35 = arith.truncf %34 : vector<8x8xf32> to vector<8x8xbf16>
    %c0_19 = arith.constant 0 : index
    %c0_20 = arith.constant 0 : index
    %36 = vector.load %arg15[%c0_19, %c0_20] : memref<8x32xbf16, #tpu.memory_space<vmem>>, vector<8x8xbf16>
    tpu.vector_store %arg15[%c0_19, %c0_20], %35 {strides = array<i32>} : memref<8x32xbf16, #tpu.memory_space<vmem>>, vector<8x8xbf16>,
    %37 = vector.extract_strided_slice %32 {offsets = [1, 0, 0], sizes = [1, 8, 8], strides = [1, 1, 1]} : vector<4x8x8xf32> to vector<1x8x8xf32>
    %38 = vector.shape_cast %37 : vector<1x8x8xf32> to vector<8x8xf32>
    %39 = arith.truncf %38 : vector<8x8xf32> to vector<8x8xbf16>
    %c0_21 = arith.constant 0 : index
    %c8 = arith.constant 8 : index
    %40 = vector.load %arg15[%c0_21, %c8] : memref<8x32xbf16, #tpu.memory_space<vmem>>, vector<8x8xbf16>
    tpu.vector_store %arg15[%c0_21, %c8], %39 {strides = array<i32>} : memref<8x32xbf16, #tpu.memory_space<vmem>>, vector<8x8xbf16>,
    %41 = vector.extract_strided_slice %32 {offsets = [2, 0, 0], sizes = [1, 8, 8], strides = [1, 1, 1]} : vector<4x8x8xf32> to vector<1x8x8xf32>
    %42 = vector.shape_cast %41 : vector<1x8x8xf32> to vector<8x8xf32>
    %43 = arith.truncf %42 : vector<8x8xf32> to vector<8x8xbf16>
    %c0_22 = arith.constant 0 : index
    %c16 = arith.constant 16 : index
    %44 = vector.load %arg15[%c0_22, %c16] : memref<8x32xbf16, #tpu.memory_space<vmem>>, vector<8x8xbf16>
    tpu.vector_store %arg15[%c0_22, %c16], %43 {strides = array<i32>} : memref<8x32xbf16, #tpu.memory_space<vmem>>, vector<8x8xbf16>,
    %45 = vector.extract_strided_slice %32 {offsets = [3, 0, 0], sizes = [1, 8, 8], strides = [1, 1, 1]} : vector<4x8x8xf32> to vector<1x8x8xf32>
    %46 = vector.shape_cast %45 : vector<1x8x8xf32> to vector<8x8xf32>
    %47 = arith.truncf %46 : vector<8x8xf32> to vector<8x8xbf16>
    %c0_23 = arith.constant 0 : index
    %c24 = arith.constant 24 : index
    %48 = vector.load %arg15[%c0_23, %c24] : memref<8x32xbf16, #tpu.memory_space<vmem>>, vector<8x8xbf16>
    tpu.vector_store %arg15[%c0_23, %c24], %47 {strides = array<i32>} : memref<8x32xbf16, #tpu.memory_space<vmem>>, vector<8x8xbf16>,
    %c0_24 = arith.constant 0 : index
    %c0_25 = arith.constant 0 : index
    %49 = vector.load %arg15[%c0_24, %c0_25] : memref<8x32xbf16, #tpu.memory_space<vmem>>, vector<8x32xbf16>
    %c0_26 = arith.constant 0 : index
    %c0_27 = arith.constant 0 : index
    %50 = vector.load %arg6[%c0_26, %c0_27] : memref<32x32xbf16, #tpu.memory_space<vmem>>, vector<32x32xbf16>
    %cst_28 = arith.constant dense<0.000000e+00> : vector<8x32xf32>
    %51 = tpu.matmul %49, %50, %cst_28 {dimension_numbers = #tpu.dot_dimension_numbers<[1], [0], [0], [1], [0, 0, 1, 1], [], []>} : vector<8x32xbf16>, vector<32x32xbf16>, vector<8x32xf32> -> vector<8x32xf32>
    %c0_29 = arith.constant 0 : index
    %c0_30 = arith.constant 0 : index
    %52 = vector.load %arg7[%c0_29, %c0_30] : memref<1x32xf32, #tpu.memory_space<vmem>>, vector<1x32xf32>
    %53 = vector.shape_cast %52 : vector<1x32xf32> to vector<32xf32>
    %54 = vector.shape_cast %53 : vector<32xf32> to vector<1x32xf32>
    %55 = vector.broadcast %54 : vector<1x32xf32> to vector<8x32xf32>
    %56 = arith.addf %51, %55 : vector<8x32xf32>
    %57 = arith.addf %1, %56 : vector<8x32xf32>
    %c0_31 = arith.constant 0 : index
    %c0_32 = arith.constant 0 : index
    %58 = vector.load %arg8[%c0_31, %c0_32] : memref<1x32xf32, #tpu.memory_space<vmem>>, vector<1x32xf32>
    %59 = vector.shape_cast %58 : vector<1x32xf32> to vector<32xf32>
    %c0_33 = arith.constant 0 : index
    %c0_34 = arith.constant 0 : index
    %60 = vector.load %arg9[%c0_33, %c0_34] : memref<1x32xf32, #tpu.memory_space<vmem>>, vector<1x32xf32>
    %61 = vector.shape_cast %60 : vector<1x32xf32> to vector<32xf32>
    %cst_35 = arith.constant dense<0.000000e+00> : vector<8xf32>
    %62 = vector.multi_reduction <add>, %57, %cst_35 [1] : vector<8x32xf32> to vector<8xf32>
    %63 = vector.shape_cast %62 : vector<8xf32> to vector<8x1xf32>
    %cst_36 = arith.constant 3.200000e+01 : f32
    %64 = vector.broadcast %cst_36 : f32 to vector<8x1xf32>
    %65 = arith.divf %63, %64 : vector<8x1xf32>
    %66 = vector.broadcast %65 : vector<8x1xf32> to vector<8x32xf32>
    %67 = arith.subf %57, %66 : vector<8x32xf32>
    %68 = arith.mulf %67, %67 : vector<8x32xf32>
    %cst_37 = arith.constant dense<0.000000e+00> : vector<8xf32>
    %69 = vector.multi_reduction <add>, %68, %cst_37 [1] : vector<8x32xf32> to vector<8xf32>
    %70 = vector.shape_cast %69 : vector<8xf32> to vector<8x1xf32>
    %cst_38 = arith.constant 3.200000e+01 : f32
    %71 = vector.broadcast %cst_38 : f32 to vector<8x1xf32>
    %72 = arith.divf %70, %71 : vector<8x1xf32>
    %cst_39 = arith.constant 9.99999974E-6 : f32
    %73 = vector.broadcast %cst_39 : f32 to vector<8x1xf32>
    %74 = arith.addf %72, %73 : vector<8x1xf32>
    %75 = math.rsqrt %74 : vector<8x1xf32>
    %76 = vector.broadcast %75 : vector<8x1xf32> to vector<8x32xf32>
    %77 = arith.mulf %67, %76 : vector<8x32xf32>
    %78 = vector.shape_cast %59 : vector<32xf32> to vector<1x32xf32>
    %79 = vector.broadcast %78 : vector<1x32xf32> to vector<8x32xf32>
    %80 = arith.mulf %77, %79 : vector<8x32xf32>
    %81 = vector.shape_cast %61 : vector<32xf32> to vector<1x32xf32>
    %82 = vector.broadcast %81 : vector<1x32xf32> to vector<8x32xf32>
    %83 = arith.addf %80, %82 : vector<8x32xf32>
    %84 = arith.truncf %83 : vector<8x32xf32> to vector<8x32xbf16>
    %c0_40 = arith.constant 0 : index
    %c0_41 = arith.constant 0 : index
    %85 = vector.load %arg10[%c0_40, %c0_41] : memref<32x128xbf16, #tpu.memory_space<vmem>>, vector<32x128xbf16>
    %cst_42 = arith.constant dense<0.000000e+00> : vector<8x128xf32>
    %86 = tpu.matmul %84, %85, %cst_42 {dimension_numbers = #tpu.dot_dimension_numbers<[1], [0], [0], [1], [0, 0, 1, 1], [], []>} : vector<8x32xbf16>, vector<32x128xbf16>, vector<8x128xf32> -> vector<8x128xf32>
    %c0_43 = arith.constant 0 : index
    %c0_44 = arith.constant 0 : index
    %87 = vector.load %arg11[%c0_43, %c0_44] : memref<1x128xf32, #tpu.memory_space<vmem>>, vector<1x128xf32>
    %88 = vector.shape_cast %87 : vector<1x128xf32> to vector<128xf32>
    %89 = vector.shape_cast %88 : vector<128xf32> to vector<1x128xf32>
    %90 = vector.broadcast %89 : vector<1x128xf32> to vector<8x128xf32>
    %91 = arith.addf %86, %90 : vector<8x128xf32>
    %cst_45 = arith.constant 5.000000e-01 : f32
    %92 = vector.broadcast %cst_45 : f32 to vector<8x128xf32>
    %93 = arith.mulf %92, %91 : vector<8x128xf32>
    %cst_46 = arith.constant 4.471500e-02 : f32
    %94 = vector.broadcast %cst_46 : f32 to vector<8x128xf32>
    %95 = arith.mulf %94, %91 : vector<8x128xf32>
    %96 = arith.mulf %95, %91 : vector<8x128xf32>
    %97 = arith.mulf %96, %91 : vector<8x128xf32>
    %98 = arith.addf %91, %97 : vector<8x128xf32>
    %cst_47 = arith.constant 0.797884583 : f32
    %99 = vector.broadcast %cst_47 : f32 to vector<8x128xf32>
    %100 = arith.mulf %99, %98 : vector<8x128xf32>
    %101 = math.tanh %100 : vector<8x128xf32>
    %cst_48 = arith.constant 1.000000e+00 : f32
    %102 = vector.broadcast %cst_48 : f32 to vector<8x128xf32>
    %103 = arith.addf %102, %101 : vector<8x128xf32>
    %104 = arith.mulf %93, %103 : vector<8x128xf32>
    %105 = arith.truncf %104 : vector<8x128xf32> to vector<8x128xbf16>
    %c0_49 = arith.constant 0 : index
    %c0_50 = arith.constant 0 : index
    %106 = vector.load %arg12[%c0_49, %c0_50] : memref<128x32xbf16, #tpu.memory_space<vmem>>, vector<128x32xbf16>
    %cst_51 = arith.constant dense<0.000000e+00> : vector<8x32xf32>
    %107 = tpu.matmul %105, %106, %cst_51 {dimension_numbers = #tpu.dot_dimension_numbers<[1], [0], [0], [1], [0, 0, 1, 1], [], []>} : vector<8x128xbf16>, vector<128x32xbf16>, vector<8x32xf32> -> vector<8x32xf32>
    %c0_52 = arith.constant 0 : index
    %c0_53 = arith.constant 0 : index
    %108 = vector.load %arg13[%c0_52, %c0_53] : memref<1x32xf32, #tpu.memory_space<vmem>>, vector<1x32xf32>
    %109 = vector.shape_cast %108 : vector<1x32xf32> to vector<32xf32>
    %110 = vector.shape_cast %109 : vector<32xf32> to vector<1x32xf32>
    %111 = vector.broadcast %110 : vector<1x32xf32> to vector<8x32xf32>
    %112 = arith.addf %107, %111 : vector<8x32xf32>
    %113 = arith.addf %57, %112 : vector<8x32xf32>
    %c0_54 = arith.constant 0 : index
    %c0_55 = arith.constant 0 : index
    %c0_56 = arith.constant 0 : index
    %114 = vector.load %arg14[%c0_54, %c0_55, %c0_56] : memref<1x8x32xf32, #tpu.memory_space<vmem>>, vector<1x8x32xf32>
    %115 = vector.shape_cast %114 : vector<1x8x32xf32> to vector<8x32xf32>
    %116 = vector.shape_cast %113 : vector<8x32xf32> to vector<1x8x32xf32>
    tpu.vector_store %arg14[%c0_54, %c0_55, %c0_56], %116 {strides = array<i32>} : memref<1x8x32xf32, #tpu.memory_space<vmem>>, vector<1x8x32xf32>,
    return
  }
  func.func @transform_0(%arg0: i32, %arg1: i32) -> (i32, i32, i32) {
    %c0_i32 = arith.constant 0 : i32
    %c0_i32_0 = arith.constant 0 : i32
    return %arg0, %arg1, %c0_i32 : i32, i32, i32
  }
  func.func @transform_1(%arg0: i32, %arg1: i32) -> (i32, i32, i32, i32) {
    %c0_i32 = arith.constant 0 : i32
    %c0_i32_0 = arith.constant 0 : i32
    %c0_i32_1 = arith.constant 0 : i32
    return %arg0, %c0_i32, %arg1, %c0_i32_0 : i32, i32, i32, i32
  }
  func.func @transform_2(%arg0: i32, %arg1: i32) -> (i32, i32, i32, i32) {
    %c0_i32 = arith.constant 0 : i32
    %c0_i32_0 = arith.constant 0 : i32
    %c0_i32_1 = arith.constant 0 : i32
    %c0_i32_2 = arith.constant 0 : i32
    return %arg0, %c0_i32, %c0_i32_0, %c0_i32_1 : i32, i32, i32, i32
  }
  func.func @transform_3(%arg0: i32, %arg1: i32) -> (i32, i32, i32, i32) {
    %c0_i32 = arith.constant 0 : i32
    %c0_i32_0 = arith.constant 0 : i32
    %c0_i32_1 = arith.constant 0 : i32
    %c0_i32_2 = arith.constant 0 : i32
    return %arg0, %c0_i32, %c0_i32_0, %c0_i32_1 : i32, i32, i32, i32
  }
  func.func @transform_4(%arg0: i32, %arg1: i32) -> (i32, i32) {
    %c0_i32 = arith.constant 0 : i32
    %c0_i32_0 = arith.constant 0 : i32
    %c0_i32_1 = arith.constant 0 : i32
    return %c0_i32, %c0_i32_0 : i32, i32
  }
  func.func @transform_5(%arg0: i32, %arg1: i32) -> (i32, i32) {
    %c0_i32 = arith.constant 0 : i32
    %c0_i32_0 = arith.constant 0 : i32
    %c0_i32_1 = arith.constant 0 : i32
    return %c0_i32, %c0_i32_0 : i32, i32
  }
  func.func @transform_6(%arg0: i32, %arg1: i32) -> (i32, i32) {
    %c0_i32 = arith.constant 0 : i32
    %c0_i32_0 = arith.constant 0 : i32
    %c0_i32_1 = arith.constant 0 : i32
    return %c0_i32, %c0_i32_0 : i32, i32
  }
  func.func @transform_7(%arg0: i32, %arg1: i32) -> (i32, i32) {
    %c0_i32 = arith.constant 0 : i32
    %c0_i32_0 = arith.constant 0 : i32
    %c0_i32_1 = arith.constant 0 : i32
    return %c0_i32, %c0_i32_0 : i32, i32
  }
  func.func @transform_8(%arg0: i32, %arg1: i32) -> (i32, i32) {
    %c0_i32 = arith.constant 0 : i32
    %c0_i32_0 = arith.constant 0 : i32
    %c0_i32_1 = arith.constant 0 : i32
    return %c0_i32, %c0_i32_0 : i32, i32
  }
  func.func @transform_9(%arg0: i32, %arg1: i32) -> (i32, i32) {
    %c0_i32 = arith.constant 0 : i32
    %c0_i32_0 = arith.constant 0 : i32
    %c0_i32_1 = arith.constant 0 : i32
    return %c0_i32, %c0_i32_0 : i32, i32
  }
  func.func @transform_10(%arg0: i32, %arg1: i32) -> (i32, i32) {
    %c0_i32 = arith.constant 0 : i32
    %c0_i32_0 = arith.constant 0 : i32
    %c0_i32_1 = arith.constant 0 : i32
    return %c0_i32, %c0_i32_0 : i32, i32
  }
  func.func @transform_11(%arg0: i32, %arg1: i32) -> (i32, i32) {
    %c0_i32 = arith.constant 0 : i32
    %c0_i32_0 = arith.constant 0 : i32
    %c0_i32_1 = arith.constant 0 : i32
    return %c0_i32, %c0_i32_0 : i32, i32
  }
  func.func @transform_12(%arg0: i32, %arg1: i32) -> (i32, i32, i32) {
    %c0_i32 = arith.constant 0 : i32
    %c0_i32_0 = arith.constant 0 : i32
    return %arg0, %arg1, %c0_i32 : i32, i32, i32
  }
}

module attributes {stable_mosaic.version = 11 : i64} {
  func.func @ln_qkv_kernel(%arg0: i32, %arg1: i32, %arg2: memref<1x8x32xf32, #tpu.memory_space<vmem>>, %arg3: memref<1x32xf32, #tpu.memory_space<vmem>>, %arg4: memref<1x32xf32, #tpu.memory_space<vmem>>, %arg5: memref<32x96xbf16, #tpu.memory_space<vmem>>, %arg6: memref<1x96xf32, #tpu.memory_space<vmem>>, %arg7: memref<1x4x8x8xbf16, #tpu.memory_space<vmem>>, %arg8: memref<1x4x8x8xbf16, #tpu.memory_space<vmem>>, %arg9: memref<1x4x8x8xbf16, #tpu.memory_space<vmem>>) attributes {dimension_semantics = [#tpu.dimension_semantics<parallel>, #tpu.dimension_semantics<parallel>], iteration_bounds = array<i64: 2, 1>, scalar_prefetch = 0 : i64, scratch_operands = 0 : i64, tpu.core_type = #tpu.core_type<tc>, window_params = [{transform_indices = @transform_0, window_bounds = array<i64: 1, 8, 32>}, {pipeline_mode = #tpu.pipeline_mode<synchronous>, transform_indices = @transform_1, window_bounds = array<i64: 1, 32>}, {pipeline_mode = #tpu.pipeline_mode<synchronous>, transform_indices = @transform_2, window_bounds = array<i64: 1, 32>}, {pipeline_mode = #tpu.pipeline_mode<synchronous>, transform_indices = @transform_3, window_bounds = array<i64: 32, 96>}, {pipeline_mode = #tpu.pipeline_mode<synchronous>, transform_indices = @transform_4, window_bounds = array<i64: 1, 96>}, {transform_indices = @transform_5, window_bounds = array<i64: 1, 4, 8, 8>}, {transform_indices = @transform_6, window_bounds = array<i64: 1, 4, 8, 8>}, {transform_indices = @transform_7, window_bounds = array<i64: 1, 4, 8, 8>}]} {
    %c0 = arith.constant 0 : index
    %c0_0 = arith.constant 0 : index
    %c0_1 = arith.constant 0 : index
    %0 = vector.load %arg2[%c0, %c0_0, %c0_1] : memref<1x8x32xf32, #tpu.memory_space<vmem>>, vector<1x8x32xf32>
    %1 = vector.shape_cast %0 : vector<1x8x32xf32> to vector<8x32xf32>
    %c0_2 = arith.constant 0 : index
    %c0_3 = arith.constant 0 : index
    %2 = vector.load %arg3[%c0_2, %c0_3] : memref<1x32xf32, #tpu.memory_space<vmem>>, vector<1x32xf32>
    %3 = vector.shape_cast %2 : vector<1x32xf32> to vector<32xf32>
    %c0_4 = arith.constant 0 : index
    %c0_5 = arith.constant 0 : index
    %4 = vector.load %arg4[%c0_4, %c0_5] : memref<1x32xf32, #tpu.memory_space<vmem>>, vector<1x32xf32>
    %5 = vector.shape_cast %4 : vector<1x32xf32> to vector<32xf32>
    %cst = arith.constant dense<0.000000e+00> : vector<8xf32>
    %6 = vector.multi_reduction <add>, %1, %cst [1] : vector<8x32xf32> to vector<8xf32>
    %7 = vector.shape_cast %6 : vector<8xf32> to vector<8x1xf32>
    %cst_6 = arith.constant 3.200000e+01 : f32
    %8 = vector.broadcast %cst_6 : f32 to vector<8x1xf32>
    %9 = arith.divf %7, %8 : vector<8x1xf32>
    %10 = vector.broadcast %9 : vector<8x1xf32> to vector<8x32xf32>
    %11 = arith.subf %1, %10 : vector<8x32xf32>
    %12 = arith.mulf %11, %11 : vector<8x32xf32>
    %cst_7 = arith.constant dense<0.000000e+00> : vector<8xf32>
    %13 = vector.multi_reduction <add>, %12, %cst_7 [1] : vector<8x32xf32> to vector<8xf32>
    %14 = vector.shape_cast %13 : vector<8xf32> to vector<8x1xf32>
    %cst_8 = arith.constant 3.200000e+01 : f32
    %15 = vector.broadcast %cst_8 : f32 to vector<8x1xf32>
    %16 = arith.divf %14, %15 : vector<8x1xf32>
    %cst_9 = arith.constant 9.99999974E-6 : f32
    %17 = vector.broadcast %cst_9 : f32 to vector<8x1xf32>
    %18 = arith.addf %16, %17 : vector<8x1xf32>
    %19 = math.rsqrt %18 : vector<8x1xf32>
    %20 = vector.broadcast %19 : vector<8x1xf32> to vector<8x32xf32>
    %21 = arith.mulf %11, %20 : vector<8x32xf32>
    %22 = vector.shape_cast %3 : vector<32xf32> to vector<1x32xf32>
    %23 = vector.broadcast %22 : vector<1x32xf32> to vector<8x32xf32>
    %24 = arith.mulf %21, %23 : vector<8x32xf32>
    %25 = vector.shape_cast %5 : vector<32xf32> to vector<1x32xf32>
    %26 = vector.broadcast %25 : vector<1x32xf32> to vector<8x32xf32>
    %27 = arith.addf %24, %26 : vector<8x32xf32>
    %28 = arith.truncf %27 : vector<8x32xf32> to vector<8x32xbf16>
    %c0_10 = arith.constant 0 : index
    %c0_11 = arith.constant 0 : index
    %29 = vector.load %arg5[%c0_10, %c0_11] : memref<32x96xbf16, #tpu.memory_space<vmem>>, vector<32x96xbf16>
    %cst_12 = arith.constant dense<0.000000e+00> : vector<8x96xf32>
    %30 = tpu.matmul %28, %29, %cst_12 {dimension_numbers = #tpu.dot_dimension_numbers<[1], [0], [0], [1], [0, 0, 1, 1], [], []>} : vector<8x32xbf16>, vector<32x96xbf16>, vector<8x96xf32> -> vector<8x96xf32>
    %c0_13 = arith.constant 0 : index
    %c0_14 = arith.constant 0 : index
    %31 = vector.load %arg6[%c0_13, %c0_14] : memref<1x96xf32, #tpu.memory_space<vmem>>, vector<1x96xf32>
    %32 = vector.shape_cast %31 : vector<1x96xf32> to vector<96xf32>
    %33 = vector.shape_cast %32 : vector<96xf32> to vector<1x96xf32>
    %34 = vector.broadcast %33 : vector<1x96xf32> to vector<8x96xf32>
    %35 = arith.addf %30, %34 : vector<8x96xf32>
    %36 = vector.extract_strided_slice %35 {offsets = [0, 0], sizes = [8, 8], strides = [1, 1]} : vector<8x96xf32> to vector<8x8xf32>
    %37 = arith.truncf %36 : vector<8x8xf32> to vector<8x8xbf16>
    %c0_15 = arith.constant 0 : index
    %c0_16 = arith.constant 0 : index
    %c0_17 = arith.constant 0 : index
    %c0_18 = arith.constant 0 : index
    %38 = vector.load %arg7[%c0_15, %c0_16, %c0_17, %c0_18] : memref<1x4x8x8xbf16, #tpu.memory_space<vmem>>, vector<1x1x8x8xbf16>
    %39 = vector.shape_cast %38 : vector<1x1x8x8xbf16> to vector<8x8xbf16>
    %40 = vector.shape_cast %37 : vector<8x8xbf16> to vector<1x1x8x8xbf16>
    tpu.vector_store %arg7[%c0_15, %c0_16, %c0_17, %c0_18], %40 {strides = array<i32>} : memref<1x4x8x8xbf16, #tpu.memory_space<vmem>>, vector<1x1x8x8xbf16>,
    %41 = vector.extract_strided_slice %35 {offsets = [0, 32], sizes = [8, 8], strides = [1, 1]} : vector<8x96xf32> to vector<8x8xf32>
    %42 = tpu.transpose %41, [1, 0] : vector<8x8xf32> -> vector<8x8xf32>
    %43 = arith.truncf %42 : vector<8x8xf32> to vector<8x8xbf16>
    %c0_19 = arith.constant 0 : index
    %c0_20 = arith.constant 0 : index
    %c0_21 = arith.constant 0 : index
    %c0_22 = arith.constant 0 : index
    %44 = vector.load %arg8[%c0_19, %c0_20, %c0_21, %c0_22] : memref<1x4x8x8xbf16, #tpu.memory_space<vmem>>, vector<1x1x8x8xbf16>
    %45 = vector.shape_cast %44 : vector<1x1x8x8xbf16> to vector<8x8xbf16>
    %46 = vector.shape_cast %43 : vector<8x8xbf16> to vector<1x1x8x8xbf16>
    tpu.vector_store %arg8[%c0_19, %c0_20, %c0_21, %c0_22], %46 {strides = array<i32>} : memref<1x4x8x8xbf16, #tpu.memory_space<vmem>>, vector<1x1x8x8xbf16>,
    %47 = vector.extract_strided_slice %35 {offsets = [0, 64], sizes = [8, 8], strides = [1, 1]} : vector<8x96xf32> to vector<8x8xf32>
    %48 = tpu.transpose %47, [1, 0] : vector<8x8xf32> -> vector<8x8xf32>
    %49 = arith.truncf %48 : vector<8x8xf32> to vector<8x8xbf16>
    %c0_23 = arith.constant 0 : index
    %c0_24 = arith.constant 0 : index
    %c0_25 = arith.constant 0 : index
    %c0_26 = arith.constant 0 : index
    %50 = vector.load %arg9[%c0_23, %c0_24, %c0_25, %c0_26] : memref<1x4x8x8xbf16, #tpu.memory_space<vmem>>, vector<1x1x8x8xbf16>
    %51 = vector.shape_cast %50 : vector<1x1x8x8xbf16> to vector<8x8xbf16>
    %52 = vector.shape_cast %49 : vector<8x8xbf16> to vector<1x1x8x8xbf16>
    tpu.vector_store %arg9[%c0_23, %c0_24, %c0_25, %c0_26], %52 {strides = array<i32>} : memref<1x4x8x8xbf16, #tpu.memory_space<vmem>>, vector<1x1x8x8xbf16>,
    %53 = vector.extract_strided_slice %35 {offsets = [0, 8], sizes = [8, 8], strides = [1, 1]} : vector<8x96xf32> to vector<8x8xf32>
    %54 = arith.truncf %53 : vector<8x8xf32> to vector<8x8xbf16>
    %c0_27 = arith.constant 0 : index
    %c1 = arith.constant 1 : index
    %c0_28 = arith.constant 0 : index
    %c0_29 = arith.constant 0 : index
    %55 = vector.load %arg7[%c0_27, %c1, %c0_28, %c0_29] : memref<1x4x8x8xbf16, #tpu.memory_space<vmem>>, vector<1x1x8x8xbf16>
    %56 = vector.shape_cast %55 : vector<1x1x8x8xbf16> to vector<8x8xbf16>
    %57 = vector.shape_cast %54 : vector<8x8xbf16> to vector<1x1x8x8xbf16>
    tpu.vector_store %arg7[%c0_27, %c1, %c0_28, %c0_29], %57 {strides = array<i32>} : memref<1x4x8x8xbf16, #tpu.memory_space<vmem>>, vector<1x1x8x8xbf16>,
    %58 = vector.extract_strided_slice %35 {offsets = [0, 40], sizes = [8, 8], strides = [1, 1]} : vector<8x96xf32> to vector<8x8xf32>
    %59 = tpu.transpose %58, [1, 0] : vector<8x8xf32> -> vector<8x8xf32>
    %60 = arith.truncf %59 : vector<8x8xf32> to vector<8x8xbf16>
    %c0_30 = arith.constant 0 : index
    %c1_31 = arith.constant 1 : index
    %c0_32 = arith.constant 0 : index
    %c0_33 = arith.constant 0 : index
    %61 = vector.load %arg8[%c0_30, %c1_31, %c0_32, %c0_33] : memref<1x4x8x8xbf16, #tpu.memory_space<vmem>>, vector<1x1x8x8xbf16>
    %62 = vector.shape_cast %61 : vector<1x1x8x8xbf16> to vector<8x8xbf16>
    %63 = vector.shape_cast %60 : vector<8x8xbf16> to vector<1x1x8x8xbf16>
    tpu.vector_store %arg8[%c0_30, %c1_31, %c0_32, %c0_33], %63 {strides = array<i32>} : memref<1x4x8x8xbf16, #tpu.memory_space<vmem>>, vector<1x1x8x8xbf16>,
    %64 = vector.extract_strided_slice %35 {offsets = [0, 72], sizes = [8, 8], strides = [1, 1]} : vector<8x96xf32> to vector<8x8xf32>
    %65 = tpu.transpose %64, [1, 0] : vector<8x8xf32> -> vector<8x8xf32>
    %66 = arith.truncf %65 : vector<8x8xf32> to vector<8x8xbf16>
    %c0_34 = arith.constant 0 : index
    %c1_35 = arith.constant 1 : index
    %c0_36 = arith.constant 0 : index
    %c0_37 = arith.constant 0 : index
    %67 = vector.load %arg9[%c0_34, %c1_35, %c0_36, %c0_37] : memref<1x4x8x8xbf16, #tpu.memory_space<vmem>>, vector<1x1x8x8xbf16>
    %68 = vector.shape_cast %67 : vector<1x1x8x8xbf16> to vector<8x8xbf16>
    %69 = vector.shape_cast %66 : vector<8x8xbf16> to vector<1x1x8x8xbf16>
    tpu.vector_store %arg9[%c0_34, %c1_35, %c0_36, %c0_37], %69 {strides = array<i32>} : memref<1x4x8x8xbf16, #tpu.memory_space<vmem>>, vector<1x1x8x8xbf16>,
    %70 = vector.extract_strided_slice %35 {offsets = [0, 16], sizes = [8, 8], strides = [1, 1]} : vector<8x96xf32> to vector<8x8xf32>
    %71 = arith.truncf %70 : vector<8x8xf32> to vector<8x8xbf16>
    %c0_38 = arith.constant 0 : index
    %c2 = arith.constant 2 : index
    %c0_39 = arith.constant 0 : index
    %c0_40 = arith.constant 0 : index
    %72 = vector.load %arg7[%c0_38, %c2, %c0_39, %c0_40] : memref<1x4x8x8xbf16, #tpu.memory_space<vmem>>, vector<1x1x8x8xbf16>
    %73 = vector.shape_cast %72 : vector<1x1x8x8xbf16> to vector<8x8xbf16>
    %74 = vector.shape_cast %71 : vector<8x8xbf16> to vector<1x1x8x8xbf16>
    tpu.vector_store %arg7[%c0_38, %c2, %c0_39, %c0_40], %74 {strides = array<i32>} : memref<1x4x8x8xbf16, #tpu.memory_space<vmem>>, vector<1x1x8x8xbf16>,
    %75 = vector.extract_strided_slice %35 {offsets = [0, 48], sizes = [8, 8], strides = [1, 1]} : vector<8x96xf32> to vector<8x8xf32>
    %76 = tpu.transpose %75, [1, 0] : vector<8x8xf32> -> vector<8x8xf32>
    %77 = arith.truncf %76 : vector<8x8xf32> to vector<8x8xbf16>
    %c0_41 = arith.constant 0 : index
    %c2_42 = arith.constant 2 : index
    %c0_43 = arith.constant 0 : index
    %c0_44 = arith.constant 0 : index
    %78 = vector.load %arg8[%c0_41, %c2_42, %c0_43, %c0_44] : memref<1x4x8x8xbf16, #tpu.memory_space<vmem>>, vector<1x1x8x8xbf16>
    %79 = vector.shape_cast %78 : vector<1x1x8x8xbf16> to vector<8x8xbf16>
    %80 = vector.shape_cast %77 : vector<8x8xbf16> to vector<1x1x8x8xbf16>
    tpu.vector_store %arg8[%c0_41, %c2_42, %c0_43, %c0_44], %80 {strides = array<i32>} : memref<1x4x8x8xbf16, #tpu.memory_space<vmem>>, vector<1x1x8x8xbf16>,
    %81 = vector.extract_strided_slice %35 {offsets = [0, 80], sizes = [8, 8], strides = [1, 1]} : vector<8x96xf32> to vector<8x8xf32>
    %82 = tpu.transpose %81, [1, 0] : vector<8x8xf32> -> vector<8x8xf32>
    %83 = arith.truncf %82 : vector<8x8xf32> to vector<8x8xbf16>
    %c0_45 = arith.constant 0 : index
    %c2_46 = arith.constant 2 : index
    %c0_47 = arith.constant 0 : index
    %c0_48 = arith.constant 0 : index
    %84 = vector.load %arg9[%c0_45, %c2_46, %c0_47, %c0_48] : memref<1x4x8x8xbf16, #tpu.memory_space<vmem>>, vector<1x1x8x8xbf16>
    %85 = vector.shape_cast %84 : vector<1x1x8x8xbf16> to vector<8x8xbf16>
    %86 = vector.shape_cast %83 : vector<8x8xbf16> to vector<1x1x8x8xbf16>
    tpu.vector_store %arg9[%c0_45, %c2_46, %c0_47, %c0_48], %86 {strides = array<i32>} : memref<1x4x8x8xbf16, #tpu.memory_space<vmem>>, vector<1x1x8x8xbf16>,
    %87 = vector.extract_strided_slice %35 {offsets = [0, 24], sizes = [8, 8], strides = [1, 1]} : vector<8x96xf32> to vector<8x8xf32>
    %88 = arith.truncf %87 : vector<8x8xf32> to vector<8x8xbf16>
    %c0_49 = arith.constant 0 : index
    %c3 = arith.constant 3 : index
    %c0_50 = arith.constant 0 : index
    %c0_51 = arith.constant 0 : index
    %89 = vector.load %arg7[%c0_49, %c3, %c0_50, %c0_51] : memref<1x4x8x8xbf16, #tpu.memory_space<vmem>>, vector<1x1x8x8xbf16>
    %90 = vector.shape_cast %89 : vector<1x1x8x8xbf16> to vector<8x8xbf16>
    %91 = vector.shape_cast %88 : vector<8x8xbf16> to vector<1x1x8x8xbf16>
    tpu.vector_store %arg7[%c0_49, %c3, %c0_50, %c0_51], %91 {strides = array<i32>} : memref<1x4x8x8xbf16, #tpu.memory_space<vmem>>, vector<1x1x8x8xbf16>,
    %92 = vector.extract_strided_slice %35 {offsets = [0, 56], sizes = [8, 8], strides = [1, 1]} : vector<8x96xf32> to vector<8x8xf32>
    %93 = tpu.transpose %92, [1, 0] : vector<8x8xf32> -> vector<8x8xf32>
    %94 = arith.truncf %93 : vector<8x8xf32> to vector<8x8xbf16>
    %c0_52 = arith.constant 0 : index
    %c3_53 = arith.constant 3 : index
    %c0_54 = arith.constant 0 : index
    %c0_55 = arith.constant 0 : index
    %95 = vector.load %arg8[%c0_52, %c3_53, %c0_54, %c0_55] : memref<1x4x8x8xbf16, #tpu.memory_space<vmem>>, vector<1x1x8x8xbf16>
    %96 = vector.shape_cast %95 : vector<1x1x8x8xbf16> to vector<8x8xbf16>
    %97 = vector.shape_cast %94 : vector<8x8xbf16> to vector<1x1x8x8xbf16>
    tpu.vector_store %arg8[%c0_52, %c3_53, %c0_54, %c0_55], %97 {strides = array<i32>} : memref<1x4x8x8xbf16, #tpu.memory_space<vmem>>, vector<1x1x8x8xbf16>,
    %98 = vector.extract_strided_slice %35 {offsets = [0, 88], sizes = [8, 8], strides = [1, 1]} : vector<8x96xf32> to vector<8x8xf32>
    %99 = tpu.transpose %98, [1, 0] : vector<8x8xf32> -> vector<8x8xf32>
    %100 = arith.truncf %99 : vector<8x8xf32> to vector<8x8xbf16>
    %c0_56 = arith.constant 0 : index
    %c3_57 = arith.constant 3 : index
    %c0_58 = arith.constant 0 : index
    %c0_59 = arith.constant 0 : index
    %101 = vector.load %arg9[%c0_56, %c3_57, %c0_58, %c0_59] : memref<1x4x8x8xbf16, #tpu.memory_space<vmem>>, vector<1x1x8x8xbf16>
    %102 = vector.shape_cast %101 : vector<1x1x8x8xbf16> to vector<8x8xbf16>
    %103 = vector.shape_cast %100 : vector<8x8xbf16> to vector<1x1x8x8xbf16>
    tpu.vector_store %arg9[%c0_56, %c3_57, %c0_58, %c0_59], %103 {strides = array<i32>} : memref<1x4x8x8xbf16, #tpu.memory_space<vmem>>, vector<1x1x8x8xbf16>,
    return
  }
  func.func @transform_0(%arg0: i32, %arg1: i32) -> (i32, i32, i32) {
    %c0_i32 = arith.constant 0 : i32
    %c0_i32_0 = arith.constant 0 : i32
    return %arg0, %arg1, %c0_i32 : i32, i32, i32
  }
  func.func @transform_1(%arg0: i32, %arg1: i32) -> (i32, i32) {
    %c0_i32 = arith.constant 0 : i32
    %c0_i32_0 = arith.constant 0 : i32
    %c0_i32_1 = arith.constant 0 : i32
    return %c0_i32, %c0_i32_0 : i32, i32
  }
  func.func @transform_2(%arg0: i32, %arg1: i32) -> (i32, i32) {
    %c0_i32 = arith.constant 0 : i32
    %c0_i32_0 = arith.constant 0 : i32
    %c0_i32_1 = arith.constant 0 : i32
    return %c0_i32, %c0_i32_0 : i32, i32
  }
  func.func @transform_3(%arg0: i32, %arg1: i32) -> (i32, i32) {
    %c0_i32 = arith.constant 0 : i32
    %c0_i32_0 = arith.constant 0 : i32
    %c0_i32_1 = arith.constant 0 : i32
    return %c0_i32, %c0_i32_0 : i32, i32
  }
  func.func @transform_4(%arg0: i32, %arg1: i32) -> (i32, i32) {
    %c0_i32 = arith.constant 0 : i32
    %c0_i32_0 = arith.constant 0 : i32
    %c0_i32_1 = arith.constant 0 : i32
    return %c0_i32, %c0_i32_0 : i32, i32
  }
  func.func @transform_5(%arg0: i32, %arg1: i32) -> (i32, i32, i32, i32) {
    %c0_i32 = arith.constant 0 : i32
    %c0_i32_0 = arith.constant 0 : i32
    %c0_i32_1 = arith.constant 0 : i32
    return %arg0, %c0_i32, %arg1, %c0_i32_0 : i32, i32, i32, i32
  }
  func.func @transform_6(%arg0: i32, %arg1: i32) -> (i32, i32, i32, i32) {
    %c0_i32 = arith.constant 0 : i32
    %c0_i32_0 = arith.constant 0 : i32
    %c0_i32_1 = arith.constant 0 : i32
    return %arg0, %c0_i32, %c0_i32_0, %arg1 : i32, i32, i32, i32
  }
  func.func @transform_7(%arg0: i32, %arg1: i32) -> (i32, i32, i32, i32) {
    %c0_i32 = arith.constant 0 : i32
    %c0_i32_0 = arith.constant 0 : i32
    %c0_i32_1 = arith.constant 0 : i32
    return %arg0, %c0_i32, %c0_i32_0, %arg1 : i32, i32, i32, i32
  }
}

module attributes {stable_mosaic.version = 11 : i64} {
  func.func @head_kernel(%arg0: i32, %arg1: i32, %arg2: i32, %arg3: memref<1x8x32xbf16, #tpu.memory_space<vmem>>, %arg4: memref<128x32xbf16, #tpu.memory_space<vmem>>, %arg5: memref<1x8x128xf32, #tpu.memory_space<vmem>>) attributes {dimension_semantics = [#tpu.dimension_semantics<parallel>, #tpu.dimension_semantics<arbitrary>, #tpu.dimension_semantics<arbitrary>], iteration_bounds = array<i64: 1, 2, 1>, scalar_prefetch = 0 : i64, scratch_operands = 0 : i64, tpu.core_type = #tpu.core_type<tc>, window_params = [{transform_indices = @transform_0, window_bounds = array<i64: 1, 8, 32>}, {transform_indices = @transform_1, window_bounds = array<i64: 128, 32>}, {transform_indices = @transform_2, window_bounds = array<i64: 1, 8, 128>}]} {
    %c0 = arith.constant 0 : index
    %c0_0 = arith.constant 0 : index
    %c0_1 = arith.constant 0 : index
    %0 = vector.load %arg3[%c0, %c0_0, %c0_1] : memref<1x8x32xbf16, #tpu.memory_space<vmem>>, vector<1x8x32xbf16>
    %1 = vector.shape_cast %0 : vector<1x8x32xbf16> to vector<8x32xbf16>
    %c0_2 = arith.constant 0 : index
    %c0_3 = arith.constant 0 : index
    %2 = vector.load %arg4[%c0_2, %c0_3] : memref<128x32xbf16, #tpu.memory_space<vmem>>, vector<128x32xbf16>
    %cst = arith.constant dense<0.000000e+00> : vector<8x128xf32>
    %3 = tpu.matmul %1, %2, %cst {dimension_numbers = #tpu.dot_dimension_numbers<[1], [1], [0], [0], [0, 0, 1, 0], [], []>} : vector<8x32xbf16>, vector<128x32xbf16>, vector<8x128xf32> -> vector<8x128xf32>
    %c0_4 = arith.constant 0 : index
    %c0_5 = arith.constant 0 : index
    %c0_6 = arith.constant 0 : index
    %4 = vector.load %arg5[%c0_4, %c0_5, %c0_6] : memref<1x8x128xf32, #tpu.memory_space<vmem>>, vector<1x8x128xf32>
    %5 = vector.shape_cast %4 : vector<1x8x128xf32> to vector<8x128xf32>
    %6 = vector.shape_cast %3 : vector<8x128xf32> to vector<1x8x128xf32>
    tpu.vector_store %arg5[%c0_4, %c0_5, %c0_6], %6 {strides = array<i32>} : memref<1x8x128xf32, #tpu.memory_space<vmem>>, vector<1x8x128xf32>,
    return
  }
  func.func @transform_0(%arg0: i32, %arg1: i32, %arg2: i32) -> (i32, i32, i32) {
    %c0_i32 = arith.constant 0 : i32
    %c0_i32_0 = arith.constant 0 : i32
    return %arg1, %arg2, %c0_i32 : i32, i32, i32
  }
  func.func @transform_1(%arg0: i32, %arg1: i32, %arg2: i32) -> (i32, i32) {
    %c0_i32 = arith.constant 0 : i32
    %c0_i32_0 = arith.constant 0 : i32
    return %arg0, %c0_i32 : i32, i32
  }
  func.func @transform_2(%arg0: i32, %arg1: i32, %arg2: i32) -> (i32, i32, i32) {
    %c0_i32 = arith.constant 0 : i32
    return %arg1, %arg2, %arg0 : i32, i32, i32
  }
}

</mosaic_0001>

<llo_original>
// kernel: tpu_custom_call.1
$region0: #{tpu_custom_call.1}
  #allocation0 [shape = 'u32[]', space=smem, size = 0x4, offset = 0x4, fixed_abs, tag = 'smem constant byte address 0x4 - core index']
  #allocation1 [shape = 'u32[144,128]{1,0:T(1,128)}', space=vmem, size = 0x12000, scoped, tag = 'internal scratch']
  %s0 = inlined_call_operand.hbm [shape: f32[8,128], index: 0, kind: input, shape index: {}]
  %s1 = inlined_call_operand.hbm [shape: f32[16,128], index: 1, kind: input, shape index: {}]
  %s2 = inlined_call_operand.hbm [shape: f32[16,128], index: 2, kind: output, shape index: {}]
  %s3 = sld [smem:[#allocation0]]
  $region49: #{tpu_custom_call.1} parent=0
    _
  %s5 = ssub.s32 1, %s3
  %s6 = scalar_select 0, %s5, %s3
  $region1: #{tpu_custom_call.1} parent=0
    #allocation2 [shape = 'u8[4096]{0}', space=vmem, size = 0x1000, scoped, tag = 'input window, operand 0, single buffered']
    #allocation3 [shape = 's32[2]{0}', space=sflag, size = 0x8, scoped, tag = 'scoped memory for tpu_custom_call.1']
    #allocation4 [shape = 's32[2]{0}', space=sflag, size = 0x8, scoped, tag = 'scoped memory for tpu_custom_call.1']
    #allocation5 [shape = 'u8[8192]{0}', space=vmem, size = 0x2000, scoped, tag = 'input window, operand 1']
    #allocation6 [shape = 's32[2]{0}', space=sflag, size = 0x8, scoped, tag = 'scoped memory for tpu_custom_call.1']
    #allocation7 [shape = 'u8[8192]{0}', space=vmem, size = 0x2000, scoped, tag = 'output window, operand 0']
    %7 = vsyncpa [#allocation3], 0
    %8 = vsyncpa [#allocation6], 0
    %s9 = scalar_lea.sflag [#allocation6], 1
    %10 = vsyncpa %s9, 0
    %11 = vsyncpa [#allocation4], 0
    %s12 = scalar_lea.sflag [#allocation4], 1
    %13 = vsyncpa %s12, 0
    loop: start=0, step=1, limit=4
    $region2: #{tpu_custom_call.1} parent=1 // loop_pre_header
      _
    $region3: #{tpu_custom_call.1} parent=1 // loop_header
      %s15 = sphi 0, %s19
      %p16 = scmp.ge.s32.totalorder %s15, 4
      %s23 = sphi 0, %s23
      %s25 = sphi 0, %s23
      %s26 = sphi 0, %s25
      %s40 = sphi 0, %s26
      %s46 = sphi 0, %s48
      %s49 = sphi 0, %s46
      %s50 = sphi 0, %s49
      %s66 = sphi 0, %s50
      %s72 = sphi 0, %s74
      %s75 = sphi 0, %s72
      %s76 = sphi 0, %s75
      %s92 = sphi 0, %s76
    $region4: #{tpu_custom_call.1} parent=1 // loop_header_branch
      %18 = sbr.rel (%p16) target = $region8
    $region5: #{tpu_custom_call.1} parent=1 // loop_body
      %s20 = ssub.s32 %s15, 1
      %s21 = ssub.s32 %s15, 2
      %s22 = sadd.s32 %s15, 1
      %s24 = sadd.s32 %s23, 1
      %p27 = scmp.eq.s32.totalorder %s15, 1
      %p28 = scmp.ne.s32.totalorder %s23, %s25
      %p29 = scmp.eq.s32.totalorder %s15, 0
      %p30 = por %p28, %p29
      %p31 = scmp.ne.s32.totalorder %s23, %s25
      %p32 = scmp.eq.s32.totalorder %s20, 1
      %p33 = por %p31, %p32
      %p34 = scmp.ne.s32.totalorder %s25, %s26
      %p35 = scmp.eq.s32.totalorder %s20, 0
      %p36 = por %p34, %p35
      %p37 = scmp.ne.s32.totalorder %s25, %s26
      %p38 = scmp.eq.s32.totalorder %s21, 1
      %p39 = por %p37, %p38
      %p41 = scmp.ne.s32.totalorder %s26, %s40
      %p42 = scmp.eq.s32.totalorder %s21, 0
      %p43 = por %p41, %p42
      %s44 = ssub.s32 %s15, %s22
      %p45 = scmp.eq.s32.totalorder %s44, 0
      %s47 = sadd.s32 %s46, 1
      %s48 = scalar_select %p45, %s46, %s47
      %p51 = pneg %p45
      %p52 = scmp.eq.s32.totalorder %s15, 1
      %p53 = por %p51, %p52
      %p54 = scmp.ne.s32.totalorder %s46, %s49
      %p55 = scmp.eq.s32.totalorder %s15, 0
      %p56 = por %p54, %p55
      %p57 = scmp.ne.s32.totalorder %s46, %s49
      %p58 = scmp.eq.s32.totalorder %s20, 1
      %p59 = por %p57, %p58
      %p60 = scmp.ne.s32.totalorder %s49, %s50
      %p61 = scmp.eq.s32.totalorder %s20, 0
      %p62 = por %p60, %p61
      %p63 = scmp.ne.s32.totalorder %s49, %s50
      %p64 = scmp.eq.s32.totalorder %s21, 1
      %p65 = por %p63, %p64
      %p67 = scmp.ne.s32.totalorder %s50, %s66
      %p68 = scmp.eq.s32.totalorder %s21, 0
      %p69 = por %p67, %p68
      %s70 = ssub.s32 %s15, %s22
      %p71 = scmp.eq.s32.totalorder %s70, 0
      %s73 = sadd.s32 %s72, 1
      %s74 = scalar_select %p71, %s72, %s73
      %p77 = pneg %p71
      %p78 = scmp.eq.s32.totalorder %s15, 1
      %p79 = por %p77, %p78
      %p80 = scmp.ne.s32.totalorder %s72, %s75
      %p81 = scmp.eq.s32.totalorder %s15, 0
      %p82 = por %p80, %p81
      %p83 = scmp.ne.s32.totalorder %s72, %s75
      %p84 = scmp.eq.s32.totalorder %s20, 1
      %p85 = por %p83, %p84
      %p86 = scmp.ne.s32.totalorder %s75, %s76
      %p87 = scmp.eq.s32.totalorder %s20, 0
      %p88 = por %p86, %p87
      %p89 = scmp.ne.s32.totalorder %s75, %s76
      %p90 = scmp.eq.s32.totalorder %s21, 1
      %p91 = por %p89, %p90
      %p93 = scmp.ne.s32.totalorder %s76, %s92
      %p94 = scmp.eq.s32.totalorder %s21, 0
      %p95 = por %p93, %p94
      %p96 = scmp.le.s32.totalorder 1, %s15
      %p97 = scmp.lt.s32.totalorder %s15, 3
      %p98 = pnand %p96, %p97
      %p99 = pneg %p98
      // Predicated region
      $region9: #{tpu_custom_call.1} parent=5 // pred_check
        _
      $region10: #{tpu_custom_call.1} parent=5 // pred_check_branch
        %101 = sbr.rel (%p98) target = $region12
      $region11: #{tpu_custom_call.1} parent=5 // pred_region
        %s102 = ssub.s32 %s15, 1
        // Predicated region
        $region13: #{tpu_custom_call.1} parent=11 // pred_check
          %p103 = pneg %p36
        $region14: #{tpu_custom_call.1} parent=11 // pred_check_branch
          %105 = sbr.rel (%p103) target = $region16
        $region15: #{tpu_custom_call.1} parent=11 // pred_region
          %s107 = ssub.s32 128, 128
          %108 = vsyncadd [#allocation3], %s107
          %s110 = sshll.u32 [#allocation2], 4
          %s111 = int_to_ptr.vmem [resolvable:$true] %s110
          %113 = dma.hbm_to_vmem [thread:$0]  %s0, 128, %s111, [#allocation3]
        $region16: #{tpu_custom_call.1} parent=11 // pred_fallthru
          _
      $region12: #{tpu_custom_call.1} parent=5 // pred_fallthru
        _
      %p114 = scmp.lt.s32.totalorder %s15, 2
      // Predicated region
      $region17: #{tpu_custom_call.1} parent=5 // pred_check
        %p115 = pneg %p114
      $region18: #{tpu_custom_call.1} parent=5 // pred_check_branch
        %117 = sbr.rel (%p115) target = $region20
      $region19: #{tpu_custom_call.1} parent=5 // pred_region
        // Predicated region
        $region21: #{tpu_custom_call.1} parent=19 // pred_check
          %p118 = pneg %p56
        $region22: #{tpu_custom_call.1} parent=19 // pred_check_branch
          %120 = sbr.rel (%p118) target = $region24
        $region23: #{tpu_custom_call.1} parent=19 // pred_region
          %s121 = sand.u32 %s46, 1
          %s122 = scalar_lea.sflag [#allocation6], %s121
          %s123 = sand.u32 %s46, 1
          %s124 = smul.addr %s123, 8
          %s125 = scalar_lea.vmem [#allocation5], %s124
          %s127 = ssub.s32 128, 128
          %128 = vsyncadd %s122, %s127
          %s129 = smul.addr %s15, 128
          %s130 = scalar_lea.hbm %s1, %s129
          %s132 = sshll.u32 %s125, 4
          %s133 = int_to_ptr.vmem [resolvable:$true] %s132
          %135 = dma.hbm_to_vmem [thread:$0]  %s130, 128, %s133, %s122
        $region24: #{tpu_custom_call.1} parent=19 // pred_fallthru
          _
      $region20: #{tpu_custom_call.1} parent=5 // pred_fallthru
        _
      %p136 = scmp.le.s32.totalorder 1, %s15
      %p137 = scmp.lt.s32.totalorder %s15, 3
      %p138 = pnand %p136, %p137
      %p139 = pneg %p138
      // Predicated region
      $region25: #{tpu_custom_call.1} parent=5 // pred_check
        _
      $region26: #{tpu_custom_call.1} parent=5 // pred_check_branch
        %141 = sbr.rel (%p138) target = $region28
      $region27: #{tpu_custom_call.1} parent=5 // pred_region
        %s142 = ssub.s32 %s15, 1
        // Predicated region
        $region29: #{tpu_custom_call.1} parent=27 // pred_check
          %p143 = pneg %p36
        $region30: #{tpu_custom_call.1} parent=27 // pred_check_branch
          %145 = sbr.rel (%p143) target = $region32
        $region31: #{tpu_custom_call.1} parent=27 // pred_region
          %146 = dma.done [#allocation3], 128
        $region32: #{tpu_custom_call.1} parent=27 // pred_fallthru
          _
        %s147 = sand.u32 %s49, 1
        %s148 = scalar_lea.sflag [#allocation6], %s147
        %s149 = sand.u32 %s49, 1
        %s150 = smul.addr %s149, 8
        %s151 = scalar_lea.vmem [#allocation5], %s150
        // Predicated region
        $region33: #{tpu_custom_call.1} parent=27 // pred_check
          %p152 = pneg %p62
        $region34: #{tpu_custom_call.1} parent=27 // pred_check_branch
          %154 = sbr.rel (%p152) target = $region36
        $region35: #{tpu_custom_call.1} parent=27 // pred_region
          %155 = dma.done %s148, 128
        $region36: #{tpu_custom_call.1} parent=27 // pred_fallthru
          _
        %p156 = pneg %p36
        %p157 = pneg %p33
        %s158 = sand.u32 %s49, 1
        %s159 = scalar_lea.sflag [#allocation6], %s158
        %s160 = sand.u32 %s49, 1
        %s161 = smul.addr %s160, 8
        %s162 = scalar_lea.vmem [#allocation5], %s161
        %p163 = pneg %p62
        %p164 = pneg %p59
        %p165 = pneg %p88
        %p166 = pneg %p85
        %s167 = sand.u32 %s75, 1
        %s168 = scalar_lea.sflag [#allocation4], %s167
        %s169 = sand.u32 %s75, 1
        %s170 = smul.addr %s169, 8
        %s171 = scalar_lea.vmem [#allocation7], %s170
        %v172 = vld [vmem:[%s151] sm:$0xff]
        %v173 = vld [vmem:[#allocation2] sm:$0xff]
        %v174 = vadd.f32 %v172, %v173
        %175 = vst [vmem:[%s171] sm:$0xff] %v174
        %s176 = sand.u32 %s75, 1
        %s177 = scalar_lea.sflag [#allocation4], %s176
        %s178 = sand.u32 %s75, 1
        %s179 = smul.addr %s178, 8
        %s180 = scalar_lea.vmem [#allocation7], %s179
        // Predicated region
        $region37: #{tpu_custom_call.1} parent=27 // pred_check
          %p181 = pneg %p85
        $region38: #{tpu_custom_call.1} parent=27 // pred_check_branch
          %183 = sbr.rel (%p181) target = $region40
        $region39: #{tpu_custom_call.1} parent=27 // pred_region
          %s185 = ssub.s32 128, 128
          %186 = vsyncadd %s177, %s185
          %s187 = smul.addr %s20, 128
          %s188 = scalar_lea.hbm %s2, %s187
          %s190 = sshll.u32 %s180, 4
          %s191 = int_to_ptr.vmem [resolvable:$true] %s190
          %193 = dma.vmem_to_hbm [thread:$0]  %s191, 128, %s188, %s177
        $region40: #{tpu_custom_call.1} parent=27 // pred_fallthru
          _
      $region28: #{tpu_custom_call.1} parent=5 // pred_fallthru
        _
      %p194 = scmp.le.s32.totalorder 2, %s15
      // Predicated region
      $region41: #{tpu_custom_call.1} parent=5 // pred_check
        %p195 = pneg %p194
      $region42: #{tpu_custom_call.1} parent=5 // pred_check_branch
        %197 = sbr.rel (%p195) target = $region44
      $region43: #{tpu_custom_call.1} parent=5 // pred_region
        %s198 = ssub.s32 %s15, 2
        // Predicated region
        $region45: #{tpu_custom_call.1} parent=43 // pred_check
          %p199 = pneg %p91
        $region46: #{tpu_custom_call.1} parent=43 // pred_check_branch
          %201 = sbr.rel (%p199) target = $region48
        $region47: #{tpu_custom_call.1} parent=43 // pred_region
          %s202 = sand.u32 %s76, 1
          %s203 = scalar_lea.sflag [#allocation4], %s202
          %s204 = sand.u32 %s76, 1
          %s205 = smul.addr %s204, 8
          %s206 = scalar_lea.vmem [#allocation7], %s205
          %207 = dma.done %s203, 128
        $region48: #{tpu_custom_call.1} parent=43 // pred_fallthru
          _
      $region44: #{tpu_custom_call.1} parent=5 // pred_fallthru
        _
    $region6: #{tpu_custom_call.1} parent=1 // loop_footer
      %s19 = sadd.s32 1, %s15
    $region7: #{tpu_custom_call.1} parent=1 // loop_footer_branch
      %14 = sbr.rel target = $region3
    $region8: #{tpu_custom_call.1} parent=1 // loop_exit
      _
    %208 = vsyncpa [#allocation3], 1
    %s209 = scalar_lea.sflag [#allocation3], 1
    %210 = vsyncpa %s209, 1
    %211 = vsyncpa [#allocation6], 1
    %s212 = scalar_lea.sflag [#allocation6], 1
    %213 = vsyncpa %s212, 1
    %214 = vsyncpa [#allocation4], 1
    %s215 = scalar_lea.sflag [#allocation4], 1
    %216 = vsyncpa %s215, 1

// kernel: gpt_forward.10
$region0: #{gpt_forward.10}
  #allocation0 [shape = 'u32[]', space=smem, size = 0x4, offset = 0x4, fixed_abs, tag = 'smem constant byte address 0x4 - core index']
  #allocation1 [shape = 'u32[144,128]{1,0:T(1,128)}', space=vmem, size = 0x12000, scoped, tag = 'internal scratch']
  %s0 = inlined_call_operand.vmem [shape: f32[2,8,32], index: 0, kind: input, shape index: {}]
  %s1 = inlined_call_operand.vmem [shape: f32[1,32], index: 1, kind: input, shape index: {}]
  %s2 = inlined_call_operand.vmem [shape: f32[1,32], index: 2, kind: input, shape index: {}]
  %s3 = inlined_call_operand.vmem [shape: bf16[2,8,32], index: 3, kind: output, shape index: {}]
  %s4 = sld [smem:[#allocation0]]
  $region45: #{gpt_forward.10} parent=0
    _
  %s6 = ssub.s32 1, %s4
  %s7 = scalar_select 0, %s6, %s4
  loop: start=0, step=1, limit=4
  $region2: #{gpt_forward.10} parent=0 // loop_pre_header
    _
  $region3: #{gpt_forward.10} parent=0 // loop_header
    %s9 = sphi 0, %s13
    %p10 = scmp.ge.s32.totalorder %s9, 4
    %s16 = sphi 0, %s28
    %s17 = sphi 0, %s24
    %s18 = sphi 0, %s16
    %s19 = sphi 0, %s17
    %s20 = sphi 0, %s18
    %s21 = sphi 0, %s19
    %s33 = sphi 0, %s35
    %s36 = sphi 0, %s33
    %s37 = sphi 0, %s36
    %s53 = sphi 0, %s37
    %s57 = sphi 0, %s57
    %s59 = sphi 0, %s57
    %s60 = sphi 0, %s59
    %s74 = sphi 0, %s60
    %s78 = sphi 0, %s78
    %s80 = sphi 0, %s78
    %s81 = sphi 0, %s80
    %s95 = sphi 0, %s81
    %s103 = sphi 0, %s105
    %s106 = sphi 0, %s103
    %s107 = sphi 0, %s106
    %s123 = sphi 0, %s107
  $region4: #{gpt_forward.10} parent=0 // loop_header_branch
    %12 = sbr.rel (%p10) target = $region8
  $region5: #{gpt_forward.10} parent=0 // loop_body
    %s14 = ssub.s32 %s9, 1
    %s15 = ssub.s32 %s9, 2
    %s22 = sadd.s32 1, %s17
    %p23 = scmp.ge.s32.totalorder %s22, 1
    %s24 = scalar_select %p23, 0, %s22
    %s25 = sadd.s32 1, %s16
    %s26 = scalar_select %p23, %s25, %s16
    %p27 = scmp.ge.s32.totalorder %s26, 2
    %s28 = scalar_select %p27, 0, %s26
    %s29 = ssub.s32 %s16, %s28
    %s30 = ssub.s32 %s17, %s24
    %s31 = sor.u32 %s29, %s30
    %p32 = scmp.eq.s32.totalorder %s31, 0
    %s34 = sadd.s32 %s33, 1
    %s35 = scalar_select %p32, %s33, %s34
    %p38 = pneg %p32
    %p39 = scmp.eq.s32.totalorder %s9, 1
    %p40 = por %p38, %p39
    %p41 = scmp.ne.s32.totalorder %s33, %s36
    %p42 = scmp.eq.s32.totalorder %s9, 0
    %p43 = por %p41, %p42
    %p44 = scmp.ne.s32.totalorder %s33, %s36
    %p45 = scmp.eq.s32.totalorder %s14, 1
    %p46 = por %p44, %p45
    %p47 = scmp.ne.s32.totalorder %s36, %s37
    %p48 = scmp.eq.s32.totalorder %s14, 0
    %p49 = por %p47, %p48
    %p50 = scmp.ne.s32.totalorder %s36, %s37
    %p51 = scmp.eq.s32.totalorder %s15, 1
    %p52 = por %p50, %p51
    %p54 = scmp.ne.s32.totalorder %s37, %s53
    %p55 = scmp.eq.s32.totalorder %s15, 0
    %p56 = por %p54, %p55
    %s58 = sadd.s32 %s57, 1
    %p61 = scmp.eq.s32.totalorder %s9, 1
    %p62 = scmp.ne.s32.totalorder %s57, %s59
    %p63 = scmp.eq.s32.totalorder %s9, 0
    %p64 = por %p62, %p63
    %p65 = scmp.ne.s32.totalorder %s57, %s59
    %p66 = scmp.eq.s32.totalorder %s14, 1
    %p67 = por %p65, %p66
    %p68 = scmp.ne.s32.totalorder %s59, %s60
    %p69 = scmp.eq.s32.totalorder %s14, 0
    %p70 = por %p68, %p69
    %p71 = scmp.ne.s32.totalorder %s59, %s60
    %p72 = scmp.eq.s32.totalorder %s15, 1
    %p73 = por %p71, %p72
    %p75 = scmp.ne.s32.totalorder %s60, %s74
    %p76 = scmp.eq.s32.totalorder %s15, 0
    %p77 = por %p75, %p76
    %s79 = sadd.s32 %s78, 1
    %p82 = scmp.eq.s32.totalorder %s9, 1
    %p83 = scmp.ne.s32.totalorder %s78, %s80
    %p84 = scmp.eq.s32.totalorder %s9, 0
    %p85 = por %p83, %p84
    %p86 = scmp.ne.s32.totalorder %s78, %s80
    %p87 = scmp.eq.s32.totalorder %s14, 1
    %p88 = por %p86, %p87
    %p89 = scmp.ne.s32.totalorder %s80, %s81
    %p90 = scmp.eq.s32.totalorder %s14, 0
    %p91 = por %p89, %p90
    %p92 = scmp.ne.s32.totalorder %s80, %s81
    %p93 = scmp.eq.s32.totalorder %s15, 1
    %p94 = por %p92, %p93
    %p96 = scmp.ne.s32.totalorder %s81, %s95
    %p97 = scmp.eq.s32.totalorder %s15, 0
    %p98 = por %p96, %p97
    %s99 = ssub.s32 %s16, %s28
    %s100 = ssub.s32 %s17, %s24
    %s101 = sor.u32 %s99, %s100
    %p102 = scmp.eq.s32.totalorder %s101, 0
    %s104 = sadd.s32 %s103, 1
    %s105 = scalar_select %p102, %s103, %s104
    %p108 = pneg %p102
    %p109 = scmp.eq.s32.totalorder %s9, 1
    %p110 = por %p108, %p109
    %p111 = scmp.ne.s32.totalorder %s103, %s106
    %p112 = scmp.eq.s32.totalorder %s9, 0
    %p113 = por %p111, %p112
    %p114 = scmp.ne.s32.totalorder %s103, %s106
    %p115 = scmp.eq.s32.totalorder %s14, 1
    %p116 = por %p114, %p115
    %p117 = scmp.ne.s32.totalorder %s106, %s107
    %p118 = scmp.eq.s32.totalorder %s14, 0
    %p119 = por %p117, %p118
    %p120 = scmp.ne.s32.totalorder %s106, %s107
    %p121 = scmp.eq.s32.totalorder %s15, 1
    %p122 = por %p120, %p121
    %p124 = scmp.ne.s32.totalorder %s107, %s123
    %p125 = scmp.eq.s32.totalorder %s15, 0
    %p126 = por %p124, %p125
    %p127 = scmp.le.s32.totalorder 1, %s9
    %p128 = scmp.lt.s32.totalorder %s9, 3
    %p129 = pnand %p127, %p128
    %p130 = pneg %p129
    // Predicated region
    $region9: #{gpt_forward.10} parent=5 // pred_check
      _
    $region10: #{gpt_forward.10} parent=5 // pred_check_branch
      %132 = sbr.rel (%p129) target = $region12
    $region11: #{gpt_forward.10} parent=5 // pred_region
      %s133 = ssub.s32 %s9, 1
      // Predicated region
      $region13: #{gpt_forward.10} parent=11 // pred_check
        %p134 = pneg %p70
      $region14: #{gpt_forward.10} parent=11 // pred_check_branch
        %136 = sbr.rel (%p134) target = $region16
      $region15: #{gpt_forward.10} parent=11 // pred_region
        _
      $region16: #{gpt_forward.10} parent=11 // pred_fallthru
        _
      // Predicated region
      $region17: #{gpt_forward.10} parent=11 // pred_check
        %p137 = pneg %p91
      $region18: #{gpt_forward.10} parent=11 // pred_check_branch
        %139 = sbr.rel (%p137) target = $region20
      $region19: #{gpt_forward.10} parent=11 // pred_region
        _
      $region20: #{gpt_forward.10} parent=11 // pred_fallthru
        _
    $region12: #{gpt_forward.10} parent=5 // pred_fallthru
      _
    %p140 = scmp.lt.s32.totalorder %s9, 2
    // Predicated region
    $region21: #{gpt_forward.10} parent=5 // pred_check
      %p141 = pneg %p140
    $region22: #{gpt_forward.10} parent=5 // pred_check_branch
      %143 = sbr.rel (%p141) target = $region24
    $region23: #{gpt_forward.10} parent=5 // pred_region
      // Predicated region
      $region25: #{gpt_forward.10} parent=23 // pred_check
        %p144 = pneg %p43
      $region26: #{gpt_forward.10} parent=23 // pred_check_branch
        %146 = sbr.rel (%p144) target = $region28
      $region27: #{gpt_forward.10} parent=23 // pred_region
        %p147 = scmp.lt.s32.totalorder %s16, 1
        %s148 = scalar_select %p147, %s16, 1
        %p149 = scmp.lt.s32.totalorder %s17, 0
        %s150 = scalar_select %p149, %s17, 0
        %s151 = sadd.s32 %s150, %s148
        %s152 = smul.addr %s151, 8
        %s153 = scalar_lea.vmem %s0, %s152
      $region28: #{gpt_forward.10} parent=23 // pred_fallthru
        _
    $region24: #{gpt_forward.10} parent=5 // pred_fallthru
      _
    %p154 = scmp.le.s32.totalorder 1, %s9
    %p155 = scmp.lt.s32.totalorder %s9, 3
    %p156 = pnand %p154, %p155
    %p157 = pneg %p156
    // Predicated region
    $region29: #{gpt_forward.10} parent=5 // pred_check
      _
    $region30: #{gpt_forward.10} parent=5 // pred_check_branch
      %159 = sbr.rel (%p156) target = $region32
    $region31: #{gpt_forward.10} parent=5 // pred_region
      %s160 = ssub.s32 %s9, 1
      %p161 = scmp.lt.s32.totalorder %s18, 1
      %s162 = scalar_select %p161, %s18, 1
      %p163 = scmp.lt.s32.totalorder %s19, 0
      %s164 = scalar_select %p163, %s19, 0
      %s165 = sadd.s32 %s164, %s162
      %s166 = smul.addr %s165, 8
      %s167 = scalar_lea.vmem %s0, %s166
      %p168 = pneg %p49
      %p169 = pneg %p46
      %p170 = pneg %p70
      %p171 = pneg %p67
      %p172 = pneg %p91
      %p173 = pneg %p88
      %p174 = pneg %p119
      %p175 = pneg %p116
      %p176 = scmp.lt.s32.totalorder %s18, 1
      %s177 = scalar_select %p176, %s18, 1
      %p178 = scmp.lt.s32.totalorder %s19, 0
      %s179 = scalar_select %p178, %s19, 0
      %s180 = sadd.s32 %s179, %s177
      %s181 = smul.addr %s180, 4
      %s182 = scalar_lea.vmem %s3, %s181
      %p183 = scmp.lt.s32.totalorder %s18, 1
      %s184 = scalar_select %p183, %s18, 1
      %p185 = scmp.lt.s32.totalorder %s19, 0
      %s186 = scalar_select %p185, %s19, 0
      %s187 = sadd.s32 %s186, %s184
      %s188 = smul.addr %s187, 8
      %s189 = scalar_lea.vmem %s0, %s188
      %p190 = scmp.lt.s32.totalorder %s18, 1
      %s191 = scalar_select %p190, %s18, 1
      %p192 = scmp.lt.s32.totalorder %s19, 0
      %s193 = scalar_select %p192, %s19, 0
      %s194 = sadd.s32 %s193, %s191
      %s195 = smul.addr %s194, 4
      %s196 = scalar_lea.vmem %s3, %s195
      %v197 = vld [vmem:[%s189] sm:$0xff]
      %v198 = vld [vmem:[%s1] sm:$0x1]
      %v199 = vld [vmem:[%s2] sm:$0x1]
      %vm200 = vcmask 261120
      %v201 = vsel %vm200, %v197, 0.0
      %202 = vadd.xlane.f32.xlu0 %v201
      %v203 = vpop.xlane.xlu0 %202
      %v204 = vrcp.pop 32.0
      %v205 = vmul.f32 %v203, %v204
      %v206 = vsub.f32 %v197, %v205
      %v207 = vmul.f32 %v206, %v206
      %v208 = vsel %vm200, %v207, 0.0
      %209 = vadd.xlane.f32.xlu0 %v208
      %v210 = vpop.xlane.xlu0 %209
      %v211 = vmul.f32 %v210, %v204
      %v212 = vadd.f32 %v211, 1e-05
      %v213 = vrsqrt.pop %v212
      %v214 = vmul.f32 %v206, %v213
      %v216 = vlaneseq
      %v217 = vshrl.u32 %v216, 7
      %v218 = vsub.s32 0, %v217
      %v219 = vrot.slane %v198, %v218
      %v221 = vmul.f32 %v214, %v219
      %v223 = vlaneseq
      %v224 = vshrl.u32 %v223, 7
      %v225 = vsub.s32 0, %v224
      %v226 = vrot.slane %v199, %v225
      %v228 = vadd.f32 %v221, %v226
      %v229 = vpack.c.bf16 %v228, %v228
      %vm230 = vcmask 257024
      %231 = vst.msk [vmem:[%s196] sm:$0xf] %vm230, %v229
      %p232 = scmp.lt.s32.totalorder %s18, 1
      %s233 = scalar_select %p232, %s18, 1
      %p234 = scmp.lt.s32.totalorder %s19, 0
      %s235 = scalar_select %p234, %s19, 0
      %s236 = sadd.s32 %s235, %s233
      %s237 = smul.addr %s236, 4
      %s238 = scalar_lea.vmem %s3, %s237
      // Predicated region
      $region33: #{gpt_forward.10} parent=31 // pred_check
        %p239 = pneg %p116
      $region34: #{gpt_forward.10} parent=31 // pred_check_branch
        %241 = sbr.rel (%p239) target = $region36
      $region35: #{gpt_forward.10} parent=31 // pred_region
        _
      $region36: #{gpt_forward.10} parent=31 // pred_fallthru
        _
    $region32: #{gpt_forward.10} parent=5 // pred_fallthru
      _
    %p242 = scmp.le.s32.totalorder 2, %s9
    // Predicated region
    $region37: #{gpt_forward.10} parent=5 // pred_check
      %p243 = pneg %p242
    $region38: #{gpt_forward.10} parent=5 // pred_check_branch
      %245 = sbr.rel (%p243) target = $region40
    $region39: #{gpt_forward.10} parent=5 // pred_region
      %s246 = ssub.s32 %s9, 2
      // Predicated region
      $region41: #{gpt_forward.10} parent=39 // pred_check
        %p247 = pneg %p122
      $region42: #{gpt_forward.10} parent=39 // pred_check_branch
        %249 = sbr.rel (%p247) target = $region44
      $region43: #{gpt_forward.10} parent=39 // pred_region
        %p250 = scmp.lt.s32.totalorder %s20, 1
        %s251 = scalar_select %p250, %s20, 1
        %p252 = scmp.lt.s32.totalorder %s21, 0
        %s253 = scalar_select %p252, %s21, 0
        %s254 = sadd.s32 %s253, %s251
        %s255 = smul.addr %s254, 4
        %s256 = scalar_lea.vmem %s3, %s255
      $region44: #{gpt_forward.10} parent=39 // pred_fallthru
        _
    $region40: #{gpt_forward.10} parent=5 // pred_fallthru
      _
  $region6: #{gpt_forward.10} parent=0 // loop_footer
    %s13 = sadd.s32 1, %s9
  $region7: #{gpt_forward.10} parent=0 // loop_footer_branch
    %8 = sbr.rel target = $region3
  $region8: #{gpt_forward.10} parent=0 // loop_exit
    _

// kernel: gpt_forward.11
$region0: #{gpt_forward.11}
  #allocation0 [shape = 'u32[]', space=smem, size = 0x4, offset = 0x4, fixed_abs, tag = 'smem constant byte address 0x4 - core index']
  #allocation1 [shape = 'u32[144,128]{1,0:T(1,128)}', space=vmem, size = 0x12000, scoped, tag = 'internal scratch']
  %s0 = inlined_call_operand.vmem [shape: bf16[2,8,32], index: 0, kind: input, shape index: {}]
  %s1 = inlined_call_operand.vmem [shape: bf16[128,32], index: 1, kind: input, shape index: {}]
  %s2 = inlined_call_operand.hbm [shape: f32[2,8,128], index: 2, kind: output, shape index: {}]
  %s3 = sld [smem:[#allocation0]]
  $region41: #{gpt_forward.11} parent=0
    _
  %s5 = ssub.s32 1, %s3
  %s6 = scalar_select 0, %s5, %s3
  $region1: #{gpt_forward.11} parent=0
    #allocation2 [shape = 'u8[8192]{0}', space=vmem, size = 0x2000, scoped, tag = 'output window, operand 0']
    #allocation3 [shape = 's32[2]{0}', space=sflag, size = 0x8, scoped, tag = 'scoped memory for gpt_forward.11']
    %7 = vsyncpa [#allocation3], 0
    %s8 = scalar_lea.sflag [#allocation3], 1
    %9 = vsyncpa %s8, 0
    loop: start=0, step=1, limit=4
    $region2: #{gpt_forward.11} parent=1 // loop_pre_header
      _
    $region3: #{gpt_forward.11} parent=1 // loop_header
      %s11 = sphi 0, %s15
      %p12 = scmp.ge.s32.totalorder %s11, 4
      %s18 = sphi 0, %s37
      %s19 = sphi 0, %s33
      %s20 = sphi 0, %s29
      %s21 = sphi 0, %s18
      %s22 = sphi 0, %s19
      %s23 = sphi 0, %s20
      %s24 = sphi 0, %s21
      %s25 = sphi 0, %s22
      %s26 = sphi 0, %s23
      %s42 = sphi 0, %s44
      %s45 = sphi 0, %s42
      %s46 = sphi 0, %s45
      %s62 = sphi 0, %s46
      %s68 = sphi 0, %s70
      %s71 = sphi 0, %s68
      %s72 = sphi 0, %s71
      %s88 = sphi 0, %s72
      %s98 = sphi 0, %s100
      %s101 = sphi 0, %s98
      %s102 = sphi 0, %s101
      %s118 = sphi 0, %s102
    $region4: #{gpt_forward.11} parent=1 // loop_header_branch
      %14 = sbr.rel (%p12) target = $region8
    $region5: #{gpt_forward.11} parent=1 // loop_body
      %s16 = ssub.s32 %s11, 1
      %s17 = ssub.s32 %s11, 2
      %s27 = sadd.s32 1, %s20
      %p28 = scmp.ge.s32.totalorder %s27, 1
      %s29 = scalar_select %p28, 0, %s27
      %s30 = sadd.s32 1, %s19
      %s31 = scalar_select %p28, %s30, %s19
      %p32 = scmp.ge.s32.totalorder %s31, 2
      %s33 = scalar_select %p32, 0, %s31
      %s34 = sadd.s32 1, %s18
      %s35 = scalar_select %p32, %s34, %s18
      %p36 = scmp.ge.s32.totalorder %s35, 1
      %s37 = scalar_select %p36, 0, %s35
      %s38 = ssub.s32 %s19, %s33
      %s39 = ssub.s32 %s20, %s29
      %s40 = sor.u32 %s38, %s39
      %p41 = scmp.eq.s32.totalorder %s40, 0
      %s43 = sadd.s32 %s42, 1
      %s44 = scalar_select %p41, %s42, %s43
      %p47 = pneg %p41
      %p48 = scmp.eq.s32.totalorder %s11, 1
      %p49 = por %p47, %p48
      %p50 = scmp.ne.s32.totalorder %s42, %s45
      %p51 = scmp.eq.s32.totalorder %s11, 0
      %p52 = por %p50, %p51
      %p53 = scmp.ne.s32.totalorder %s42, %s45
      %p54 = scmp.eq.s32.totalorder %s16, 1
      %p55 = por %p53, %p54
      %p56 = scmp.ne.s32.totalorder %s45, %s46
      %p57 = scmp.eq.s32.totalorder %s16, 0
      %p58 = por %p56, %p57
      %p59 = scmp.ne.s32.totalorder %s45, %s46
      %p60 = scmp.eq.s32.totalorder %s17, 1
      %p61 = por %p59, %p60
      %p63 = scmp.ne.s32.totalorder %s46, %s62
      %p64 = scmp.eq.s32.totalorder %s17, 0
      %p65 = por %p63, %p64
      %s66 = ssub.s32 %s18, %s37
      %p67 = scmp.eq.s32.totalorder %s66, 0
      %s69 = sadd.s32 %s68, 1
      %s70 = scalar_select %p67, %s68, %s69
      %p73 = pneg %p67
      %p74 = scmp.eq.s32.totalorder %s11, 1
      %p75 = por %p73, %p74
      %p76 = scmp.ne.s32.totalorder %s68, %s71
      %p77 = scmp.eq.s32.totalorder %s11, 0
      %p78 = por %p76, %p77
      %p79 = scmp.ne.s32.totalorder %s68, %s71
      %p80 = scmp.eq.s32.totalorder %s16, 1
      %p81 = por %p79, %p80
      %p82 = scmp.ne.s32.totalorder %s71, %s72
      %p83 = scmp.eq.s32.totalorder %s16, 0
      %p84 = por %p82, %p83
      %p85 = scmp.ne.s32.totalorder %s71, %s72
      %p86 = scmp.eq.s32.totalorder %s17, 1
      %p87 = por %p85, %p86
      %p89 = scmp.ne.s32.totalorder %s72, %s88
      %p90 = scmp.eq.s32.totalorder %s17, 0
      %p91 = por %p89, %p90
      %s92 = ssub.s32 %s19, %s33
      %s93 = ssub.s32 %s20, %s29
      %s94 = sor.u32 %s92, %s93
      %s95 = ssub.s32 %s18, %s37
      %s96 = sor.u32 %s94, %s95
      %p97 = scmp.eq.s32.totalorder %s96, 0
      %s99 = sadd.s32 %s98, 1
      %s100 = scalar_select %p97, %s98, %s99
      %p103 = pneg %p97
      %p104 = scmp.eq.s32.totalorder %s11, 1
      %p105 = por %p103, %p104
      %p106 = scmp.ne.s32.totalorder %s98, %s101
      %p107 = scmp.eq.s32.totalorder %s11, 0
      %p108 = por %p106, %p107
      %p109 = scmp.ne.s32.totalorder %s98, %s101
      %p110 = scmp.eq.s32.totalorder %s16, 1
      %p111 = por %p109, %p110
      %p112 = scmp.ne.s32.totalorder %s101, %s102
      %p113 = scmp.eq.s32.totalorder %s16, 0
      %p114 = por %p112, %p113
      %p115 = scmp.ne.s32.totalorder %s101, %s102
      %p116 = scmp.eq.s32.totalorder %s17, 1
      %p117 = por %p115, %p116
      %p119 = scmp.ne.s32.totalorder %s102, %s118
      %p120 = scmp.eq.s32.totalorder %s17, 0
      %p121 = por %p119, %p120
      %p122 = scmp.le.s32.totalorder 1, %s11
      %p123 = scmp.lt.s32.totalorder %s11, 3
      %p124 = pnand %p122, %p123
      %p125 = pneg %p124
      // Predicated region
      $region9: #{gpt_forward.11} parent=5 // pred_check
        _
      $region10: #{gpt_forward.11} parent=5 // pred_check_branch
        %127 = sbr.rel (%p124) target = $region12
      $region11: #{gpt_forward.11} parent=5 // pred_region
        %s128 = ssub.s32 %s11, 1
        // Predicated region
        $region13: #{gpt_forward.11} parent=11 // pred_check
          %p129 = pneg %p84
        $region14: #{gpt_forward.11} parent=11 // pred_check_branch
          %131 = sbr.rel (%p129) target = $region16
        $region15: #{gpt_forward.11} parent=11 // pred_region
          %s132 = smul.u32 16, %s21
          %p133 = scmp.lt.s32.totalorder %s132, 15
          %s134 = scalar_select %p133, %s132, 15
          %s135 = smul.addr %s134, 4
          %s136 = scalar_lea.vmem %s1, %s135
          %s137 = smul.u32 16, %s21
        $region16: #{gpt_forward.11} parent=11 // pred_fallthru
          _
      $region12: #{gpt_forward.11} parent=5 // pred_fallthru
        _
      %p138 = scmp.lt.s32.totalorder %s11, 2
      // Predicated region
      $region17: #{gpt_forward.11} parent=5 // pred_check
        %p139 = pneg %p138
      $region18: #{gpt_forward.11} parent=5 // pred_check_branch
        %141 = sbr.rel (%p139) target = $region20
      $region19: #{gpt_forward.11} parent=5 // pred_region
        // Predicated region
        $region21: #{gpt_forward.11} parent=19 // pred_check
          %p142 = pneg %p52
        $region22: #{gpt_forward.11} parent=19 // pred_check_branch
          %144 = sbr.rel (%p142) target = $region24
        $region23: #{gpt_forward.11} parent=19 // pred_region
          %p145 = scmp.lt.s32.totalorder %s19, 1
          %s146 = scalar_select %p145, %s19, 1
          %p147 = scmp.lt.s32.totalorder %s20, 0
          %s148 = scalar_select %p147, %s20, 0
          %s149 = sadd.s32 %s148, %s146
          %s150 = smul.addr %s149, 4
          %s151 = scalar_lea.vmem %s0, %s150
        $region24: #{gpt_forward.11} parent=19 // pred_fallthru
          _
      $region20: #{gpt_forward.11} parent=5 // pred_fallthru
        _
      %p152 = scmp.le.s32.totalorder 1, %s11
      %p153 = scmp.lt.s32.totalorder %s11, 3
      %p154 = pnand %p152, %p153
      %p155 = pneg %p154
      // Predicated region
      $region25: #{gpt_forward.11} parent=5 // pred_check
        _
      $region26: #{gpt_forward.11} parent=5 // pred_check_branch
        %157 = sbr.rel (%p154) target = $region28
      $region27: #{gpt_forward.11} parent=5 // pred_region
        %s158 = ssub.s32 %s11, 1
        %p159 = scmp.lt.s32.totalorder %s22, 1
        %s160 = scalar_select %p159, %s22, 1
        %p161 = scmp.lt.s32.totalorder %s23, 0
        %s162 = scalar_select %p161, %s23, 0
        %s163 = sadd.s32 %s162, %s160
        %s164 = smul.addr %s163, 4
        %s165 = scalar_lea.vmem %s0, %s164
        %p166 = pneg %p58
        %p167 = pneg %p55
        %s168 = smul.u32 16, %s21
        %p169 = scmp.lt.s32.totalorder %s168, 15
        %s170 = scalar_select %p169, %s168, 15
        %s171 = smul.addr %s170, 4
        %s172 = scalar_lea.vmem %s1, %s171
        %p173 = pneg %p84
        %p174 = pneg %p81
        %p175 = pneg %p114
        %p176 = pneg %p111
        %s177 = sand.u32 %s101, 1
        %s178 = scalar_lea.sflag [#allocation3], %s177
        %s179 = sand.u32 %s101, 1
        %s180 = smul.addr %s179, 8
        %s181 = scalar_lea.vmem [#allocation2], %s180
        %p182 = scmp.lt.s32.totalorder %s22, 1
        %s183 = scalar_select %p182, %s22, 1
        %p184 = scmp.lt.s32.totalorder %s23, 0
        %s185 = scalar_select %p184, %s23, 0
        %s186 = sadd.s32 %s185, %s183
        %s187 = smul.addr %s186, 4
        %s188 = scalar_lea.vmem %s0, %s187
        %s189 = smul.u32 16, %s21
        %p190 = scmp.lt.s32.totalorder %s189, 15
        %s191 = scalar_select %p190, %s189, 15
        %s192 = smul.addr %s191, 4
        %s193 = scalar_lea.vmem %s1, %s192
        %s194 = smul.u32 16, %s21
        %v196 = vld [vmem:[%s188] sm:$0xf]
        %v197 = vld [vmem:[%s193] sm:$0xf]
        %v198 = vld [vmem:[%s193 + $0x4] sm:$0xf]
        %v199 = vld [vmem:[%s193 + $0x8] sm:$0xf]
        %v200 = vld [vmem:[%s193 + $0xc] sm:$0xf]
        %v201 = vld [vmem:[%s193 + $0x10] sm:$0xf]
        %v202 = vld [vmem:[%s193 + $0x14] sm:$0xf]
        %v203 = vld [vmem:[%s193 + $0x18] sm:$0xf]
        %v204 = vld [vmem:[%s193 + $0x1c] sm:$0xf]
        %v205 = vld [vmem:[%s193 + $0x20] sm:$0xf]
        %v206 = vld [vmem:[%s193 + $0x24] sm:$0xf]
        %v207 = vld [vmem:[%s193 + $0x28] sm:$0xf]
        %v208 = vld [vmem:[%s193 + $0x2c] sm:$0xf]
        %v209 = vld [vmem:[%s193 + $0x30] sm:$0xf]
        %v210 = vld [vmem:[%s193 + $0x34] sm:$0xf]
        %v211 = vld [vmem:[%s193 + $0x38] sm:$0xf]
        %v212 = vld [vmem:[%s193 + $0x3c] sm:$0xf]
        %v229 = vunpack.c.l.b16 %v197
        %v230 = vunpack.c.l.b16 %v198
        %v231 = vunpack.c.l.b16 %v199
        %v232 = vunpack.c.l.b16 %v200
        %v233 = vunpack.c.l.b16 %v201
        %v234 = vunpack.c.l.b16 %v202
        %v235 = vunpack.c.l.b16 %v203
        %v236 = vunpack.c.l.b16 %v204
        %v237 = vunpack.c.l.b16 %v205
        %v238 = vunpack.c.l.b16 %v206
        %v239 = vunpack.c.l.b16 %v207
        %v240 = vunpack.c.l.b16 %v208
        %v241 = vunpack.c.l.b16 %v209
        %v242 = vunpack.c.l.b16 %v210
        %v243 = vunpack.c.l.b16 %v211
        %v244 = vunpack.c.l.b16 %v212
        %v245 = vpack.c.b16 %v230, %v229
        %v246 = vpack.c.b16 %v232, %v231
        %v247 = vpack.c.b16 %v234, %v233
        %v248 = vpack.c.b16 %v236, %v235
        %v249 = vpack.c.b16 %v238, %v237
        %v250 = vpack.c.b16 %v240, %v239
        %v251 = vpack.c.b16 %v242, %v241
        %v252 = vpack.c.b16 %v244, %v243
        %vm253 = vcmask 261120
        %v255 = vsel %vm253, %v196, 0
        %v258 = vsel %vm253, %v245, 0
        %v261 = vsel %vm253, %v246, 0
        %v264 = vsel %vm253, %v247, 0
        %v267 = vsel %vm253, %v248, 0
        %v270 = vsel %vm253, %v249, 0
        %v273 = vsel %vm253, %v250, 0
        %v276 = vsel %vm253, %v251, 0
        %v279 = vsel %vm253, %v252, 0
        %281 = vmatprep.subr.bf16.mxu0 0
        %282 = vmatpush1.bf16.xpose.msra.mxu0 %v258
        %283 = vmatprep.subr.bf16.mxu0 0
        %284 = vmatpush1.bf16.xpose.msra.mxu0 %v261
        %285 = vmatprep.subr.bf16.mxu0 0
        %286 = vmatpush1.bf16.xpose.msra.mxu0 %v264
        %287 = vmatprep.subr.bf16.mxu0 0
        %288 = vmatpush1.bf16.xpose.msra.mxu0 %v267
        %289 = vmatprep.subr.bf16.mxu0 0
        %290 = vmatpush1.bf16.xpose.msra.mxu0 %v270
        %291 = vmatprep.subr.bf16.mxu0 0
        %292 = vmatpush1.bf16.xpose.msra.mxu0 %v273
        %293 = vmatprep.subr.bf16.mxu0 0
        %294 = vmatpush1.bf16.xpose.msra.mxu0 %v276
        %295 = vmatprep.subr.bf16.mxu0 0
        %296 = vmatpush1.bf16.xpose.msra.mxu0 %v279
        %297 = vmatprep.subr.bf16.mxu0 0
        %298 = vmatpush1.bf16.xpose.msra.mxu0 0
        %299 = vmatprep.subr.bf16.mxu0 0
        %300 = vmatpush1.bf16.xpose.msra.mxu0 0
        %301 = vmatprep.subr.bf16.mxu0 0
        %302 = vmatpush1.bf16.xpose.msra.mxu0 0
        %303 = vmatprep.subr.bf16.mxu0 0
        %304 = vmatpush1.bf16.xpose.msra.mxu0 0
        %305 = vmatprep.subr.bf16.mxu0 0
        %306 = vmatpush1.bf16.xpose.msra.mxu0 0
        %307 = vmatprep.subr.bf16.mxu0 0
        %308 = vmatpush1.bf16.xpose.msra.mxu0 0
        %309 = vmatprep.subr.bf16.mxu0 0
        %310 = vmatpush1.bf16.xpose.msra.mxu0 0
        %311 = vmatprep.subr.bf16.mxu0 0
        %312 = vmatpush1.bf16.xpose.msra.mxu0 0
        %313 = vmatprep.mubr.bf16.mxu0 0
        %314 = vmatmul.mubr.bf16.gmra.mrb[0].mxu0 %v255
        %v315 = vpop.f32.mrb[0].mxu0
        %v316 = vadd.f32 0.0, %v315
        %v317 = vpop.f32.mrb[0].mxu0
        %v318 = vpop.f32.mrb[0].mxu0
        %v319 = vpop.f32.mrb[0].mxu0
        %320 = vdwg.mxu0
        %321 = vst [vmem:[%s181] sm:$0xff] %v316
        %s322 = sand.u32 %s101, 1
        %s323 = scalar_lea.sflag [#allocation3], %s322
        %s324 = sand.u32 %s101, 1
        %s325 = smul.addr %s324, 8
        %s326 = scalar_lea.vmem [#allocation2], %s325
        // Predicated region
        $region29: #{gpt_forward.11} parent=27 // pred_check
          %p327 = pneg %p111
        $region30: #{gpt_forward.11} parent=27 // pred_check_branch
          %329 = sbr.rel (%p327) target = $region32
        $region31: #{gpt_forward.11} parent=27 // pred_region
          %s331 = ssub.s32 128, 128
          %332 = vsyncadd %s323, %s331
          %s333 = sadd.s32 %s21, %s23
          %s334 = sadd.s32 %s333, %s22
          %s335 = smul.addr %s334, 128
          %s336 = scalar_lea.hbm %s2, %s335
          %s338 = sshll.u32 %s326, 4
          %s339 = int_to_ptr.vmem [resolvable:$true] %s338
          %341 = dma.vmem_to_hbm [thread:$0]  %s339, 128, %s336, %s323
        $region32: #{gpt_forward.11} parent=27 // pred_fallthru
          _
      $region28: #{gpt_forward.11} parent=5 // pred_fallthru
        _
      %p342 = scmp.le.s32.totalorder 2, %s11
      // Predicated region
      $region33: #{gpt_forward.11} parent=5 // pred_check
        %p343 = pneg %p342
      $region34: #{gpt_forward.11} parent=5 // pred_check_branch
        %345 = sbr.rel (%p343) target = $region36
      $region35: #{gpt_forward.11} parent=5 // pred_region
        %s346 = ssub.s32 %s11, 2
        // Predicated region
        $region37: #{gpt_forward.11} parent=35 // pred_check
          %p347 = pneg %p117
        $region38: #{gpt_forward.11} parent=35 // pred_check_branch
          %349 = sbr.rel (%p347) target = $region40
        $region39: #{gpt_forward.11} parent=35 // pred_region
          %s350 = sand.u32 %s102, 1
          %s351 = scalar_lea.sflag [#allocation3], %s350
          %s352 = sand.u32 %s102, 1
          %s353 = smul.addr %s352, 8
          %s354 = scalar_lea.vmem [#allocation2], %s353
          %355 = dma.done %s351, 128
        $region40: #{gpt_forward.11} parent=35 // pred_fallthru
          _
      $region36: #{gpt_forward.11} parent=5 // pred_fallthru
        _
    $region6: #{gpt_forward.11} parent=1 // loop_footer
      %s15 = sadd.s32 1, %s11
    $region7: #{gpt_forward.11} parent=1 // loop_footer_branch
      %10 = sbr.rel target = $region3
    $region8: #{gpt_forward.11} parent=1 // loop_exit
      _
    %356 = vsyncpa [#allocation3], 1
    %s357 = scalar_lea.sflag [#allocation3], 1
    %358 = vsyncpa %s357, 1

// kernel: gpt_forward.6
$region0: #{gpt_forward.6}
  #allocation0 [shape = 'u32[]', space=smem, size = 0x4, offset = 0x4, fixed_abs, tag = 'smem constant byte address 0x4 - core index']
  #allocation1 [shape = 'u32[144,128]{1,0:T(1,128)}', space=vmem, size = 0x12000, scoped, tag = 'internal scratch']
  %s0 = inlined_call_operand.vmem [shape: f32[2,8,32], index: 0, kind: input, shape index: {}]
  %s1 = inlined_call_operand.vmem [shape: f32[1,32], index: 1, kind: input, shape index: {}]
  %s2 = inlined_call_operand.vmem [shape: f32[1,32], index: 2, kind: input, shape index: {}]
  %s3 = inlined_call_operand.vmem [shape: bf16[32,96], index: 3, kind: input, shape index: {}]
  %s4 = inlined_call_operand.vmem [shape: f32[1,96], index: 4, kind: input, shape index: {}]
  %s5 = inlined_call_operand.vmem [shape: bf16[2,4,8,8], index: 5, kind: output, shape index: {0}]
  %s6 = inlined_call_operand.vmem [shape: bf16[2,4,8,8], index: 6, kind: output, shape index: {1}]
  %s7 = inlined_call_operand.vmem [shape: bf16[2,4,8,8], index: 7, kind: output, shape index: {2}]
  %8 = xla_tuple %s5, %s6, %s7
  %s9 = sld [smem:[#allocation0]]
  $region69: #{gpt_forward.6} parent=0
    _
  %s11 = ssub.s32 1, %s9
  %s12 = scalar_select 0, %s11, %s9
  loop: start=0, step=1, limit=4
  $region2: #{gpt_forward.6} parent=0 // loop_pre_header
    _
  $region3: #{gpt_forward.6} parent=0 // loop_header
    %s14 = sphi 0, %s18
    %p15 = scmp.ge.s32.totalorder %s14, 4
    %s21 = sphi 0, %s33
    %s22 = sphi 0, %s29
    %s23 = sphi 0, %s21
    %s24 = sphi 0, %s22
    %s25 = sphi 0, %s23
    %s26 = sphi 0, %s24
    %s38 = sphi 0, %s40
    %s41 = sphi 0, %s38
    %s42 = sphi 0, %s41
    %s58 = sphi 0, %s42
    %s62 = sphi 0, %s62
    %s64 = sphi 0, %s62
    %s65 = sphi 0, %s64
    %s79 = sphi 0, %s65
    %s83 = sphi 0, %s83
    %s85 = sphi 0, %s83
    %s86 = sphi 0, %s85
    %s100 = sphi 0, %s86
    %s104 = sphi 0, %s104
    %s106 = sphi 0, %s104
    %s107 = sphi 0, %s106
    %s121 = sphi 0, %s107
    %s125 = sphi 0, %s125
    %s127 = sphi 0, %s125
    %s128 = sphi 0, %s127
    %s142 = sphi 0, %s128
    %s150 = sphi 0, %s152
    %s153 = sphi 0, %s150
    %s154 = sphi 0, %s153
    %s170 = sphi 0, %s154
    %s178 = sphi 0, %s180
    %s181 = sphi 0, %s178
    %s182 = sphi 0, %s181
    %s198 = sphi 0, %s182
    %s206 = sphi 0, %s208
    %s209 = sphi 0, %s206
    %s210 = sphi 0, %s209
    %s226 = sphi 0, %s210
  $region4: #{gpt_forward.6} parent=0 // loop_header_branch
    %17 = sbr.rel (%p15) target = $region8
  $region5: #{gpt_forward.6} parent=0 // loop_body
    %s19 = ssub.s32 %s14, 1
    %s20 = ssub.s32 %s14, 2
    %s27 = sadd.s32 1, %s22
    %p28 = scmp.ge.s32.totalorder %s27, 1
    %s29 = scalar_select %p28, 0, %s27
    %s30 = sadd.s32 1, %s21
    %s31 = scalar_select %p28, %s30, %s21
    %p32 = scmp.ge.s32.totalorder %s31, 2
    %s33 = scalar_select %p32, 0, %s31
    %s34 = ssub.s32 %s21, %s33
    %s35 = ssub.s32 %s22, %s29
    %s36 = sor.u32 %s34, %s35
    %p37 = scmp.eq.s32.totalorder %s36, 0
    %s39 = sadd.s32 %s38, 1
    %s40 = scalar_select %p37, %s38, %s39
    %p43 = pneg %p37
    %p44 = scmp.eq.s32.totalorder %s14, 1
    %p45 = por %p43, %p44
    %p46 = scmp.ne.s32.totalorder %s38, %s41
    %p47 = scmp.eq.s32.totalorder %s14, 0
    %p48 = por %p46, %p47
    %p49 = scmp.ne.s32.totalorder %s38, %s41
    %p50 = scmp.eq.s32.totalorder %s19, 1
    %p51 = por %p49, %p50
    %p52 = scmp.ne.s32.totalorder %s41, %s42
    %p53 = scmp.eq.s32.totalorder %s19, 0
    %p54 = por %p52, %p53
    %p55 = scmp.ne.s32.totalorder %s41, %s42
    %p56 = scmp.eq.s32.totalorder %s20, 1
    %p57 = por %p55, %p56
    %p59 = scmp.ne.s32.totalorder %s42, %s58
    %p60 = scmp.eq.s32.totalorder %s20, 0
    %p61 = por %p59, %p60
    %s63 = sadd.s32 %s62, 1
    %p66 = scmp.eq.s32.totalorder %s14, 1
    %p67 = scmp.ne.s32.totalorder %s62, %s64
    %p68 = scmp.eq.s32.totalorder %s14, 0
    %p69 = por %p67, %p68
    %p70 = scmp.ne.s32.totalorder %s62, %s64
    %p71 = scmp.eq.s32.totalorder %s19, 1
    %p72 = por %p70, %p71
    %p73 = scmp.ne.s32.totalorder %s64, %s65
    %p74 = scmp.eq.s32.totalorder %s19, 0
    %p75 = por %p73, %p74
    %p76 = scmp.ne.s32.totalorder %s64, %s65
    %p77 = scmp.eq.s32.totalorder %s20, 1
    %p78 = por %p76, %p77
    %p80 = scmp.ne.s32.totalorder %s65, %s79
    %p81 = scmp.eq.s32.totalorder %s20, 0
    %p82 = por %p80, %p81
    %s84 = sadd.s32 %s83, 1
    %p87 = scmp.eq.s32.totalorder %s14, 1
    %p88 = scmp.ne.s32.totalorder %s83, %s85
    %p89 = scmp.eq.s32.totalorder %s14, 0
    %p90 = por %p88, %p89
    %p91 = scmp.ne.s32.totalorder %s83, %s85
    %p92 = scmp.eq.s32.totalorder %s19, 1
    %p93 = por %p91, %p92
    %p94 = scmp.ne.s32.totalorder %s85, %s86
    %p95 = scmp.eq.s32.totalorder %s19, 0
    %p96 = por %p94, %p95
    %p97 = scmp.ne.s32.totalorder %s85, %s86
    %p98 = scmp.eq.s32.totalorder %s20, 1
    %p99 = por %p97, %p98
    %p101 = scmp.ne.s32.totalorder %s86, %s100
    %p102 = scmp.eq.s32.totalorder %s20, 0
    %p103 = por %p101, %p102
    %s105 = sadd.s32 %s104, 1
    %p108 = scmp.eq.s32.totalorder %s14, 1
    %p109 = scmp.ne.s32.totalorder %s104, %s106
    %p110 = scmp.eq.s32.totalorder %s14, 0
    %p111 = por %p109, %p110
    %p112 = scmp.ne.s32.totalorder %s104, %s106
    %p113 = scmp.eq.s32.totalorder %s19, 1
    %p114 = por %p112, %p113
    %p115 = scmp.ne.s32.totalorder %s106, %s107
    %p116 = scmp.eq.s32.totalorder %s19, 0
    %p117 = por %p115, %p116
    %p118 = scmp.ne.s32.totalorder %s106, %s107
    %p119 = scmp.eq.s32.totalorder %s20, 1
    %p120 = por %p118, %p119
    %p122 = scmp.ne.s32.totalorder %s107, %s121
    %p123 = scmp.eq.s32.totalorder %s20, 0
    %p124 = por %p122, %p123
    %s126 = sadd.s32 %s125, 1
    %p129 = scmp.eq.s32.totalorder %s14, 1
    %p130 = scmp.ne.s32.totalorder %s125, %s127
    %p131 = scmp.eq.s32.totalorder %s14, 0
    %p132 = por %p130, %p131
    %p133 = scmp.ne.s32.totalorder %s125, %s127
    %p134 = scmp.eq.s32.totalorder %s19, 1
    %p135 = por %p133, %p134
    %p136 = scmp.ne.s32.totalorder %s127, %s128
    %p137 = scmp.eq.s32.totalorder %s19, 0
    %p138 = por %p136, %p137
    %p139 = scmp.ne.s32.totalorder %s127, %s128
    %p140 = scmp.eq.s32.totalorder %s20, 1
    %p141 = por %p139, %p140
    %p143 = scmp.ne.s32.totalorder %s128, %s142
    %p144 = scmp.eq.s32.totalorder %s20, 0
    %p145 = por %p143, %p144
    %s146 = ssub.s32 %s21, %s33
    %s147 = ssub.s32 %s22, %s29
    %s148 = sor.u32 %s146, %s147
    %p149 = scmp.eq.s32.totalorder %s148, 0
    %s151 = sadd.s32 %s150, 1
    %s152 = scalar_select %p149, %s150, %s151
    %p155 = pneg %p149
    %p156 = scmp.eq.s32.totalorder %s14, 1
    %p157 = por %p155, %p156
    %p158 = scmp.ne.s32.totalorder %s150, %s153
    %p159 = scmp.eq.s32.totalorder %s14, 0
    %p160 = por %p158, %p159
    %p161 = scmp.ne.s32.totalorder %s150, %s153
    %p162 = scmp.eq.s32.totalorder %s19, 1
    %p163 = por %p161, %p162
    %p164 = scmp.ne.s32.totalorder %s153, %s154
    %p165 = scmp.eq.s32.totalorder %s19, 0
    %p166 = por %p164, %p165
    %p167 = scmp.ne.s32.totalorder %s153, %s154
    %p168 = scmp.eq.s32.totalorder %s20, 1
    %p169 = por %p167, %p168
    %p171 = scmp.ne.s32.totalorder %s154, %s170
    %p172 = scmp.eq.s32.totalorder %s20, 0
    %p173 = por %p171, %p172
    %s174 = ssub.s32 %s21, %s33
    %s175 = ssub.s32 %s22, %s29
    %s176 = sor.u32 %s174, %s175
    %p177 = scmp.eq.s32.totalorder %s176, 0
    %s179 = sadd.s32 %s178, 1
    %s180 = scalar_select %p177, %s178, %s179
    %p183 = pneg %p177
    %p184 = scmp.eq.s32.totalorder %s14, 1
    %p185 = por %p183, %p184
    %p186 = scmp.ne.s32.totalorder %s178, %s181
    %p187 = scmp.eq.s32.totalorder %s14, 0
    %p188 = por %p186, %p187
    %p189 = scmp.ne.s32.totalorder %s178, %s181
    %p190 = scmp.eq.s32.totalorder %s19, 1
    %p191 = por %p189, %p190
    %p192 = scmp.ne.s32.totalorder %s181, %s182
    %p193 = scmp.eq.s32.totalorder %s19, 0
    %p194 = por %p192, %p193
    %p195 = scmp.ne.s32.totalorder %s181, %s182
    %p196 = scmp.eq.s32.totalorder %s20, 1
    %p197 = por %p195, %p196
    %p199 = scmp.ne.s32.totalorder %s182, %s198
    %p200 = scmp.eq.s32.totalorder %s20, 0
    %p201 = por %p199, %p200
    %s202 = ssub.s32 %s21, %s33
    %s203 = ssub.s32 %s22, %s29
    %s204 = sor.u32 %s202, %s203
    %p205 = scmp.eq.s32.totalorder %s204, 0
    %s207 = sadd.s32 %s206, 1
    %s208 = scalar_select %p205, %s206, %s207
    %p211 = pneg %p205
    %p212 = scmp.eq.s32.totalorder %s14, 1
    %p213 = por %p211, %p212
    %p214 = scmp.ne.s32.totalorder %s206, %s209
    %p215 = scmp.eq.s32.totalorder %s14, 0
    %p216 = por %p214, %p215
    %p217 = scmp.ne.s32.totalorder %s206, %s209
    %p218 = scmp.eq.s32.totalorder %s19, 1
    %p219 = por %p217, %p218
    %p220 = scmp.ne.s32.totalorder %s209, %s210
    %p221 = scmp.eq.s32.totalorder %s19, 0
    %p222 = por %p220, %p221
    %p223 = scmp.ne.s32.totalorder %s209, %s210
    %p224 = scmp.eq.s32.totalorder %s20, 1
    %p225 = por %p223, %p224
    %p227 = scmp.ne.s32.totalorder %s210, %s226
    %p228 = scmp.eq.s32.totalorder %s20, 0
    %p229 = por %p227, %p228
    %p230 = scmp.le.s32.totalorder 1, %s14
    %p231 = scmp.lt.s32.totalorder %s14, 3
    %p232 = pnand %p230, %p231
    %p233 = pneg %p232
    // Predicated region
    $region9: #{gpt_forward.6} parent=5 // pred_check
      _
    $region10: #{gpt_forward.6} parent=5 // pred_check_branch
      %235 = sbr.rel (%p232) target = $region12
    $region11: #{gpt_forward.6} parent=5 // pred_region
      %s236 = ssub.s32 %s14, 1
      // Predicated region
      $region13: #{gpt_forward.6} parent=11 // pred_check
        %p237 = pneg %p75
      $region14: #{gpt_forward.6} parent=11 // pred_check_branch
        %239 = sbr.rel (%p237) target = $region16
      $region15: #{gpt_forward.6} parent=11 // pred_region
        _
      $region16: #{gpt_forward.6} parent=11 // pred_fallthru
        _
      // Predicated region
      $region17: #{gpt_forward.6} parent=11 // pred_check
        %p240 = pneg %p96
      $region18: #{gpt_forward.6} parent=11 // pred_check_branch
        %242 = sbr.rel (%p240) target = $region20
      $region19: #{gpt_forward.6} parent=11 // pred_region
        _
      $region20: #{gpt_forward.6} parent=11 // pred_fallthru
        _
      // Predicated region
      $region21: #{gpt_forward.6} parent=11 // pred_check
        %p243 = pneg %p117
      $region22: #{gpt_forward.6} parent=11 // pred_check_branch
        %245 = sbr.rel (%p243) target = $region24
      $region23: #{gpt_forward.6} parent=11 // pred_region
        _
      $region24: #{gpt_forward.6} parent=11 // pred_fallthru
        _
      // Predicated region
      $region25: #{gpt_forward.6} parent=11 // pred_check
        %p246 = pneg %p138
      $region26: #{gpt_forward.6} parent=11 // pred_check_branch
        %248 = sbr.rel (%p246) target = $region28
      $region27: #{gpt_forward.6} parent=11 // pred_region
        _
      $region28: #{gpt_forward.6} parent=11 // pred_fallthru
        _
    $region12: #{gpt_forward.6} parent=5 // pred_fallthru
      _
    %p249 = scmp.lt.s32.totalorder %s14, 2
    // Predicated region
    $region29: #{gpt_forward.6} parent=5 // pred_check
      %p250 = pneg %p249
    $region30: #{gpt_forward.6} parent=5 // pred_check_branch
      %252 = sbr.rel (%p250) target = $region32
    $region31: #{gpt_forward.6} parent=5 // pred_region
      // Predicated region
      $region33: #{gpt_forward.6} parent=31 // pred_check
        %p253 = pneg %p48
      $region34: #{gpt_forward.6} parent=31 // pred_check_branch
        %255 = sbr.rel (%p253) target = $region36
      $region35: #{gpt_forward.6} parent=31 // pred_region
        %p256 = scmp.lt.s32.totalorder %s21, 1
        %s257 = scalar_select %p256, %s21, 1
        %p258 = scmp.lt.s32.totalorder %s22, 0
        %s259 = scalar_select %p258, %s22, 0
        %s260 = sadd.s32 %s259, %s257
        %s261 = smul.addr %s260, 8
        %s262 = scalar_lea.vmem %s0, %s261
      $region36: #{gpt_forward.6} parent=31 // pred_fallthru
        _
    $region32: #{gpt_forward.6} parent=5 // pred_fallthru
      _
    %p263 = scmp.le.s32.totalorder 1, %s14
    %p264 = scmp.lt.s32.totalorder %s14, 3
    %p265 = pnand %p263, %p264
    %p266 = pneg %p265
    // Predicated region
    $region37: #{gpt_forward.6} parent=5 // pred_check
      _
    $region38: #{gpt_forward.6} parent=5 // pred_check_branch
      %268 = sbr.rel (%p265) target = $region40
    $region39: #{gpt_forward.6} parent=5 // pred_region
      %s269 = ssub.s32 %s14, 1
      %p270 = scmp.lt.s32.totalorder %s23, 1
      %s271 = scalar_select %p270, %s23, 1
      %p272 = scmp.lt.s32.totalorder %s24, 0
      %s273 = scalar_select %p272, %s24, 0
      %s274 = sadd.s32 %s273, %s271
      %s275 = smul.addr %s274, 8
      %s276 = scalar_lea.vmem %s0, %s275
      %p277 = pneg %p54
      %p278 = pneg %p51
      %p279 = pneg %p75
      %p280 = pneg %p72
      %p281 = pneg %p96
      %p282 = pneg %p93
      %p283 = pneg %p117
      %p284 = pneg %p114
      %p285 = pneg %p138
      %p286 = pneg %p135
      %p287 = pneg %p166
      %p288 = pneg %p163
      %p289 = scmp.lt.s32.totalorder %s23, 1
      %s290 = scalar_select %p289, %s23, 1
      %p291 = scmp.lt.s32.totalorder %s24, 0
      %s292 = scalar_select %p291, %s24, 0
      %s293 = smul.addr %s290, 4
      %s294 = sadd.s32 %s292, %s293
      %s295 = smul.addr %s294, 4
      %s296 = scalar_lea.vmem %s5, %s295
      %p297 = pneg %p194
      %p298 = pneg %p191
      %p299 = scmp.lt.s32.totalorder %s23, 1
      %s300 = scalar_select %p299, %s23, 1
      %p301 = scmp.lt.s32.totalorder %s24, 0
      %s302 = scalar_select %p301, %s24, 0
      %s303 = smul.addr %s300, 4
      %s304 = sadd.s32 %s302, %s303
      %s305 = smul.addr %s304, 4
      %s306 = scalar_lea.vmem %s6, %s305
      %p307 = pneg %p222
      %p308 = pneg %p219
      %p309 = scmp.lt.s32.totalorder %s23, 1
      %s310 = scalar_select %p309, %s23, 1
      %p311 = scmp.lt.s32.totalorder %s24, 0
      %s312 = scalar_select %p311, %s24, 0
      %s313 = smul.addr %s310, 4
      %s314 = sadd.s32 %s312, %s313
      %s315 = smul.addr %s314, 4
      %s316 = scalar_lea.vmem %s7, %s315
      %p317 = scmp.lt.s32.totalorder %s23, 1
      %s318 = scalar_select %p317, %s23, 1
      %p319 = scmp.lt.s32.totalorder %s24, 0
      %s320 = scalar_select %p319, %s24, 0
      %s321 = sadd.s32 %s320, %s318
      %s322 = smul.addr %s321, 8
      %s323 = scalar_lea.vmem %s0, %s322
      %p324 = scmp.lt.s32.totalorder %s23, 1
      %s325 = scalar_select %p324, %s23, 1
      %p326 = scmp.lt.s32.totalorder %s24, 0
      %s327 = scalar_select %p326, %s24, 0
      %s328 = smul.addr %s325, 4
      %s329 = sadd.s32 %s327, %s328
      %s330 = smul.addr %s329, 4
      %s331 = scalar_lea.vmem %s5, %s330
      %p332 = scmp.lt.s32.totalorder %s23, 1
      %s333 = scalar_select %p332, %s23, 1
      %p334 = scmp.lt.s32.totalorder %s24, 0
      %s335 = scalar_select %p334, %s24, 0
      %s336 = smul.addr %s333, 4
      %s337 = sadd.s32 %s335, %s336
      %s338 = smul.addr %s337, 4
      %s339 = scalar_lea.vmem %s6, %s338
      %p340 = scmp.lt.s32.totalorder %s23, 1
      %s341 = scalar_select %p340, %s23, 1
      %p342 = scmp.lt.s32.totalorder %s24, 0
      %s343 = scalar_select %p342, %s24, 0
      %s344 = smul.addr %s341, 4
      %s345 = sadd.s32 %s343, %s344
      %s346 = smul.addr %s345, 4
      %s347 = scalar_lea.vmem %s7, %s346
      %v349 = vld [vmem:[%s323] sm:$0xff]
      %v350 = vld [vmem:[%s1] sm:$0x1]
      %v351 = vld [vmem:[%s2] sm:$0x1]
      %vm352 = vcmask 261120
      %v353 = vsel %vm352, %v349, 0.0
      %354 = vadd.xlane.f32.xlu0 %v353
      %v355 = vpop.xlane.xlu0 %354
      %v356 = vrcp.pop 32.0
      %v357 = vmul.f32 %v355, %v356
      %v358 = vsub.f32 %v349, %v357
      %v359 = vmul.f32 %v358, %v358
      %v360 = vsel %vm352, %v359, 0.0
      %361 = vadd.xlane.f32.xlu0 %v360
      %v362 = vpop.xlane.xlu0 %361
      %v363 = vmul.f32 %v362, %v356
      %v364 = vadd.f32 %v363, 1e-05
      %v365 = vrsqrt.pop %v364
      %v366 = vmul.f32 %v358, %v365
      %v368 = vlaneseq
      %v369 = vshrl.u32 %v368, 7
      %v370 = vsub.s32 0, %v369
      %v371 = vrot.slane %v350, %v370
      %v373 = vmul.f32 %v366, %v371
      %v375 = vlaneseq
      %v376 = vshrl.u32 %v375, 7
      %v377 = vsub.s32 0, %v376
      %v378 = vrot.slane %v351, %v377
      %v380 = vadd.f32 %v373, %v378
      %v381 = vpack.c.bf16 %v380, %v380
      %v382 = vld [vmem:[%s3] sm:$0xf]
      %v383 = vld [vmem:[%s3 + $0x4] sm:$0xf]
      %v384 = vld [vmem:[%s3 + $0x8] sm:$0xf]
      %v385 = vld [vmem:[%s3 + $0xc] sm:$0xf]
      %v386 = vld [vmem:[%s4] sm:$0x1]
      %v388 = vlaneseq
      %v389 = vshrl.u32 %v388, 7
      %v390 = vsub.s32 0, %v389
      %v391 = vrot.slane %v386, %v390
      %v397 = vunpack.c.l.b16 %v382
      %v398 = vunpack.c.l.b16 %v383
      %v399 = vunpack.c.l.b16 %v384
      %v400 = vunpack.c.l.b16 %v385
      %v401 = vpack.c.b16 %v398, %v397
      %v402 = vpack.c.b16 %v400, %v399
      %v406 = vsel %vm352, %v381, 0
      %408 = vmatprep.subr.bf16.mxu0 0
      %409 = vmatpush1.bf16.msra.mxu0 %v401
      %410 = vmatprep.subr.bf16.mxu0 0
      %411 = vmatpush1.bf16.msra.mxu0 %v402
      %412 = vmatprep.subr.bf16.mxu0 0
      %413 = vmatpush1.bf16.msra.mxu0 0
      %414 = vmatprep.subr.bf16.mxu0 0
      %415 = vmatpush1.bf16.msra.mxu0 0
      %416 = vmatprep.subr.bf16.mxu0 0
      %417 = vmatpush1.bf16.msra.mxu0 0
      %418 = vmatprep.subr.bf16.mxu0 0
      %419 = vmatpush1.bf16.msra.mxu0 0
      %420 = vmatprep.subr.bf16.mxu0 0
      %421 = vmatpush1.bf16.msra.mxu0 0
      %422 = vmatprep.subr.bf16.mxu0 0
      %423 = vmatpush1.bf16.msra.mxu0 0
      %424 = vmatprep.subr.bf16.mxu0 0
      %425 = vmatpush1.bf16.msra.mxu0 0
      %426 = vmatprep.subr.bf16.mxu0 0
      %427 = vmatpush1.bf16.msra.mxu0 0
      %428 = vmatprep.subr.bf16.mxu0 0
      %429 = vmatpush1.bf16.msra.mxu0 0
      %430 = vmatprep.subr.bf16.mxu0 0
      %431 = vmatpush1.bf16.msra.mxu0 0
      %432 = vmatprep.subr.bf16.mxu0 0
      %433 = vmatpush1.bf16.msra.mxu0 0
      %434 = vmatprep.subr.bf16.mxu0 0
      %435 = vmatpush1.bf16.msra.mxu0 0
      %436 = vmatprep.subr.bf16.mxu0 0
      %437 = vmatpush1.bf16.msra.mxu0 0
      %438 = vmatprep.subr.bf16.mxu0 0
      %439 = vmatpush1.bf16.msra.mxu0 0
      %440 = vmatprep.mubr.bf16.mxu0 0
      %441 = vmatmul.mubr.bf16.gmra.mrb[0].mxu0 %v406
      %v442 = vpop.f32.mrb[0].mxu0
      %v443 = vadd.f32 %v391, %v442
      %v444 = vpop.f32.mrb[0].mxu0
      %v445 = vpop.f32.mrb[0].mxu0
      %v446 = vpop.f32.mrb[0].mxu0
      %447 = vdwg.mxu0
      %v448 = vpack.c.bf16 %v443, %v443
      %vm449 = vcmask 60416
      %450 = vst.msk [vmem:[%s331] sm:$0xf] %vm449, %v448
      %452 = vrot.lane.b32.xlu0 %v443, 96
      %v453 = vpop.permute.xlu0 %452
      %455 = vxpose.xlu0.b32.start [1/16] %v453, 128
      %456 = vxpose.xlu0.b32.cont [2/16] 0.0, 128
      %457 = vxpose.xlu0.b32.cont [3/16] 0.0, 128
      %458 = vxpose.xlu0.b32.cont [4/16] 0.0, 128
      %459 = vxpose.xlu0.b32.cont [5/16] 0.0, 128
      %460 = vxpose.xlu0.b32.cont [6/16] 0.0, 128
      %461 = vxpose.xlu0.b32.cont [7/16] 0.0, 128
      %462 = vxpose.xlu0.b32.cont [8/16] 0.0, 128
      %463 = vxpose.xlu0.b32.cont [9/16] 0.0, 128
      %464 = vxpose.xlu0.b32.cont [10/16] 0.0, 128
      %465 = vxpose.xlu0.b32.cont [11/16] 0.0, 128
      %466 = vxpose.xlu0.b32.cont [12/16] 0.0, 128
      %467 = vxpose.xlu0.b32.cont [13/16] 0.0, 128
      %468 = vxpose.xlu0.b32.cont [14/16] 0.0, 128
      %469 = vxpose.xlu0.b32.cont [15/16] 0.0, 128
      %470 = vxpose.xlu0.b32.end [16/16] 0.0, 128
      %v471 = vpop.trf.xlu0
      %v472 = vpop.trf.xlu0
      %v473 = vpop.trf.xlu0
      %v474 = vpop.trf.xlu0
      %v475 = vpop.trf.xlu0
      %v476 = vpop.trf.xlu0
      %v477 = vpop.trf.xlu0
      %v478 = vpop.trf.xlu0
      %v479 = vpop.trf.xlu0
      %v480 = vpop.trf.xlu0
      %v481 = vpop.trf.xlu0
      %v482 = vpop.trf.xlu0
      %v483 = vpop.trf.xlu0
      %v484 = vpop.trf.xlu0
      %v485 = vpop.trf.xlu0
      %v486 = vpop.trf.xlu0
      %v487 = vpack.c.bf16 %v471, %v471
      %488 = vst.msk [vmem:[%s339] sm:$0xf] %vm449, %v487
      %489 = vrot.lane.b32.xlu0 %v443, 64
      %v490 = vpop.permute.xlu0 %489
      %492 = vxpose.xlu0.b32.start [1/16] %v490, 128
      %493 = vxpose.xlu0.b32.cont [2/16] 0.0, 128
      %494 = vxpose.xlu0.b32.cont [3/16] 0.0, 128
      %495 = vxpose.xlu0.b32.cont [4/16] 0.0, 128
      %496 = vxpose.xlu0.b32.cont [5/16] 0.0, 128
      %497 = vxpose.xlu0.b32.cont [6/16] 0.0, 128
      %498 = vxpose.xlu0.b32.cont [7/16] 0.0, 128
      %499 = vxpose.xlu0.b32.cont [8/16] 0.0, 128
      %500 = vxpose.xlu0.b32.cont [9/16] 0.0, 128
      %501 = vxpose.xlu0.b32.cont [10/16] 0.0, 128
      %502 = vxpose.xlu0.b32.cont [11/16] 0.0, 128
      %503 = vxpose.xlu0.b32.cont [12/16] 0.0, 128
      %504 = vxpose.xlu0.b32.cont [13/16] 0.0, 128
      %505 = vxpose.xlu0.b32.cont [14/16] 0.0, 128
      %506 = vxpose.xlu0.b32.cont [15/16] 0.0, 128
      %507 = vxpose.xlu0.b32.end [16/16] 0.0, 128
      %v508 = vpop.trf.xlu0
      %v509 = vpop.trf.xlu0
      %v510 = vpop.trf.xlu0
      %v511 = vpop.trf.xlu0
      %v512 = vpop.trf.xlu0
      %v513 = vpop.trf.xlu0
      %v514 = vpop.trf.xlu0
      %v515 = vpop.trf.xlu0
      %v516 = vpop.trf.xlu0
      %v517 = vpop.trf.xlu0
      %v518 = vpop.trf.xlu0
      %v519 = vpop.trf.xlu0
      %v520 = vpop.trf.xlu0
      %v521 = vpop.trf.xlu0
      %v522 = vpop.trf.xlu0
      %v523 = vpop.trf.xlu0
      %v524 = vpack.c.bf16 %v508, %v508
      %525 = vst.msk [vmem:[%s347] sm:$0xf] %vm449, %v524
      %v527 = vunpack.c.l.b16 %v448
      %v528 = vpack.c.b16 %v527, %v527
      %529 = vrot.lane.b32.xlu0 %v528, 120
      %v530 = vpop.permute.xlu0 %529
      %s532 = scalar_lea.vmem %s331, 4
      %533 = vst.msk [vmem:[%s532] sm:$0xf] %vm449, %v530
      %534 = vrot.lane.b32.xlu0 %v443, 88
      %v535 = vpop.permute.xlu0 %534
      %537 = vxpose.xlu0.b32.start [1/16] %v535, 128
      %538 = vxpose.xlu0.b32.cont [2/16] 0.0, 128
      %539 = vxpose.xlu0.b32.cont [3/16] 0.0, 128
      %540 = vxpose.xlu0.b32.cont [4/16] 0.0, 128
      %541 = vxpose.xlu0.b32.cont [5/16] 0.0, 128
      %542 = vxpose.xlu0.b32.cont [6/16] 0.0, 128
      %543 = vxpose.xlu0.b32.cont [7/16] 0.0, 128
      %544 = vxpose.xlu0.b32.cont [8/16] 0.0, 128
      %545 = vxpose.xlu0.b32.cont [9/16] 0.0, 128
      %546 = vxpose.xlu0.b32.cont [10/16] 0.0, 128
      %547 = vxpose.xlu0.b32.cont [11/16] 0.0, 128
      %548 = vxpose.xlu0.b32.cont [12/16] 0.0, 128
      %549 = vxpose.xlu0.b32.cont [13/16] 0.0, 128
      %550 = vxpose.xlu0.b32.cont [14/16] 0.0, 128
      %551 = vxpose.xlu0.b32.cont [15/16] 0.0, 128
      %552 = vxpose.xlu0.b32.end [16/16] 0.0, 128
      %v553 = vpop.trf.xlu0
      %v554 = vpop.trf.xlu0
      %v555 = vpop.trf.xlu0
      %v556 = vpop.trf.xlu0
      %v557 = vpop.trf.xlu0
      %v558 = vpop.trf.xlu0
      %v559 = vpop.trf.xlu0
      %v560 = vpop.trf.xlu0
      %v561 = vpop.trf.xlu0
      %v562 = vpop.trf.xlu0
      %v563 = vpop.trf.xlu0
      %v564 = vpop.trf.xlu0
      %v565 = vpop.trf.xlu0
      %v566 = vpop.trf.xlu0
      %v567 = vpop.trf.xlu0
      %v568 = vpop.trf.xlu0
      %v569 = vpack.c.bf16 %v553, %v553
      %s570 = scalar_lea.vmem %s339, 4
      %571 = vst.msk [vmem:[%s570] sm:$0xf] %vm449, %v569
      %572 = vrot.lane.b32.xlu0 %v443, 56
      %v573 = vpop.permute.xlu0 %572
      %575 = vxpose.xlu0.b32.start [1/16] %v573, 128
      %576 = vxpose.xlu0.b32.cont [2/16] 0.0, 128
      %577 = vxpose.xlu0.b32.cont [3/16] 0.0, 128
      %578 = vxpose.xlu0.b32.cont [4/16] 0.0, 128
      %579 = vxpose.xlu0.b32.cont [5/16] 0.0, 128
      %580 = vxpose.xlu0.b32.cont [6/16] 0.0, 128
      %581 = vxpose.xlu0.b32.cont [7/16] 0.0, 128
      %582 = vxpose.xlu0.b32.cont [8/16] 0.0, 128
      %583 = vxpose.xlu0.b32.cont [9/16] 0.0, 128
      %584 = vxpose.xlu0.b32.cont [10/16] 0.0, 128
      %585 = vxpose.xlu0.b32.cont [11/16] 0.0, 128
      %586 = vxpose.xlu0.b32.cont [12/16] 0.0, 128
      %587 = vxpose.xlu0.b32.cont [13/16] 0.0, 128
      %588 = vxpose.xlu0.b32.cont [14/16] 0.0, 128
      %589 = vxpose.xlu0.b32.cont [15/16] 0.0, 128
      %590 = vxpose.xlu0.b32.end [16/16] 0.0, 128
      %v591 = vpop.trf.xlu0
      %v592 = vpop.trf.xlu0
      %v593 = vpop.trf.xlu0
      %v594 = vpop.trf.xlu0
      %v595 = vpop.trf.xlu0
      %v596 = vpop.trf.xlu0
      %v597 = vpop.trf.xlu0
      %v598 = vpop.trf.xlu0
      %v599 = vpop.trf.xlu0
      %v600 = vpop.trf.xlu0
      %v601 = vpop.trf.xlu0
      %v602 = vpop.trf.xlu0
      %v603 = vpop.trf.xlu0
      %v604 = vpop.trf.xlu0
      %v605 = vpop.trf.xlu0
      %v606 = vpop.trf.xlu0
      %v607 = vpack.c.bf16 %v591, %v591
      %s608 = scalar_lea.vmem %s347, 4
      %609 = vst.msk [vmem:[%s608] sm:$0xf] %vm449, %v607
      %610 = vrot.lane.b32.xlu0 %v528, 112
      %v611 = vpop.permute.xlu0 %610
      %s613 = scalar_lea.vmem %s331, 8
      %614 = vst.msk [vmem:[%s613] sm:$0xf] %vm449, %v611
      %615 = vrot.lane.b32.xlu0 %v443, 80
      %v616 = vpop.permute.xlu0 %615
      %618 = vxpose.xlu0.b32.start [1/16] %v616, 128
      %619 = vxpose.xlu0.b32.cont [2/16] 0.0, 128
      %620 = vxpose.xlu0.b32.cont [3/16] 0.0, 128
      %621 = vxpose.xlu0.b32.cont [4/16] 0.0, 128
      %622 = vxpose.xlu0.b32.cont [5/16] 0.0, 128
      %623 = vxpose.xlu0.b32.cont [6/16] 0.0, 128
      %624 = vxpose.xlu0.b32.cont [7/16] 0.0, 128
      %625 = vxpose.xlu0.b32.cont [8/16] 0.0, 128
      %626 = vxpose.xlu0.b32.cont [9/16] 0.0, 128
      %627 = vxpose.xlu0.b32.cont [10/16] 0.0, 128
      %628 = vxpose.xlu0.b32.cont [11/16] 0.0, 128
      %629 = vxpose.xlu0.b32.cont [12/16] 0.0, 128
      %630 = vxpose.xlu0.b32.cont [13/16] 0.0, 128
      %631 = vxpose.xlu0.b32.cont [14/16] 0.0, 128
      %632 = vxpose.xlu0.b32.cont [15/16] 0.0, 128
      %633 = vxpose.xlu0.b32.end [16/16] 0.0, 128
      %v634 = vpop.trf.xlu0
      %v635 = vpop.trf.xlu0
      %v636 = vpop.trf.xlu0
      %v637 = vpop.trf.xlu0
      %v638 = vpop.trf.xlu0
      %v639 = vpop.trf.xlu0
      %v640 = vpop.trf.xlu0
      %v641 = vpop.trf.xlu0
      %v642 = vpop.trf.xlu0
      %v643 = vpop.trf.xlu0
      %v644 = vpop.trf.xlu0
      %v645 = vpop.trf.xlu0
      %v646 = vpop.trf.xlu0
      %v647 = vpop.trf.xlu0
      %v648 = vpop.trf.xlu0
      %v649 = vpop.trf.xlu0
      %v650 = vpack.c.bf16 %v634, %v634
      %s651 = scalar_lea.vmem %s339, 8
      %652 = vst.msk [vmem:[%s651] sm:$0xf] %vm449, %v650
      %653 = vrot.lane.b32.xlu0 %v443, 48
      %v654 = vpop.permute.xlu0 %653
      %656 = vxpose.xlu0.b32.start [1/16] %v654, 128
      %657 = vxpose.xlu0.b32.cont [2/16] 0.0, 128
      %658 = vxpose.xlu0.b32.cont [3/16] 0.0, 128
      %659 = vxpose.xlu0.b32.cont [4/16] 0.0, 128
      %660 = vxpose.xlu0.b32.cont [5/16] 0.0, 128
      %661 = vxpose.xlu0.b32.cont [6/16] 0.0, 128
      %662 = vxpose.xlu0.b32.cont [7/16] 0.0, 128
      %663 = vxpose.xlu0.b32.cont [8/16] 0.0, 128
      %664 = vxpose.xlu0.b32.cont [9/16] 0.0, 128
      %665 = vxpose.xlu0.b32.cont [10/16] 0.0, 128
      %666 = vxpose.xlu0.b32.cont [11/16] 0.0, 128
      %667 = vxpose.xlu0.b32.cont [12/16] 0.0, 128
      %668 = vxpose.xlu0.b32.cont [13/16] 0.0, 128
      %669 = vxpose.xlu0.b32.cont [14/16] 0.0, 128
      %670 = vxpose.xlu0.b32.cont [15/16] 0.0, 128
      %671 = vxpose.xlu0.b32.end [16/16] 0.0, 128
      %v672 = vpop.trf.xlu0
      %v673 = vpop.trf.xlu0
      %v674 = vpop.trf.xlu0
      %v675 = vpop.trf.xlu0
      %v676 = vpop.trf.xlu0
      %v677 = vpop.trf.xlu0
      %v678 = vpop.trf.xlu0
      %v679 = vpop.trf.xlu0
      %v680 = vpop.trf.xlu0
      %v681 = vpop.trf.xlu0
      %v682 = vpop.trf.xlu0
      %v683 = vpop.trf.xlu0
      %v684 = vpop.trf.xlu0
      %v685 = vpop.trf.xlu0
      %v686 = vpop.trf.xlu0
      %v687 = vpop.trf.xlu0
      %v688 = vpack.c.bf16 %v672, %v672
      %s689 = scalar_lea.vmem %s347, 8
      %690 = vst.msk [vmem:[%s689] sm:$0xf] %vm449, %v688
      %691 = vrot.lane.b32.xlu0 %v528, 104
      %v692 = vpop.permute.xlu0 %691
      %s694 = scalar_lea.vmem %s331, 12
      %695 = vst.msk [vmem:[%s694] sm:$0xf] %vm449, %v692
      %696 = vrot.lane.b32.xlu0 %v443, 72
      %v697 = vpop.permute.xlu0 %696
      %699 = vxpose.xlu0.b32.start [1/16] %v697, 128
      %700 = vxpose.xlu0.b32.cont [2/16] 0.0, 128
      %701 = vxpose.xlu0.b32.cont [3/16] 0.0, 128
      %702 = vxpose.xlu0.b32.cont [4/16] 0.0, 128
      %703 = vxpose.xlu0.b32.cont [5/16] 0.0, 128
      %704 = vxpose.xlu0.b32.cont [6/16] 0.0, 128
      %705 = vxpose.xlu0.b32.cont [7/16] 0.0, 128
      %706 = vxpose.xlu0.b32.cont [8/16] 0.0, 128
      %707 = vxpose.xlu0.b32.cont [9/16] 0.0, 128
      %708 = vxpose.xlu0.b32.cont [10/16] 0.0, 128
      %709 = vxpose.xlu0.b32.cont [11/16] 0.0, 128
      %710 = vxpose.xlu0.b32.cont [12/16] 0.0, 128
      %711 = vxpose.xlu0.b32.cont [13/16] 0.0, 128
      %712 = vxpose.xlu0.b32.cont [14/16] 0.0, 128
      %713 = vxpose.xlu0.b32.cont [15/16] 0.0, 128
      %714 = vxpose.xlu0.b32.end [16/16] 0.0, 128
      %v715 = vpop.trf.xlu0
      %v716 = vpop.trf.xlu0
      %v717 = vpop.trf.xlu0
      %v718 = vpop.trf.xlu0
      %v719 = vpop.trf.xlu0
      %v720 = vpop.trf.xlu0
      %v721 = vpop.trf.xlu0
      %v722 = vpop.trf.xlu0
      %v723 = vpop.trf.xlu0
      %v724 = vpop.trf.xlu0
      %v725 = vpop.trf.xlu0
      %v726 = vpop.trf.xlu0
      %v727 = vpop.trf.xlu0
      %v728 = vpop.trf.xlu0
      %v729 = vpop.trf.xlu0
      %v730 = vpop.trf.xlu0
      %v731 = vpack.c.bf16 %v715, %v715
      %s732 = scalar_lea.vmem %s339, 12
      %733 = vst.msk [vmem:[%s732] sm:$0xf] %vm449, %v731
      %734 = vrot.lane.b32.xlu0 %v443, 40
      %v735 = vpop.permute.xlu0 %734
      %737 = vxpose.xlu0.b32.start [1/16] %v735, 128
      %738 = vxpose.xlu0.b32.cont [2/16] 0.0, 128
      %739 = vxpose.xlu0.b32.cont [3/16] 0.0, 128
      %740 = vxpose.xlu0.b32.cont [4/16] 0.0, 128
      %741 = vxpose.xlu0.b32.cont [5/16] 0.0, 128
      %742 = vxpose.xlu0.b32.cont [6/16] 0.0, 128
      %743 = vxpose.xlu0.b32.cont [7/16] 0.0, 128
      %744 = vxpose.xlu0.b32.cont [8/16] 0.0, 128
      %745 = vxpose.xlu0.b32.cont [9/16] 0.0, 128
      %746 = vxpose.xlu0.b32.cont [10/16] 0.0, 128
      %747 = vxpose.xlu0.b32.cont [11/16] 0.0, 128
      %748 = vxpose.xlu0.b32.cont [12/16] 0.0, 128
      %749 = vxpose.xlu0.b32.cont [13/16] 0.0, 128
      %750 = vxpose.xlu0.b32.cont [14/16] 0.0, 128
      %751 = vxpose.xlu0.b32.cont [15/16] 0.0, 128
      %752 = vxpose.xlu0.b32.end [16/16] 0.0, 128
      %v753 = vpop.trf.xlu0
      %v754 = vpop.trf.xlu0
      %v755 = vpop.trf.xlu0
      %v756 = vpop.trf.xlu0
      %v757 = vpop.trf.xlu0
      %v758 = vpop.trf.xlu0
      %v759 = vpop.trf.xlu0
      %v760 = vpop.trf.xlu0
      %v761 = vpop.trf.xlu0
      %v762 = vpop.trf.xlu0
      %v763 = vpop.trf.xlu0
      %v764 = vpop.trf.xlu0
      %v765 = vpop.trf.xlu0
      %v766 = vpop.trf.xlu0
      %v767 = vpop.trf.xlu0
      %v768 = vpop.trf.xlu0
      %v769 = vpack.c.bf16 %v753, %v753
      %s770 = scalar_lea.vmem %s347, 12
      %771 = vst.msk [vmem:[%s770] sm:$0xf] %vm449, %v769
      %p772 = scmp.lt.s32.totalorder %s23, 1
      %s773 = scalar_select %p772, %s23, 1
      %p774 = scmp.lt.s32.totalorder %s24, 0
      %s775 = scalar_select %p774, %s24, 0
      %s776 = smul.addr %s773, 4
      %s777 = sadd.s32 %s775, %s776
      %s778 = smul.addr %s777, 4
      %s779 = scalar_lea.vmem %s5, %s778
      %p780 = scmp.lt.s32.totalorder %s23, 1
      %s781 = scalar_select %p780, %s23, 1
      %p782 = scmp.lt.s32.totalorder %s24, 0
      %s783 = scalar_select %p782, %s24, 0
      %s784 = smul.addr %s781, 4
      %s785 = sadd.s32 %s783, %s784
      %s786 = smul.addr %s785, 4
      %s787 = scalar_lea.vmem %s6, %s786
      %p788 = scmp.lt.s32.totalorder %s23, 1
      %s789 = scalar_select %p788, %s23, 1
      %p790 = scmp.lt.s32.totalorder %s24, 0
      %s791 = scalar_select %p790, %s24, 0
      %s792 = smul.addr %s789, 4
      %s793 = sadd.s32 %s791, %s792
      %s794 = smul.addr %s793, 4
      %s795 = scalar_lea.vmem %s7, %s794
      // Predicated region
      $region41: #{gpt_forward.6} parent=39 // pred_check
        %p796 = pneg %p163
      $region42: #{gpt_forward.6} parent=39 // pred_check_branch
        %798 = sbr.rel (%p796) target = $region44
      $region43: #{gpt_forward.6} parent=39 // pred_region
        _
      $region44: #{gpt_forward.6} parent=39 // pred_fallthru
        _
      // Predicated region
      $region45: #{gpt_forward.6} parent=39 // pred_check
        %p799 = pneg %p191
      $region46: #{gpt_forward.6} parent=39 // pred_check_branch
        %801 = sbr.rel (%p799) target = $region48
      $region47: #{gpt_forward.6} parent=39 // pred_region
        _
      $region48: #{gpt_forward.6} parent=39 // pred_fallthru
        _
      // Predicated region
      $region49: #{gpt_forward.6} parent=39 // pred_check
        %p802 = pneg %p219
      $region50: #{gpt_forward.6} parent=39 // pred_check_branch
        %804 = sbr.rel (%p802) target = $region52
      $region51: #{gpt_forward.6} parent=39 // pred_region
        _
      $region52: #{gpt_forward.6} parent=39 // pred_fallthru
        _
    $region40: #{gpt_forward.6} parent=5 // pred_fallthru
      _
    %p805 = scmp.le.s32.totalorder 2, %s14
    // Predicated region
    $region53: #{gpt_forward.6} parent=5 // pred_check
      %p806 = pneg %p805
    $region54: #{gpt_forward.6} parent=5 // pred_check_branch
      %808 = sbr.rel (%p806) target = $region56
    $region55: #{gpt_forward.6} parent=5 // pred_region
      %s809 = ssub.s32 %s14, 2
      // Predicated region
      $region57: #{gpt_forward.6} parent=55 // pred_check
        %p810 = pneg %p169
      $region58: #{gpt_forward.6} parent=55 // pred_check_branch
        %812 = sbr.rel (%p810) target = $region60
      $region59: #{gpt_forward.6} parent=55 // pred_region
        %p813 = scmp.lt.s32.totalorder %s25, 1
        %s814 = scalar_select %p813, %s25, 1
        %p815 = scmp.lt.s32.totalorder %s26, 0
        %s816 = scalar_select %p815, %s26, 0
        %s817 = smul.addr %s814, 4
        %s818 = sadd.s32 %s816, %s817
        %s819 = smul.addr %s818, 4
        %s820 = scalar_lea.vmem %s5, %s819
      $region60: #{gpt_forward.6} parent=55 // pred_fallthru
        _
      // Predicated region
      $region61: #{gpt_forward.6} parent=55 // pred_check
        %p821 = pneg %p197
      $region62: #{gpt_forward.6} parent=55 // pred_check_branch
        %823 = sbr.rel (%p821) target = $region64
      $region63: #{gpt_forward.6} parent=55 // pred_region
        %p824 = scmp.lt.s32.totalorder %s25, 1
        %s825 = scalar_select %p824, %s25, 1
        %p826 = scmp.lt.s32.totalorder %s26, 0
        %s827 = scalar_select %p826, %s26, 0
        %s828 = smul.addr %s825, 4
        %s829 = sadd.s32 %s827, %s828
        %s830 = smul.addr %s829, 4
        %s831 = scalar_lea.vmem %s6, %s830
      $region64: #{gpt_forward.6} parent=55 // pred_fallthru
        _
      // Predicated region
      $region65: #{gpt_forward.6} parent=55 // pred_check
        %p832 = pneg %p225
      $region66: #{gpt_forward.6} parent=55 // pred_check_branch
        %834 = sbr.rel (%p832) target = $region68
      $region67: #{gpt_forward.6} parent=55 // pred_region
        %p835 = scmp.lt.s32.totalorder %s25, 1
        %s836 = scalar_select %p835, %s25, 1
        %p837 = scmp.lt.s32.totalorder %s26, 0
        %s838 = scalar_select %p837, %s26, 0
        %s839 = smul.addr %s836, 4
        %s840 = sadd.s32 %s838, %s839
        %s841 = smul.addr %s840, 4
        %s842 = scalar_lea.vmem %s7, %s841
      $region68: #{gpt_forward.6} parent=55 // pred_fallthru
        _
    $region56: #{gpt_forward.6} parent=5 // pred_fallthru
      _
  $region6: #{gpt_forward.6} parent=0 // loop_footer
    %s18 = sadd.s32 1, %s14
  $region7: #{gpt_forward.6} parent=0 // loop_footer_branch
    %13 = sbr.rel target = $region3
  $region8: #{gpt_forward.6} parent=0 // loop_exit
    _

// kernel: gpt_forward.7
$region0: #{gpt_forward.7}
  #allocation0 [shape = 'u32[]', space=smem, size = 0x4, offset = 0x4, fixed_abs, tag = 'smem constant byte address 0x4 - core index']
  #allocation1 [shape = 'u32[144,128]{1,0:T(1,128)}', space=vmem, size = 0x12000, scoped, tag = 'internal scratch']
  #allocation2 [shape = 'bf16[8,32]{1,0:T(8,128)(2,1)}', space=vmem, size = 0x800, scoped, tag = 'scratch operand']
  %s0 = inlined_call_operand.vmem [shape: f32[2,8,32], index: 0, kind: input, shape index: {}]
  %s1 = inlined_call_operand.vmem [shape: bf16[2,4,8,8], index: 1, kind: input, shape index: {}]
  %s2 = inlined_call_operand.vmem [shape: bf16[2,4,8,8], index: 2, kind: input, shape index: {}]
  %s3 = inlined_call_operand.vmem [shape: bf16[2,4,8,8], index: 3, kind: input, shape index: {}]
  %s4 = inlined_call_operand.vmem [shape: bf16[32,32], index: 4, kind: input, shape index: {}]
  %s5 = inlined_call_operand.vmem [shape: f32[1,32], index: 5, kind: input, shape index: {}]
  %s6 = inlined_call_operand.vmem [shape: f32[1,32], index: 6, kind: input, shape index: {}]
  %s7 = inlined_call_operand.vmem [shape: f32[1,32], index: 7, kind: input, shape index: {}]
  %s8 = inlined_call_operand.vmem [shape: bf16[32,128], index: 8, kind: input, shape index: {}]
  %s9 = inlined_call_operand.vmem [shape: f32[1,128], index: 9, kind: input, shape index: {}]
  %s10 = inlined_call_operand.vmem [shape: bf16[128,32], index: 10, kind: input, shape index: {}]
  %s11 = inlined_call_operand.vmem [shape: f32[1,32], index: 11, kind: input, shape index: {}]
  %s12 = inlined_call_operand.vmem [shape: f32[2,8,32], index: 12, kind: output, shape index: {}]
  %s13 = sld [smem:[#allocation0]]
  $region81: #{gpt_forward.7} parent=0
    _
  %s15 = ssub.s32 1, %s13
  %s16 = scalar_select 0, %s15, %s13
  loop: start=0, step=1, limit=4
  $region2: #{gpt_forward.7} parent=0 // loop_pre_header
    _
  $region3: #{gpt_forward.7} parent=0 // loop_header
    %s18 = sphi 0, %s22
    %p19 = scmp.ge.s32.totalorder %s18, 4
    %s25 = sphi 0, %s37
    %s26 = sphi 0, %s33
    %s27 = sphi 0, %s25
    %s28 = sphi 0, %s26
    %s29 = sphi 0, %s27
    %s30 = sphi 0, %s28
    %s42 = sphi 0, %s44
    %s45 = sphi 0, %s42
    %s46 = sphi 0, %s45
    %s62 = sphi 0, %s46
    %s70 = sphi 0, %s72
    %s73 = sphi 0, %s70
    %s74 = sphi 0, %s73
    %s90 = sphi 0, %s74
    %s96 = sphi 0, %s98
    %s99 = sphi 0, %s96
    %s100 = sphi 0, %s99
    %s116 = sphi 0, %s100
    %s122 = sphi 0, %s124
    %s125 = sphi 0, %s122
    %s126 = sphi 0, %s125
    %s142 = sphi 0, %s126
    %s146 = sphi 0, %s146
    %s148 = sphi 0, %s146
    %s149 = sphi 0, %s148
    %s163 = sphi 0, %s149
    %s167 = sphi 0, %s167
    %s169 = sphi 0, %s167
    %s170 = sphi 0, %s169
    %s184 = sphi 0, %s170
    %s188 = sphi 0, %s188
    %s190 = sphi 0, %s188
    %s191 = sphi 0, %s190
    %s205 = sphi 0, %s191
    %s209 = sphi 0, %s209
    %s211 = sphi 0, %s209
    %s212 = sphi 0, %s211
    %s226 = sphi 0, %s212
    %s230 = sphi 0, %s230
    %s232 = sphi 0, %s230
    %s233 = sphi 0, %s232
    %s247 = sphi 0, %s233
    %s251 = sphi 0, %s251
    %s253 = sphi 0, %s251
    %s254 = sphi 0, %s253
    %s268 = sphi 0, %s254
    %s272 = sphi 0, %s272
    %s274 = sphi 0, %s272
    %s275 = sphi 0, %s274
    %s289 = sphi 0, %s275
    %s293 = sphi 0, %s293
    %s295 = sphi 0, %s293
    %s296 = sphi 0, %s295
    %s310 = sphi 0, %s296
    %s318 = sphi 0, %s320
    %s321 = sphi 0, %s318
    %s322 = sphi 0, %s321
    %s338 = sphi 0, %s322
  $region4: #{gpt_forward.7} parent=0 // loop_header_branch
    %21 = sbr.rel (%p19) target = $region8
  $region5: #{gpt_forward.7} parent=0 // loop_body
    %s23 = ssub.s32 %s18, 1
    %s24 = ssub.s32 %s18, 2
    %s31 = sadd.s32 1, %s26
    %p32 = scmp.ge.s32.totalorder %s31, 1
    %s33 = scalar_select %p32, 0, %s31
    %s34 = sadd.s32 1, %s25
    %s35 = scalar_select %p32, %s34, %s25
    %p36 = scmp.ge.s32.totalorder %s35, 2
    %s37 = scalar_select %p36, 0, %s35
    %s38 = ssub.s32 %s25, %s37
    %s39 = ssub.s32 %s26, %s33
    %s40 = sor.u32 %s38, %s39
    %p41 = scmp.eq.s32.totalorder %s40, 0
    %s43 = sadd.s32 %s42, 1
    %s44 = scalar_select %p41, %s42, %s43
    %p47 = pneg %p41
    %p48 = scmp.eq.s32.totalorder %s18, 1
    %p49 = por %p47, %p48
    %p50 = scmp.ne.s32.totalorder %s42, %s45
    %p51 = scmp.eq.s32.totalorder %s18, 0
    %p52 = por %p50, %p51
    %p53 = scmp.ne.s32.totalorder %s42, %s45
    %p54 = scmp.eq.s32.totalorder %s23, 1
    %p55 = por %p53, %p54
    %p56 = scmp.ne.s32.totalorder %s45, %s46
    %p57 = scmp.eq.s32.totalorder %s23, 0
    %p58 = por %p56, %p57
    %p59 = scmp.ne.s32.totalorder %s45, %s46
    %p60 = scmp.eq.s32.totalorder %s24, 1
    %p61 = por %p59, %p60
    %p63 = scmp.ne.s32.totalorder %s46, %s62
    %p64 = scmp.eq.s32.totalorder %s24, 0
    %p65 = por %p63, %p64
    %s66 = ssub.s32 %s25, %s37
    %s67 = ssub.s32 %s26, %s33
    %s68 = sor.u32 %s66, %s67
    %p69 = scmp.eq.s32.totalorder %s68, 0
    %s71 = sadd.s32 %s70, 1
    %s72 = scalar_select %p69, %s70, %s71
    %p75 = pneg %p69
    %p76 = scmp.eq.s32.totalorder %s18, 1
    %p77 = por %p75, %p76
    %p78 = scmp.ne.s32.totalorder %s70, %s73
    %p79 = scmp.eq.s32.totalorder %s18, 0
    %p80 = por %p78, %p79
    %p81 = scmp.ne.s32.totalorder %s70, %s73
    %p82 = scmp.eq.s32.totalorder %s23, 1
    %p83 = por %p81, %p82
    %p84 = scmp.ne.s32.totalorder %s73, %s74
    %p85 = scmp.eq.s32.totalorder %s23, 0
    %p86 = por %p84, %p85
    %p87 = scmp.ne.s32.totalorder %s73, %s74
    %p88 = scmp.eq.s32.totalorder %s24, 1
    %p89 = por %p87, %p88
    %p91 = scmp.ne.s32.totalorder %s74, %s90
    %p92 = scmp.eq.s32.totalorder %s24, 0
    %p93 = por %p91, %p92
    %s94 = ssub.s32 %s25, %s37
    %p95 = scmp.eq.s32.totalorder %s94, 0
    %s97 = sadd.s32 %s96, 1
    %s98 = scalar_select %p95, %s96, %s97
    %p101 = pneg %p95
    %p102 = scmp.eq.s32.totalorder %s18, 1
    %p103 = por %p101, %p102
    %p104 = scmp.ne.s32.totalorder %s96, %s99
    %p105 = scmp.eq.s32.totalorder %s18, 0
    %p106 = por %p104, %p105
    %p107 = scmp.ne.s32.totalorder %s96, %s99
    %p108 = scmp.eq.s32.totalorder %s23, 1
    %p109 = por %p107, %p108
    %p110 = scmp.ne.s32.totalorder %s99, %s100
    %p111 = scmp.eq.s32.totalorder %s23, 0
    %p112 = por %p110, %p111
    %p113 = scmp.ne.s32.totalorder %s99, %s100
    %p114 = scmp.eq.s32.totalorder %s24, 1
    %p115 = por %p113, %p114
    %p117 = scmp.ne.s32.totalorder %s100, %s116
    %p118 = scmp.eq.s32.totalorder %s24, 0
    %p119 = por %p117, %p118
    %s120 = ssub.s32 %s25, %s37
    %p121 = scmp.eq.s32.totalorder %s120, 0
    %s123 = sadd.s32 %s122, 1
    %s124 = scalar_select %p121, %s122, %s123
    %p127 = pneg %p121
    %p128 = scmp.eq.s32.totalorder %s18, 1
    %p129 = por %p127, %p128
    %p130 = scmp.ne.s32.totalorder %s122, %s125
    %p131 = scmp.eq.s32.totalorder %s18, 0
    %p132 = por %p130, %p131
    %p133 = scmp.ne.s32.totalorder %s122, %s125
    %p134 = scmp.eq.s32.totalorder %s23, 1
    %p135 = por %p133, %p134
    %p136 = scmp.ne.s32.totalorder %s125, %s126
    %p137 = scmp.eq.s32.totalorder %s23, 0
    %p138 = por %p136, %p137
    %p139 = scmp.ne.s32.totalorder %s125, %s126
    %p140 = scmp.eq.s32.totalorder %s24, 1
    %p141 = por %p139, %p140
    %p143 = scmp.ne.s32.totalorder %s126, %s142
    %p144 = scmp.eq.s32.totalorder %s24, 0
    %p145 = por %p143, %p144
    %s147 = sadd.s32 %s146, 1
    %p150 = scmp.eq.s32.totalorder %s18, 1
    %p151 = scmp.ne.s32.totalorder %s146, %s148
    %p152 = scmp.eq.s32.totalorder %s18, 0
    %p153 = por %p151, %p152
    %p154 = scmp.ne.s32.totalorder %s146, %s148
    %p155 = scmp.eq.s32.totalorder %s23, 1
    %p156 = por %p154, %p155
    %p157 = scmp.ne.s32.totalorder %s148, %s149
    %p158 = scmp.eq.s32.totalorder %s23, 0
    %p159 = por %p157, %p158
    %p160 = scmp.ne.s32.totalorder %s148, %s149
    %p161 = scmp.eq.s32.totalorder %s24, 1
    %p162 = por %p160, %p161
    %p164 = scmp.ne.s32.totalorder %s149, %s163
    %p165 = scmp.eq.s32.totalorder %s24, 0
    %p166 = por %p164, %p165
    %s168 = sadd.s32 %s167, 1
    %p171 = scmp.eq.s32.totalorder %s18, 1
    %p172 = scmp.ne.s32.totalorder %s167, %s169
    %p173 = scmp.eq.s32.totalorder %s18, 0
    %p174 = por %p172, %p173
    %p175 = scmp.ne.s32.totalorder %s167, %s169
    %p176 = scmp.eq.s32.totalorder %s23, 1
    %p177 = por %p175, %p176
    %p178 = scmp.ne.s32.totalorder %s169, %s170
    %p179 = scmp.eq.s32.totalorder %s23, 0
    %p180 = por %p178, %p179
    %p181 = scmp.ne.s32.totalorder %s169, %s170
    %p182 = scmp.eq.s32.totalorder %s24, 1
    %p183 = por %p181, %p182
    %p185 = scmp.ne.s32.totalorder %s170, %s184
    %p186 = scmp.eq.s32.totalorder %s24, 0
    %p187 = por %p185, %p186
    %s189 = sadd.s32 %s188, 1
    %p192 = scmp.eq.s32.totalorder %s18, 1
    %p193 = scmp.ne.s32.totalorder %s188, %s190
    %p194 = scmp.eq.s32.totalorder %s18, 0
    %p195 = por %p193, %p194
    %p196 = scmp.ne.s32.totalorder %s188, %s190
    %p197 = scmp.eq.s32.totalorder %s23, 1
    %p198 = por %p196, %p197
    %p199 = scmp.ne.s32.totalorder %s190, %s191
    %p200 = scmp.eq.s32.totalorder %s23, 0
    %p201 = por %p199, %p200
    %p202 = scmp.ne.s32.totalorder %s190, %s191
    %p203 = scmp.eq.s32.totalorder %s24, 1
    %p204 = por %p202, %p203
    %p206 = scmp.ne.s32.totalorder %s191, %s205
    %p207 = scmp.eq.s32.totalorder %s24, 0
    %p208 = por %p206, %p207
    %s210 = sadd.s32 %s209, 1
    %p213 = scmp.eq.s32.totalorder %s18, 1
    %p214 = scmp.ne.s32.totalorder %s209, %s211
    %p215 = scmp.eq.s32.totalorder %s18, 0
    %p216 = por %p214, %p215
    %p217 = scmp.ne.s32.totalorder %s209, %s211
    %p218 = scmp.eq.s32.totalorder %s23, 1
    %p219 = por %p217, %p218
    %p220 = scmp.ne.s32.totalorder %s211, %s212
    %p221 = scmp.eq.s32.totalorder %s23, 0
    %p222 = por %p220, %p221
    %p223 = scmp.ne.s32.totalorder %s211, %s212
    %p224 = scmp.eq.s32.totalorder %s24, 1
    %p225 = por %p223, %p224
    %p227 = scmp.ne.s32.totalorder %s212, %s226
    %p228 = scmp.eq.s32.totalorder %s24, 0
    %p229 = por %p227, %p228
    %s231 = sadd.s32 %s230, 1
    %p234 = scmp.eq.s32.totalorder %s18, 1
    %p235 = scmp.ne.s32.totalorder %s230, %s232
    %p236 = scmp.eq.s32.totalorder %s18, 0
    %p237 = por %p235, %p236
    %p238 = scmp.ne.s32.totalorder %s230, %s232
    %p239 = scmp.eq.s32.totalorder %s23, 1
    %p240 = por %p238, %p239
    %p241 = scmp.ne.s32.totalorder %s232, %s233
    %p242 = scmp.eq.s32.totalorder %s23, 0
    %p243 = por %p241, %p242
    %p244 = scmp.ne.s32.totalorder %s232, %s233
    %p245 = scmp.eq.s32.totalorder %s24, 1
    %p246 = por %p244, %p245
    %p248 = scmp.ne.s32.totalorder %s233, %s247
    %p249 = scmp.eq.s32.totalorder %s24, 0
    %p250 = por %p248, %p249
    %s252 = sadd.s32 %s251, 1
    %p255 = scmp.eq.s32.totalorder %s18, 1
    %p256 = scmp.ne.s32.totalorder %s251, %s253
    %p257 = scmp.eq.s32.totalorder %s18, 0
    %p258 = por %p256, %p257
    %p259 = scmp.ne.s32.totalorder %s251, %s253
    %p260 = scmp.eq.s32.totalorder %s23, 1
    %p261 = por %p259, %p260
    %p262 = scmp.ne.s32.totalorder %s253, %s254
    %p263 = scmp.eq.s32.totalorder %s23, 0
    %p264 = por %p262, %p263
    %p265 = scmp.ne.s32.totalorder %s253, %s254
    %p266 = scmp.eq.s32.totalorder %s24, 1
    %p267 = por %p265, %p266
    %p269 = scmp.ne.s32.totalorder %s254, %s268
    %p270 = scmp.eq.s32.totalorder %s24, 0
    %p271 = por %p269, %p270
    %s273 = sadd.s32 %s272, 1
    %p276 = scmp.eq.s32.totalorder %s18, 1
    %p277 = scmp.ne.s32.totalorder %s272, %s274
    %p278 = scmp.eq.s32.totalorder %s18, 0
    %p279 = por %p277, %p278
    %p280 = scmp.ne.s32.totalorder %s272, %s274
    %p281 = scmp.eq.s32.totalorder %s23, 1
    %p282 = por %p280, %p281
    %p283 = scmp.ne.s32.totalorder %s274, %s275
    %p284 = scmp.eq.s32.totalorder %s23, 0
    %p285 = por %p283, %p284
    %p286 = scmp.ne.s32.totalorder %s274, %s275
    %p287 = scmp.eq.s32.totalorder %s24, 1
    %p288 = por %p286, %p287
    %p290 = scmp.ne.s32.totalorder %s275, %s289
    %p291 = scmp.eq.s32.totalorder %s24, 0
    %p292 = por %p290, %p291
    %s294 = sadd.s32 %s293, 1
    %p297 = scmp.eq.s32.totalorder %s18, 1
    %p298 = scmp.ne.s32.totalorder %s293, %s295
    %p299 = scmp.eq.s32.totalorder %s18, 0
    %p300 = por %p298, %p299
    %p301 = scmp.ne.s32.totalorder %s293, %s295
    %p302 = scmp.eq.s32.totalorder %s23, 1
    %p303 = por %p301, %p302
    %p304 = scmp.ne.s32.totalorder %s295, %s296
    %p305 = scmp.eq.s32.totalorder %s23, 0
    %p306 = por %p304, %p305
    %p307 = scmp.ne.s32.totalorder %s295, %s296
    %p308 = scmp.eq.s32.totalorder %s24, 1
    %p309 = por %p307, %p308
    %p311 = scmp.ne.s32.totalorder %s296, %s310
    %p312 = scmp.eq.s32.totalorder %s24, 0
    %p313 = por %p311, %p312
    %s314 = ssub.s32 %s25, %s37
    %s315 = ssub.s32 %s26, %s33
    %s316 = sor.u32 %s314, %s315
    %p317 = scmp.eq.s32.totalorder %s316, 0
    %s319 = sadd.s32 %s318, 1
    %s320 = scalar_select %p317, %s318, %s319
    %p323 = pneg %p317
    %p324 = scmp.eq.s32.totalorder %s18, 1
    %p325 = por %p323, %p324
    %p326 = scmp.ne.s32.totalorder %s318, %s321
    %p327 = scmp.eq.s32.totalorder %s18, 0
    %p328 = por %p326, %p327
    %p329 = scmp.ne.s32.totalorder %s318, %s321
    %p330 = scmp.eq.s32.totalorder %s23, 1
    %p331 = por %p329, %p330
    %p332 = scmp.ne.s32.totalorder %s321, %s322
    %p333 = scmp.eq.s32.totalorder %s23, 0
    %p334 = por %p332, %p333
    %p335 = scmp.ne.s32.totalorder %s321, %s322
    %p336 = scmp.eq.s32.totalorder %s24, 1
    %p337 = por %p335, %p336
    %p339 = scmp.ne.s32.totalorder %s322, %s338
    %p340 = scmp.eq.s32.totalorder %s24, 0
    %p341 = por %p339, %p340
    %p342 = scmp.le.s32.totalorder 1, %s18
    %p343 = scmp.lt.s32.totalorder %s18, 3
    %p344 = pnand %p342, %p343
    %p345 = pneg %p344
    // Predicated region
    $region9: #{gpt_forward.7} parent=5 // pred_check
      _
    $region10: #{gpt_forward.7} parent=5 // pred_check_branch
      %347 = sbr.rel (%p344) target = $region12
    $region11: #{gpt_forward.7} parent=5 // pred_region
      %s348 = ssub.s32 %s18, 1
      // Predicated region
      $region13: #{gpt_forward.7} parent=11 // pred_check
        %p349 = pneg %p159
      $region14: #{gpt_forward.7} parent=11 // pred_check_branch
        %351 = sbr.rel (%p349) target = $region16
      $region15: #{gpt_forward.7} parent=11 // pred_region
        _
      $region16: #{gpt_forward.7} parent=11 // pred_fallthru
        _
      // Predicated region
      $region17: #{gpt_forward.7} parent=11 // pred_check
        %p352 = pneg %p180
      $region18: #{gpt_forward.7} parent=11 // pred_check_branch
        %354 = sbr.rel (%p352) target = $region20
      $region19: #{gpt_forward.7} parent=11 // pred_region
        _
      $region20: #{gpt_forward.7} parent=11 // pred_fallthru
        _
      // Predicated region
      $region21: #{gpt_forward.7} parent=11 // pred_check
        %p355 = pneg %p201
      $region22: #{gpt_forward.7} parent=11 // pred_check_branch
        %357 = sbr.rel (%p355) target = $region24
      $region23: #{gpt_forward.7} parent=11 // pred_region
        _
      $region24: #{gpt_forward.7} parent=11 // pred_fallthru
        _
      // Predicated region
      $region25: #{gpt_forward.7} parent=11 // pred_check
        %p358 = pneg %p222
      $region26: #{gpt_forward.7} parent=11 // pred_check_branch
        %360 = sbr.rel (%p358) target = $region28
      $region27: #{gpt_forward.7} parent=11 // pred_region
        _
      $region28: #{gpt_forward.7} parent=11 // pred_fallthru
        _
      // Predicated region
      $region29: #{gpt_forward.7} parent=11 // pred_check
        %p361 = pneg %p243
      $region30: #{gpt_forward.7} parent=11 // pred_check_branch
        %363 = sbr.rel (%p361) target = $region32
      $region31: #{gpt_forward.7} parent=11 // pred_region
        _
      $region32: #{gpt_forward.7} parent=11 // pred_fallthru
        _
      // Predicated region
      $region33: #{gpt_forward.7} parent=11 // pred_check
        %p364 = pneg %p264
      $region34: #{gpt_forward.7} parent=11 // pred_check_branch
        %366 = sbr.rel (%p364) target = $region36
      $region35: #{gpt_forward.7} parent=11 // pred_region
        _
      $region36: #{gpt_forward.7} parent=11 // pred_fallthru
        _
      // Predicated region
      $region37: #{gpt_forward.7} parent=11 // pred_check
        %p367 = pneg %p285
      $region38: #{gpt_forward.7} parent=11 // pred_check_branch
        %369 = sbr.rel (%p367) target = $region40
      $region39: #{gpt_forward.7} parent=11 // pred_region
        _
      $region40: #{gpt_forward.7} parent=11 // pred_fallthru
        _
      // Predicated region
      $region41: #{gpt_forward.7} parent=11 // pred_check
        %p370 = pneg %p306
      $region42: #{gpt_forward.7} parent=11 // pred_check_branch
        %372 = sbr.rel (%p370) target = $region44
      $region43: #{gpt_forward.7} parent=11 // pred_region
        _
      $region44: #{gpt_forward.7} parent=11 // pred_fallthru
        _
    $region12: #{gpt_forward.7} parent=5 // pred_fallthru
      _
    %p373 = scmp.lt.s32.totalorder %s18, 2
    // Predicated region
    $region45: #{gpt_forward.7} parent=5 // pred_check
      %p374 = pneg %p373
    $region46: #{gpt_forward.7} parent=5 // pred_check_branch
      %376 = sbr.rel (%p374) target = $region48
    $region47: #{gpt_forward.7} parent=5 // pred_region
      // Predicated region
      $region49: #{gpt_forward.7} parent=47 // pred_check
        %p377 = pneg %p52
      $region50: #{gpt_forward.7} parent=47 // pred_check_branch
        %379 = sbr.rel (%p377) target = $region52
      $region51: #{gpt_forward.7} parent=47 // pred_region
        %p380 = scmp.lt.s32.totalorder %s25, 1
        %s381 = scalar_select %p380, %s25, 1
        %p382 = scmp.lt.s32.totalorder %s26, 0
        %s383 = scalar_select %p382, %s26, 0
        %s384 = sadd.s32 %s383, %s381
        %s385 = smul.addr %s384, 8
        %s386 = scalar_lea.vmem %s0, %s385
      $region52: #{gpt_forward.7} parent=47 // pred_fallthru
        _
      // Predicated region
      $region53: #{gpt_forward.7} parent=47 // pred_check
        %p387 = pneg %p80
      $region54: #{gpt_forward.7} parent=47 // pred_check_branch
        %389 = sbr.rel (%p387) target = $region56
      $region55: #{gpt_forward.7} parent=47 // pred_region
        %p390 = scmp.lt.s32.totalorder %s25, 1
        %s391 = scalar_select %p390, %s25, 1
        %p392 = scmp.lt.s32.totalorder %s26, 0
        %s393 = scalar_select %p392, %s26, 0
        %s394 = smul.addr %s391, 4
        %s395 = sadd.s32 %s393, %s394
        %s396 = smul.addr %s395, 4
        %s397 = scalar_lea.vmem %s1, %s396
      $region56: #{gpt_forward.7} parent=47 // pred_fallthru
        _
      // Predicated region
      $region57: #{gpt_forward.7} parent=47 // pred_check
        %p398 = pneg %p106
      $region58: #{gpt_forward.7} parent=47 // pred_check_branch
        %400 = sbr.rel (%p398) target = $region60
      $region59: #{gpt_forward.7} parent=47 // pred_region
        %p401 = scmp.lt.s32.totalorder %s25, 1
        %s402 = scalar_select %p401, %s25, 1
        %s403 = smul.addr %s402, 4
        %s404 = smul.addr %s403, 4
        %s405 = scalar_lea.vmem %s2, %s404
      $region60: #{gpt_forward.7} parent=47 // pred_fallthru
        _
      // Predicated region
      $region61: #{gpt_forward.7} parent=47 // pred_check
        %p406 = pneg %p132
      $region62: #{gpt_forward.7} parent=47 // pred_check_branch
        %408 = sbr.rel (%p406) target = $region64
      $region63: #{gpt_forward.7} parent=47 // pred_region
        %p409 = scmp.lt.s32.totalorder %s25, 1
        %s410 = scalar_select %p409, %s25, 1
        %s411 = smul.addr %s410, 4
        %s412 = smul.addr %s411, 4
        %s413 = scalar_lea.vmem %s3, %s412
      $region64: #{gpt_forward.7} parent=47 // pred_fallthru
        _
    $region48: #{gpt_forward.7} parent=5 // pred_fallthru
      _
    %p414 = scmp.le.s32.totalorder 1, %s18
    %p415 = scmp.lt.s32.totalorder %s18, 3
    %p416 = pnand %p414, %p415
    %p417 = pneg %p416
    // Predicated region
    $region65: #{gpt_forward.7} parent=5 // pred_check
      _
    $region66: #{gpt_forward.7} parent=5 // pred_check_branch
      %419 = sbr.rel (%p416) target = $region68
    $region67: #{gpt_forward.7} parent=5 // pred_region
      %s420 = ssub.s32 %s18, 1
      %p421 = scmp.lt.s32.totalorder %s27, 1
      %s422 = scalar_select %p421, %s27, 1
      %p423 = scmp.lt.s32.totalorder %s28, 0
      %s424 = scalar_select %p423, %s28, 0
      %s425 = sadd.s32 %s424, %s422
      %s426 = smul.addr %s425, 8
      %s427 = scalar_lea.vmem %s0, %s426
      %p428 = pneg %p58
      %p429 = pneg %p55
      %p430 = scmp.lt.s32.totalorder %s27, 1
      %s431 = scalar_select %p430, %s27, 1
      %p432 = scmp.lt.s32.totalorder %s28, 0
      %s433 = scalar_select %p432, %s28, 0
      %s434 = smul.addr %s431, 4
      %s435 = sadd.s32 %s433, %s434
      %s436 = smul.addr %s435, 4
      %s437 = scalar_lea.vmem %s1, %s436
      %p438 = pneg %p86
      %p439 = pneg %p83
      %p440 = scmp.lt.s32.totalorder %s27, 1
      %s441 = scalar_select %p440, %s27, 1
      %s442 = smul.addr %s441, 4
      %s443 = smul.addr %s442, 4
      %s444 = scalar_lea.vmem %s2, %s443
      %p445 = pneg %p112
      %p446 = pneg %p109
      %p447 = scmp.lt.s32.totalorder %s27, 1
      %s448 = scalar_select %p447, %s27, 1
      %s449 = smul.addr %s448, 4
      %s450 = smul.addr %s449, 4
      %s451 = scalar_lea.vmem %s3, %s450
      %p452 = pneg %p138
      %p453 = pneg %p135
      %p454 = pneg %p159
      %p455 = pneg %p156
      %p456 = pneg %p180
      %p457 = pneg %p177
      %p458 = pneg %p201
      %p459 = pneg %p198
      %p460 = pneg %p222
      %p461 = pneg %p219
      %p462 = pneg %p243
      %p463 = pneg %p240
      %p464 = pneg %p264
      %p465 = pneg %p261
      %p466 = pneg %p285
      %p467 = pneg %p282
      %p468 = pneg %p306
      %p469 = pneg %p303
      %p470 = pneg %p334
      %p471 = pneg %p331
      %p472 = scmp.lt.s32.totalorder %s27, 1
      %s473 = scalar_select %p472, %s27, 1
      %p474 = scmp.lt.s32.totalorder %s28, 0
      %s475 = scalar_select %p474, %s28, 0
      %s476 = sadd.s32 %s475, %s473
      %s477 = smul.addr %s476, 8
      %s478 = scalar_lea.vmem %s12, %s477
      %p479 = scmp.lt.s32.totalorder %s27, 1
      %s480 = scalar_select %p479, %s27, 1
      %p481 = scmp.lt.s32.totalorder %s28, 0
      %s482 = scalar_select %p481, %s28, 0
      %s483 = sadd.s32 %s482, %s480
      %s484 = smul.addr %s483, 8
      %s485 = scalar_lea.vmem %s0, %s484
      %p486 = scmp.lt.s32.totalorder %s27, 1
      %s487 = scalar_select %p486, %s27, 1
      %p488 = scmp.lt.s32.totalorder %s28, 0
      %s489 = scalar_select %p488, %s28, 0
      %s490 = smul.addr %s487, 4
      %s491 = sadd.s32 %s489, %s490
      %s492 = smul.addr %s491, 4
      %s493 = scalar_lea.vmem %s1, %s492
      %p494 = scmp.lt.s32.totalorder %s27, 1
      %s495 = scalar_select %p494, %s27, 1
      %s496 = smul.addr %s495, 4
      %s497 = smul.addr %s496, 4
      %s498 = scalar_lea.vmem %s2, %s497
      %p499 = scmp.lt.s32.totalorder %s27, 1
      %s500 = scalar_select %p499, %s27, 1
      %s501 = smul.addr %s500, 4
      %s502 = smul.addr %s501, 4
      %s503 = scalar_lea.vmem %s3, %s502
      %p504 = scmp.lt.s32.totalorder %s27, 1
      %s505 = scalar_select %p504, %s27, 1
      %p506 = scmp.lt.s32.totalorder %s28, 0
      %s507 = scalar_select %p506, %s28, 0
      %s508 = sadd.s32 %s507, %s505
      %s509 = smul.addr %s508, 8
      %s510 = scalar_lea.vmem %s12, %s509
      %v512 = vld [vmem:[%s485] sm:$0xff]
      %v513 = vld [vmem:[%s493] sm:$0xf]
      %v514 = vld [vmem:[%s493 + $0x4] sm:$0xf]
      %v515 = vld [vmem:[%s493 + $0x8] sm:$0xf]
      %v516 = vld [vmem:[%s493 + $0xc] sm:$0xf]
      %v517 = vld [vmem:[%s498] sm:$0xf]
      %v518 = vld [vmem:[%s498 + $0x4] sm:$0xf]
      %v519 = vld [vmem:[%s498 + $0x8] sm:$0xf]
      %v520 = vld [vmem:[%s498 + $0xc] sm:$0xf]
      %v521 = vld [vmem:[%s503] sm:$0xf]
      %v522 = vld [vmem:[%s503 + $0x4] sm:$0xf]
      %v523 = vld [vmem:[%s503 + $0x8] sm:$0xf]
      %v524 = vld [vmem:[%s503 + $0xc] sm:$0xf]
      %vm525 = vcmask 64512
      %v527 = vsel %vm525, %v513, 0
      %vm529 = vcmask 1043456
      %v531 = vsel %vm529, %v517, 0
      %533 = vmatprep.subr.bf16.mxu0 0
      %534 = vmatpush1.bf16.msra.mxu0 %v531
      %535 = vmatprep.subr.bf16.mxu0 0
      %536 = vmatpush1.bf16.msra.mxu0 0
      %537 = vmatprep.subr.bf16.mxu0 0
      %538 = vmatpush1.bf16.msra.mxu0 0
      %539 = vmatprep.subr.bf16.mxu0 0
      %540 = vmatpush1.bf16.msra.mxu0 0
      %541 = vmatprep.subr.bf16.mxu0 0
      %542 = vmatpush1.bf16.msra.mxu0 0
      %543 = vmatprep.subr.bf16.mxu0 0
      %544 = vmatpush1.bf16.msra.mxu0 0
      %545 = vmatprep.subr.bf16.mxu0 0
      %546 = vmatpush1.bf16.msra.mxu0 0
      %547 = vmatprep.subr.bf16.mxu0 0
      %548 = vmatpush1.bf16.msra.mxu0 0
      %549 = vmatprep.subr.bf16.mxu0 0
      %550 = vmatpush1.bf16.msra.mxu0 0
      %551 = vmatprep.subr.bf16.mxu0 0
      %552 = vmatpush1.bf16.msra.mxu0 0
      %553 = vmatprep.subr.bf16.mxu0 0
      %554 = vmatpush1.bf16.msra.mxu0 0
      %555 = vmatprep.subr.bf16.mxu0 0
      %556 = vmatpush1.bf16.msra.mxu0 0
      %557 = vmatprep.subr.bf16.mxu0 0
      %558 = vmatpush1.bf16.msra.mxu0 0
      %559 = vmatprep.subr.bf16.mxu0 0
      %560 = vmatpush1.bf16.msra.mxu0 0
      %561 = vmatprep.subr.bf16.mxu0 0
      %562 = vmatpush1.bf16.msra.mxu0 0
      %563 = vmatprep.subr.bf16.mxu0 0
      %564 = vmatpush1.bf16.msra.mxu0 0
      %565 = vmatprep.mubr.bf16.mxu0 0
      %566 = vmatmul.mubr.bf16.gmra.mrb[0].mxu0 %v527
      %v567 = vpop.f32.mrb[0].mxu0
      %v568 = vadd.f32 0.0, %v567
      %v569 = vpop.f32.mrb[0].mxu0
      %v570 = vpop.f32.mrb[0].mxu0
      %v571 = vpop.f32.mrb[0].mxu0
      %572 = vdwg.mxu0
      %v574 = vsel %vm525, %v514, 0
      %v577 = vsel %vm529, %v518, 0
      %579 = vmatprep.subr.bf16.mxu0 0
      %580 = vmatpush1.bf16.msra.mxu0 %v577
      %581 = vmatprep.subr.bf16.mxu0 0
      %582 = vmatpush1.bf16.msra.mxu0 0
      %583 = vmatprep.subr.bf16.mxu0 0
      %584 = vmatpush1.bf16.msra.mxu0 0
      %585 = vmatprep.subr.bf16.mxu0 0
      %586 = vmatpush1.bf16.msra.mxu0 0
      %587 = vmatprep.subr.bf16.mxu0 0
      %588 = vmatpush1.bf16.msra.mxu0 0
      %589 = vmatprep.subr.bf16.mxu0 0
      %590 = vmatpush1.bf16.msra.mxu0 0
      %591 = vmatprep.subr.bf16.mxu0 0
      %592 = vmatpush1.bf16.msra.mxu0 0
      %593 = vmatprep.subr.bf16.mxu0 0
      %594 = vmatpush1.bf16.msra.mxu0 0
      %595 = vmatprep.subr.bf16.mxu0 0
      %596 = vmatpush1.bf16.msra.mxu0 0
      %597 = vmatprep.subr.bf16.mxu0 0
      %598 = vmatpush1.bf16.msra.mxu0 0
      %599 = vmatprep.subr.bf16.mxu0 0
      %600 = vmatpush1.bf16.msra.mxu0 0
      %601 = vmatprep.subr.bf16.mxu0 0
      %602 = vmatpush1.bf16.msra.mxu0 0
      %603 = vmatprep.subr.bf16.mxu0 0
      %604 = vmatpush1.bf16.msra.mxu0 0
      %605 = vmatprep.subr.bf16.mxu0 0
      %606 = vmatpush1.bf16.msra.mxu0 0
      %607 = vmatprep.subr.bf16.mxu0 0
      %608 = vmatpush1.bf16.msra.mxu0 0
      %609 = vmatprep.subr.bf16.mxu0 0
      %610 = vmatpush1.bf16.msra.mxu0 0
      %611 = vmatprep.mubr.bf16.mxu0 0
      %612 = vmatmul.mubr.bf16.gmra.mrb[0].mxu0 %v574
      %v613 = vpop.f32.mrb[0].mxu0
      %v614 = vadd.f32 0.0, %v613
      %v615 = vpop.f32.mrb[0].mxu0
      %v616 = vpop.f32.mrb[0].mxu0
      %v617 = vpop.f32.mrb[0].mxu0
      %618 = vdwg.mxu0
      %v620 = vsel %vm525, %v515, 0
      %v623 = vsel %vm529, %v519, 0
      %625 = vmatprep.subr.bf16.mxu0 0
      %626 = vmatpush1.bf16.msra.mxu0 %v623
      %627 = vmatprep.subr.bf16.mxu0 0
      %628 = vmatpush1.bf16.msra.mxu0 0
      %629 = vmatprep.subr.bf16.mxu0 0
      %630 = vmatpush1.bf16.msra.mxu0 0
      %631 = vmatprep.subr.bf16.mxu0 0
      %632 = vmatpush1.bf16.msra.mxu0 0
      %633 = vmatprep.subr.bf16.mxu0 0
      %634 = vmatpush1.bf16.msra.mxu0 0
      %635 = vmatprep.subr.bf16.mxu0 0
      %636 = vmatpush1.bf16.msra.mxu0 0
      %637 = vmatprep.subr.bf16.mxu0 0
      %638 = vmatpush1.bf16.msra.mxu0 0
      %639 = vmatprep.subr.bf16.mxu0 0
      %640 = vmatpush1.bf16.msra.mxu0 0
      %641 = vmatprep.subr.bf16.mxu0 0
      %642 = vmatpush1.bf16.msra.mxu0 0
      %643 = vmatprep.subr.bf16.mxu0 0
      %644 = vmatpush1.bf16.msra.mxu0 0
      %645 = vmatprep.subr.bf16.mxu0 0
      %646 = vmatpush1.bf16.msra.mxu0 0
      %647 = vmatprep.subr.bf16.mxu0 0
      %648 = vmatpush1.bf16.msra.mxu0 0
      %649 = vmatprep.subr.bf16.mxu0 0
      %650 = vmatpush1.bf16.msra.mxu0 0
      %651 = vmatprep.subr.bf16.mxu0 0
      %652 = vmatpush1.bf16.msra.mxu0 0
      %653 = vmatprep.subr.bf16.mxu0 0
      %654 = vmatpush1.bf16.msra.mxu0 0
      %655 = vmatprep.subr.bf16.mxu0 0
      %656 = vmatpush1.bf16.msra.mxu0 0
      %657 = vmatprep.mubr.bf16.mxu0 0
      %658 = vmatmul.mubr.bf16.gmra.mrb[0].mxu0 %v620
      %v659 = vpop.f32.mrb[0].mxu0
      %v660 = vadd.f32 0.0, %v659
      %v661 = vpop.f32.mrb[0].mxu0
      %v662 = vpop.f32.mrb[0].mxu0
      %v663 = vpop.f32.mrb[0].mxu0
      %664 = vdwg.mxu0
      %v666 = vsel %vm525, %v516, 0
      %v669 = vsel %vm529, %v520, 0
      %671 = vmatprep.subr.bf16.mxu0 0
      %672 = vmatpush1.bf16.msra.mxu0 %v669
      %673 = vmatprep.subr.bf16.mxu0 0
      %674 = vmatpush1.bf16.msra.mxu0 0
      %675 = vmatprep.subr.bf16.mxu0 0
      %676 = vmatpush1.bf16.msra.mxu0 0
      %677 = vmatprep.subr.bf16.mxu0 0
      %678 = vmatpush1.bf16.msra.mxu0 0
      %679 = vmatprep.subr.bf16.mxu0 0
      %680 = vmatpush1.bf16.msra.mxu0 0
      %681 = vmatprep.subr.bf16.mxu0 0
      %682 = vmatpush1.bf16.msra.mxu0 0
      %683 = vmatprep.subr.bf16.mxu0 0
      %684 = vmatpush1.bf16.msra.mxu0 0
      %685 = vmatprep.subr.bf16.mxu0 0
      %686 = vmatpush1.bf16.msra.mxu0 0
      %687 = vmatprep.subr.bf16.mxu0 0
      %688 = vmatpush1.bf16.msra.mxu0 0
      %689 = vmatprep.subr.bf16.mxu0 0
      %690 = vmatpush1.bf16.msra.mxu0 0
      %691 = vmatprep.subr.bf16.mxu0 0
      %692 = vmatpush1.bf16.msra.mxu0 0
      %693 = vmatprep.subr.bf16.mxu0 0
      %694 = vmatpush1.bf16.msra.mxu0 0
      %695 = vmatprep.subr.bf16.mxu0 0
      %696 = vmatpush1.bf16.msra.mxu0 0
      %697 = vmatprep.subr.bf16.mxu0 0
      %698 = vmatpush1.bf16.msra.mxu0 0
      %699 = vmatprep.subr.bf16.mxu0 0
      %700 = vmatpush1.bf16.msra.mxu0 0
      %701 = vmatprep.subr.bf16.mxu0 0
      %702 = vmatpush1.bf16.msra.mxu0 0
      %703 = vmatprep.mubr.bf16.mxu0 0
      %704 = vmatmul.mubr.bf16.gmra.mrb[0].mxu0 %v666
      %v705 = vpop.f32.mrb[0].mxu0
      %v706 = vadd.f32 0.0, %v705
      %v707 = vpop.f32.mrb[0].mxu0
      %v708 = vpop.f32.mrb[0].mxu0
      %v709 = vpop.f32.mrb[0].mxu0
      %710 = vdwg.mxu0
      %v711 = vmul.f32 %v568, 0.35355338
      %v712 = vmul.f32 %v614, 0.35355338
      %v713 = vmul.f32 %v660, 0.35355338
      %v714 = vmul.f32 %v706, 0.35355338
      %s715 = smul.u32 %s28, 8
      %v716 = vlaneseq
      %v717 = vshrl.u32 %v716, 7
      %v718 = vstv %s715
      %v719 = vadd.s32 %v718, %v717
      %v720 = vlaneseq
      %v721 = vand.u32 %v720, 127
      %vm722 = vcmp.ge.s32.totalorder %v719, %v721
      %v723 = vsel %vm722, 1, 0
      %vm724 = vcmp.eq.s32.totalorder %v723, 1
      %v725 = vsel %vm724, %v711, -1e+30
      %v726 = vsel %vm724, %v712, -1e+30
      %v727 = vsel %vm724, %v713, -1e+30
      %v728 = vsel %vm724, %v714, -1e+30
      %v729 = vsel %vm525, %v725, -inf
      %730 = vmax.xlane.f32.xlu0 %v729
      %v731 = vpop.xlane.xlu0 %730
      %v732 = vsel %vm525, %v726, -inf
      %733 = vmax.xlane.f32.xlu0 %v732
      %v734 = vpop.xlane.xlu0 %733
      %v735 = vsel %vm525, %v727, -inf
      %736 = vmax.xlane.f32.xlu0 %v735
      %v737 = vpop.xlane.xlu0 %736
      %v738 = vsel %vm525, %v728, -inf
      %739 = vmax.xlane.f32.xlu0 %v738
      %v740 = vpop.xlane.xlu0 %739
      %v741 = vsub.f32 %v725, %v731
      %v742 = vsub.f32 %v726, %v734
      %v743 = vsub.f32 %v727, %v737
      %v744 = vsub.f32 %v728, %v740
      %v745 = vmul.f32 %v741, 1.442695
      %v746 = vpow.pop %v745
      %v747 = vmul.f32 %v742, 1.442695
      %v748 = vpow.pop %v747
      %v749 = vmul.f32 %v743, 1.442695
      %v750 = vpow.pop %v749
      %v751 = vmul.f32 %v744, 1.442695
      %v752 = vpow.pop %v751
      %v753 = vsel %vm525, %v746, 0.0
      %754 = vadd.xlane.f32.xlu0 %v753
      %v755 = vpop.xlane.xlu0 %754
      %v756 = vsel %vm525, %v748, 0.0
      %757 = vadd.xlane.f32.xlu0 %v756
      %v758 = vpop.xlane.xlu0 %757
      %v759 = vsel %vm525, %v750, 0.0
      %760 = vadd.xlane.f32.xlu0 %v759
      %v761 = vpop.xlane.xlu0 %760
      %v762 = vsel %vm525, %v752, 0.0
      %763 = vadd.xlane.f32.xlu0 %v762
      %v764 = vpop.xlane.xlu0 %763
      %v765 = vrcp.pop %v755
      %v766 = vrcp.pop %v758
      %v767 = vrcp.pop %v761
      %v768 = vrcp.pop %v764
      %v769 = vmul.f32 %v746, %v765
      %v770 = vmul.f32 %v748, %v766
      %v771 = vmul.f32 %v750, %v767
      %v772 = vmul.f32 %v752, %v768
      %v773 = vpack.c.bf16 %v769, %v769
      %v774 = vpack.c.bf16 %v770, %v770
      %v775 = vpack.c.bf16 %v771, %v771
      %v776 = vpack.c.bf16 %v772, %v772
      %v778 = vsel %vm525, %v773, 0
      %v781 = vsel %vm525, %v521, 0
      %783 = vmatprep.subr.bf16.mxu0 0
      %784 = vmatpush1.bf16.xpose.msra.mxu0 %v781
      %785 = vmatprep.subr.bf16.mxu0 0
      %786 = vmatpush1.bf16.xpose.msra.mxu0 0
      %787 = vmatprep.subr.bf16.mxu0 0
      %788 = vmatpush1.bf16.xpose.msra.mxu0 0
      %789 = vmatprep.subr.bf16.mxu0 0
      %790 = vmatpush1.bf16.xpose.msra.mxu0 0
      %791 = vmatprep.subr.bf16.mxu0 0
      %792 = vmatpush1.bf16.xpose.msra.mxu0 0
      %793 = vmatprep.subr.bf16.mxu0 0
      %794 = vmatpush1.bf16.xpose.msra.mxu0 0
      %795 = vmatprep.subr.bf16.mxu0 0
      %796 = vmatpush1.bf16.xpose.msra.mxu0 0
      %797 = vmatprep.subr.bf16.mxu0 0
      %798 = vmatpush1.bf16.xpose.msra.mxu0 0
      %799 = vmatprep.subr.bf16.mxu0 0
      %800 = vmatpush1.bf16.xpose.msra.mxu0 0
      %801 = vmatprep.subr.bf16.mxu0 0
      %802 = vmatpush1.bf16.xpose.msra.mxu0 0
      %803 = vmatprep.subr.bf16.mxu0 0
      %804 = vmatpush1.bf16.xpose.msra.mxu0 0
      %805 = vmatprep.subr.bf16.mxu0 0
      %806 = vmatpush1.bf16.xpose.msra.mxu0 0
      %807 = vmatprep.subr.bf16.mxu0 0
      %808 = vmatpush1.bf16.xpose.msra.mxu0 0
      %809 = vmatprep.subr.bf16.mxu0 0
      %810 = vmatpush1.bf16.xpose.msra.mxu0 0
      %811 = vmatprep.subr.bf16.mxu0 0
      %812 = vmatpush1.bf16.xpose.msra.mxu0 0
      %813 = vmatprep.subr.bf16.mxu0 0
      %814 = vmatpush1.bf16.xpose.msra.mxu0 0
      %815 = vmatprep.mubr.bf16.mxu0 0
      %816 = vmatmul.mubr.bf16.gmra.mrb[0].mxu0 %v778
      %v817 = vpop.f32.mrb[0].mxu0
      %v818 = vadd.f32 0.0, %v817
      %v819 = vpop.f32.mrb[0].mxu0
      %v820 = vpop.f32.mrb[0].mxu0
      %v821 = vpop.f32.mrb[0].mxu0
      %822 = vdwg.mxu0
      %v824 = vsel %vm525, %v774, 0
      %v827 = vsel %vm525, %v522, 0
      %829 = vmatprep.subr.bf16.mxu0 0
      %830 = vmatpush1.bf16.xpose.msra.mxu0 %v827
      %831 = vmatprep.subr.bf16.mxu0 0
      %832 = vmatpush1.bf16.xpose.msra.mxu0 0
      %833 = vmatprep.subr.bf16.mxu0 0
      %834 = vmatpush1.bf16.xpose.msra.mxu0 0
      %835 = vmatprep.subr.bf16.mxu0 0
      %836 = vmatpush1.bf16.xpose.msra.mxu0 0
      %837 = vmatprep.subr.bf16.mxu0 0
      %838 = vmatpush1.bf16.xpose.msra.mxu0 0
      %839 = vmatprep.subr.bf16.mxu0 0
      %840 = vmatpush1.bf16.xpose.msra.mxu0 0
      %841 = vmatprep.subr.bf16.mxu0 0
      %842 = vmatpush1.bf16.xpose.msra.mxu0 0
      %843 = vmatprep.subr.bf16.mxu0 0
      %844 = vmatpush1.bf16.xpose.msra.mxu0 0
      %845 = vmatprep.subr.bf16.mxu0 0
      %846 = vmatpush1.bf16.xpose.msra.mxu0 0
      %847 = vmatprep.subr.bf16.mxu0 0
      %848 = vmatpush1.bf16.xpose.msra.mxu0 0
      %849 = vmatprep.subr.bf16.mxu0 0
      %850 = vmatpush1.bf16.xpose.msra.mxu0 0
      %851 = vmatprep.subr.bf16.mxu0 0
      %852 = vmatpush1.bf16.xpose.msra.mxu0 0
      %853 = vmatprep.subr.bf16.mxu0 0
      %854 = vmatpush1.bf16.xpose.msra.mxu0 0
      %855 = vmatprep.subr.bf16.mxu0 0
      %856 = vmatpush1.bf16.xpose.msra.mxu0 0
      %857 = vmatprep.subr.bf16.mxu0 0
      %858 = vmatpush1.bf16.xpose.msra.mxu0 0
      %859 = vmatprep.subr.bf16.mxu0 0
      %860 = vmatpush1.bf16.xpose.msra.mxu0 0
      %861 = vmatprep.mubr.bf16.mxu0 0
      %862 = vmatmul.mubr.bf16.gmra.mrb[0].mxu0 %v824
      %v863 = vpop.f32.mrb[0].mxu0
      %v864 = vadd.f32 0.0, %v863
      %v865 = vpop.f32.mrb[0].mxu0
      %v866 = vpop.f32.mrb[0].mxu0
      %v867 = vpop.f32.mrb[0].mxu0
      %868 = vdwg.mxu0
      %v870 = vsel %vm525, %v775, 0
      %v873 = vsel %vm525, %v523, 0
      %875 = vmatprep.subr.bf16.mxu0 0
      %876 = vmatpush1.bf16.xpose.msra.mxu0 %v873
      %877 = vmatprep.subr.bf16.mxu0 0
      %878 = vmatpush1.bf16.xpose.msra.mxu0 0
      %879 = vmatprep.subr.bf16.mxu0 0
      %880 = vmatpush1.bf16.xpose.msra.mxu0 0
      %881 = vmatprep.subr.bf16.mxu0 0
      %882 = vmatpush1.bf16.xpose.msra.mxu0 0
      %883 = vmatprep.subr.bf16.mxu0 0
      %884 = vmatpush1.bf16.xpose.msra.mxu0 0
      %885 = vmatprep.subr.bf16.mxu0 0
      %886 = vmatpush1.bf16.xpose.msra.mxu0 0
      %887 = vmatprep.subr.bf16.mxu0 0
      %888 = vmatpush1.bf16.xpose.msra.mxu0 0
      %889 = vmatprep.subr.bf16.mxu0 0
      %890 = vmatpush1.bf16.xpose.msra.mxu0 0
      %891 = vmatprep.subr.bf16.mxu0 0
      %892 = vmatpush1.bf16.xpose.msra.mxu0 0
      %893 = vmatprep.subr.bf16.mxu0 0
      %894 = vmatpush1.bf16.xpose.msra.mxu0 0
      %895 = vmatprep.subr.bf16.mxu0 0
      %896 = vmatpush1.bf16.xpose.msra.mxu0 0
      %897 = vmatprep.subr.bf16.mxu0 0
      %898 = vmatpush1.bf16.xpose.msra.mxu0 0
      %899 = vmatprep.subr.bf16.mxu0 0
      %900 = vmatpush1.bf16.xpose.msra.mxu0 0
      %901 = vmatprep.subr.bf16.mxu0 0
      %902 = vmatpush1.bf16.xpose.msra.mxu0 0
      %903 = vmatprep.subr.bf16.mxu0 0
      %904 = vmatpush1.bf16.xpose.msra.mxu0 0
      %905 = vmatprep.subr.bf16.mxu0 0
      %906 = vmatpush1.bf16.xpose.msra.mxu0 0
      %907 = vmatprep.mubr.bf16.mxu0 0
      %908 = vmatmul.mubr.bf16.gmra.mrb[0].mxu0 %v870
      %v909 = vpop.f32.mrb[0].mxu0
      %v910 = vadd.f32 0.0, %v909
      %v911 = vpop.f32.mrb[0].mxu0
      %v912 = vpop.f32.mrb[0].mxu0
      %v913 = vpop.f32.mrb[0].mxu0
      %914 = vdwg.mxu0
      %v916 = vsel %vm525, %v776, 0
      %v919 = vsel %vm525, %v524, 0
      %921 = vmatprep.subr.bf16.mxu0 0
      %922 = vmatpush1.bf16.xpose.msra.mxu0 %v919
      %923 = vmatprep.subr.bf16.mxu0 0
      %924 = vmatpush1.bf16.xpose.msra.mxu0 0
      %925 = vmatprep.subr.bf16.mxu0 0
      %926 = vmatpush1.bf16.xpose.msra.mxu0 0
      %927 = vmatprep.subr.bf16.mxu0 0
      %928 = vmatpush1.bf16.xpose.msra.mxu0 0
      %929 = vmatprep.subr.bf16.mxu0 0
      %930 = vmatpush1.bf16.xpose.msra.mxu0 0
      %931 = vmatprep.subr.bf16.mxu0 0
      %932 = vmatpush1.bf16.xpose.msra.mxu0 0
      %933 = vmatprep.subr.bf16.mxu0 0
      %934 = vmatpush1.bf16.xpose.msra.mxu0 0
      %935 = vmatprep.subr.bf16.mxu0 0
      %936 = vmatpush1.bf16.xpose.msra.mxu0 0
      %937 = vmatprep.subr.bf16.mxu0 0
      %938 = vmatpush1.bf16.xpose.msra.mxu0 0
      %939 = vmatprep.subr.bf16.mxu0 0
      %940 = vmatpush1.bf16.xpose.msra.mxu0 0
      %941 = vmatprep.subr.bf16.mxu0 0
      %942 = vmatpush1.bf16.xpose.msra.mxu0 0
      %943 = vmatprep.subr.bf16.mxu0 0
      %944 = vmatpush1.bf16.xpose.msra.mxu0 0
      %945 = vmatprep.subr.bf16.mxu0 0
      %946 = vmatpush1.bf16.xpose.msra.mxu0 0
      %947 = vmatprep.subr.bf16.mxu0 0
      %948 = vmatpush1.bf16.xpose.msra.mxu0 0
      %949 = vmatprep.subr.bf16.mxu0 0
      %950 = vmatpush1.bf16.xpose.msra.mxu0 0
      %951 = vmatprep.subr.bf16.mxu0 0
      %952 = vmatpush1.bf16.xpose.msra.mxu0 0
      %953 = vmatprep.mubr.bf16.mxu0 0
      %954 = vmatmul.mubr.bf16.gmra.mrb[0].mxu0 %v916
      %v955 = vpop.f32.mrb[0].mxu0
      %v956 = vadd.f32 0.0, %v955
      %v957 = vpop.f32.mrb[0].mxu0
      %v958 = vpop.f32.mrb[0].mxu0
      %v959 = vpop.f32.mrb[0].mxu0
      %960 = vdwg.mxu0
      %v961 = vpack.c.bf16 %v818, %v818
      %vm962 = vcmask 60416
      %963 = vst.msk [vmem:[#allocation2] sm:$0xf] %vm962, %v961
      %v964 = vpack.c.bf16 %v864, %v864
      %v966 = vunpack.c.l.b16 %v964
      %v967 = vpack.c.b16 %v966, %v966
      %968 = vrot.lane.b32.xlu0 %v967, 8
      %v969 = vpop.permute.xlu0 %968
      %vm971 = vcmask 126016
      %972 = vst.msk [vmem:[#allocation2] sm:$0xf] %vm971, %v969
      %v973 = vpack.c.bf16 %v910, %v910
      %v975 = vunpack.c.l.b16 %v973
      %v976 = vpack.c.b16 %v975, %v975
      %977 = vrot.lane.b32.xlu0 %v976, 16
      %v978 = vpop.permute.xlu0 %977
      %vm980 = vcmask 191616
      %981 = vst.msk [vmem:[#allocation2] sm:$0xf] %vm980, %v978
      %v982 = vpack.c.bf16 %v956, %v956
      %v984 = vunpack.c.l.b16 %v982
      %v985 = vpack.c.b16 %v984, %v984
      %986 = vrot.lane.b32.xlu0 %v985, 24
      %v987 = vpop.permute.xlu0 %986
      %vm989 = vcmask 257216
      %990 = vst.msk [vmem:[#allocation2] sm:$0xf] %vm989, %v987
      %v991 = vld [vmem:[#allocation2] sm:$0xf]
      %v992 = vld [vmem:[%s4] sm:$0xf]
      %v993 = vld [vmem:[%s4 + $0x4] sm:$0xf]
      %v994 = vld [vmem:[%s4 + $0x8] sm:$0xf]
      %v995 = vld [vmem:[%s4 + $0xc] sm:$0xf]
      %v996 = vld [vmem:[%s5] sm:$0x1]
      %v998 = vlaneseq
      %v999 = vshrl.u32 %v998, 7
      %v1000 = vsub.s32 0, %v999
      %v1001 = vrot.slane %v996, %v1000
      %v1007 = vunpack.c.l.b16 %v992
      %v1008 = vunpack.c.l.b16 %v993
      %v1009 = vunpack.c.l.b16 %v994
      %v1010 = vunpack.c.l.b16 %v995
      %v1011 = vpack.c.b16 %v1008, %v1007
      %v1012 = vpack.c.b16 %v1010, %v1009
      %vm1015 = vcmask 261120
      %v1017 = vsel %vm1015, %v991, 0
      %1019 = vmatprep.subr.bf16.mxu0 0
      %1020 = vmatpush1.bf16.msra.mxu0 %v1011
      %1021 = vmatprep.subr.bf16.mxu0 0
      %1022 = vmatpush1.bf16.msra.mxu0 %v1012
      %1023 = vmatprep.subr.bf16.mxu0 0
      %1024 = vmatpush1.bf16.msra.mxu0 0
      %1025 = vmatprep.subr.bf16.mxu0 0
      %1026 = vmatpush1.bf16.msra.mxu0 0
      %1027 = vmatprep.subr.bf16.mxu0 0
      %1028 = vmatpush1.bf16.msra.mxu0 0
      %1029 = vmatprep.subr.bf16.mxu0 0
      %1030 = vmatpush1.bf16.msra.mxu0 0
      %1031 = vmatprep.subr.bf16.mxu0 0
      %1032 = vmatpush1.bf16.msra.mxu0 0
      %1033 = vmatprep.subr.bf16.mxu0 0
      %1034 = vmatpush1.bf16.msra.mxu0 0
      %1035 = vmatprep.subr.bf16.mxu0 0
      %1036 = vmatpush1.bf16.msra.mxu0 0
      %1037 = vmatprep.subr.bf16.mxu0 0
      %1038 = vmatpush1.bf16.msra.mxu0 0
      %1039 = vmatprep.subr.bf16.mxu0 0
      %1040 = vmatpush1.bf16.msra.mxu0 0
      %1041 = vmatprep.subr.bf16.mxu0 0
      %1042 = vmatpush1.bf16.msra.mxu0 0
      %1043 = vmatprep.subr.bf16.mxu0 0
      %1044 = vmatpush1.bf16.msra.mxu0 0
      %1045 = vmatprep.subr.bf16.mxu0 0
      %1046 = vmatpush1.bf16.msra.mxu0 0
      %1047 = vmatprep.subr.bf16.mxu0 0
      %1048 = vmatpush1.bf16.msra.mxu0 0
      %1049 = vmatprep.subr.bf16.mxu0 0
      %1050 = vmatpush1.bf16.msra.mxu0 0
      %1051 = vmatprep.mubr.bf16.mxu0 0
      %1052 = vmatmul.mubr.bf16.gmra.mrb[0].mxu0 %v1017
      %v1053 = vpop.f32.mrb[0].mxu0
      %v1054 = vadd.f32 %v1001, %v1053
      %v1055 = vpop.f32.mrb[0].mxu0
      %v1056 = vpop.f32.mrb[0].mxu0
      %v1057 = vpop.f32.mrb[0].mxu0
      %1058 = vdwg.mxu0
      %v1059 = vadd.f32 %v512, %v1054
      %v1060 = vld [vmem:[%s6] sm:$0x1]
      %v1061 = vld [vmem:[%s7] sm:$0x1]
      %v1062 = vsel %vm1015, %v1059, 0.0
      %1063 = vadd.xlane.f32.xlu0 %v1062
      %v1064 = vpop.xlane.xlu0 %1063
      %v1065 = vrcp.pop 32.0
      %v1066 = vmul.f32 %v1064, %v1065
      %v1067 = vsub.f32 %v1059, %v1066
      %v1068 = vmul.f32 %v1067, %v1067
      %v1069 = vsel %vm1015, %v1068, 0.0
      %1070 = vadd.xlane.f32.xlu0 %v1069
      %v1071 = vpop.xlane.xlu0 %1070
      %v1072 = vmul.f32 %v1071, %v1065
      %v1073 = vadd.f32 %v1072, 1e-05
      %v1074 = vrsqrt.pop %v1073
      %v1075 = vmul.f32 %v1067, %v1074
      %v1077 = vlaneseq
      %v1078 = vshrl.u32 %v1077, 7
      %v1079 = vsub.s32 0, %v1078
      %v1080 = vrot.slane %v1060, %v1079
      %v1082 = vmul.f32 %v1075, %v1080
      %v1084 = vlaneseq
      %v1085 = vshrl.u32 %v1084, 7
      %v1086 = vsub.s32 0, %v1085
      %v1087 = vrot.slane %v1061, %v1086
      %v1089 = vadd.f32 %v1082, %v1087
      %v1090 = vpack.c.bf16 %v1089, %v1089
      %v1091 = vld [vmem:[%s8] sm:$0xf]
      %v1092 = vld [vmem:[%s8 + $0x4] sm:$0xf]
      %v1093 = vld [vmem:[%s8 + $0x8] sm:$0xf]
      %v1094 = vld [vmem:[%s8 + $0xc] sm:$0xf]
      %v1095 = vld [vmem:[%s9] sm:$0x1]
      %v1097 = vlaneseq
      %v1098 = vshrl.u32 %v1097, 7
      %v1099 = vsub.s32 0, %v1098
      %v1100 = vrot.slane %v1095, %v1099
      %v1106 = vunpack.c.l.b16 %v1091
      %v1107 = vunpack.c.l.b16 %v1092
      %v1108 = vunpack.c.l.b16 %v1093
      %v1109 = vunpack.c.l.b16 %v1094
      %v1110 = vpack.c.b16 %v1107, %v1106
      %v1111 = vpack.c.b16 %v1109, %v1108
      %v1115 = vsel %vm1015, %v1090, 0
      %1117 = vmatprep.subr.bf16.mxu0 0
      %1118 = vmatpush1.bf16.msra.mxu0 %v1110
      %1119 = vmatprep.subr.bf16.mxu0 0
      %1120 = vmatpush1.bf16.msra.mxu0 %v1111
      %1121 = vmatprep.subr.bf16.mxu0 0
      %1122 = vmatpush1.bf16.msra.mxu0 0
      %1123 = vmatprep.subr.bf16.mxu0 0
      %1124 = vmatpush1.bf16.msra.mxu0 0
      %1125 = vmatprep.subr.bf16.mxu0 0
      %1126 = vmatpush1.bf16.msra.mxu0 0
      %1127 = vmatprep.subr.bf16.mxu0 0
      %1128 = vmatpush1.bf16.msra.mxu0 0
      %1129 = vmatprep.subr.bf16.mxu0 0
      %1130 = vmatpush1.bf16.msra.mxu0 0
      %1131 = vmatprep.subr.bf16.mxu0 0
      %1132 = vmatpush1.bf16.msra.mxu0 0
      %1133 = vmatprep.subr.bf16.mxu0 0
      %1134 = vmatpush1.bf16.msra.mxu0 0
      %1135 = vmatprep.subr.bf16.mxu0 0
      %1136 = vmatpush1.bf16.msra.mxu0 0
      %1137 = vmatprep.subr.bf16.mxu0 0
      %1138 = vmatpush1.bf16.msra.mxu0 0
      %1139 = vmatprep.subr.bf16.mxu0 0
      %1140 = vmatpush1.bf16.msra.mxu0 0
      %1141 = vmatprep.subr.bf16.mxu0 0
      %1142 = vmatpush1.bf16.msra.mxu0 0
      %1143 = vmatprep.subr.bf16.mxu0 0
      %1144 = vmatpush1.bf16.msra.mxu0 0
      %1145 = vmatprep.subr.bf16.mxu0 0
      %1146 = vmatpush1.bf16.msra.mxu0 0
      %1147 = vmatprep.subr.bf16.mxu0 0
      %1148 = vmatpush1.bf16.msra.mxu0 0
      %1149 = vmatprep.mubr.bf16.mxu0 0
      %1150 = vmatmul.mubr.bf16.gmra.mrb[0].mxu0 %v1115
      %v1151 = vpop.f32.mrb[0].mxu0
      %v1152 = vadd.f32 %v1100, %v1151
      %v1153 = vpop.f32.mrb[0].mxu0
      %v1154 = vpop.f32.mrb[0].mxu0
      %v1155 = vpop.f32.mrb[0].mxu0
      %1156 = vdwg.mxu0
      %v1157 = vmul.f32 %v1152, 0.5
      %v1158 = vmul.f32 %v1152, 0.044715
      %v1159 = vmul.f32 %v1158, %v1152
      %v1160 = vmul.f32 %v1159, %v1152
      %v1161 = vadd.f32 %v1152, %v1160
      %v1162 = vmul.f32 %v1161, 0.7978846
      %v1163 = vtanh.pop %v1162
      %v1164 = vadd.f32 %v1163, 1.0
      %v1165 = vmul.f32 %v1157, %v1164
      %v1166 = vpack.c.bf16 %v1165, %v1165
      %v1167 = vld [vmem:[%s10] sm:$0xf]
      %v1168 = vld [vmem:[%s10 + $0x4] sm:$0xf]
      %v1169 = vld [vmem:[%s10 + $0x8] sm:$0xf]
      %v1170 = vld [vmem:[%s10 + $0xc] sm:$0xf]
      %v1171 = vld [vmem:[%s10 + $0x10] sm:$0xf]
      %v1172 = vld [vmem:[%s10 + $0x14] sm:$0xf]
      %v1173 = vld [vmem:[%s10 + $0x18] sm:$0xf]
      %v1174 = vld [vmem:[%s10 + $0x1c] sm:$0xf]
      %v1175 = vld [vmem:[%s10 + $0x20] sm:$0xf]
      %v1176 = vld [vmem:[%s10 + $0x24] sm:$0xf]
      %v1177 = vld [vmem:[%s10 + $0x28] sm:$0xf]
      %v1178 = vld [vmem:[%s10 + $0x2c] sm:$0xf]
      %v1179 = vld [vmem:[%s10 + $0x30] sm:$0xf]
      %v1180 = vld [vmem:[%s10 + $0x34] sm:$0xf]
      %v1181 = vld [vmem:[%s10 + $0x38] sm:$0xf]
      %v1182 = vld [vmem:[%s10 + $0x3c] sm:$0xf]
      %v1183 = vld [vmem:[%s11] sm:$0x1]
      %v1185 = vlaneseq
      %v1186 = vshrl.u32 %v1185, 7
      %v1187 = vsub.s32 0, %v1186
      %v1188 = vrot.slane %v1183, %v1187
      %v1206 = vunpack.c.l.b16 %v1167
      %v1207 = vunpack.c.l.b16 %v1168
      %v1208 = vunpack.c.l.b16 %v1169
      %v1209 = vunpack.c.l.b16 %v1170
      %v1210 = vunpack.c.l.b16 %v1171
      %v1211 = vunpack.c.l.b16 %v1172
      %v1212 = vunpack.c.l.b16 %v1173
      %v1213 = vunpack.c.l.b16 %v1174
      %v1214 = vunpack.c.l.b16 %v1175
      %v1215 = vunpack.c.l.b16 %v1176
      %v1216 = vunpack.c.l.b16 %v1177
      %v1217 = vunpack.c.l.b16 %v1178
      %v1218 = vunpack.c.l.b16 %v1179
      %v1219 = vunpack.c.l.b16 %v1180
      %v1220 = vunpack.c.l.b16 %v1181
      %v1221 = vunpack.c.l.b16 %v1182
      %v1222 = vpack.c.b16 %v1207, %v1206
      %v1223 = vpack.c.b16 %v1209, %v1208
      %v1224 = vpack.c.b16 %v1211, %v1210
      %v1225 = vpack.c.b16 %v1213, %v1212
      %v1226 = vpack.c.b16 %v1215, %v1214
      %v1227 = vpack.c.b16 %v1217, %v1216
      %v1228 = vpack.c.b16 %v1219, %v1218
      %v1229 = vpack.c.b16 %v1221, %v1220
      %1238 = vmatprep.subr.bf16.mxu0 0
      %1239 = vmatpush1.bf16.msra.mxu0 %v1222
      %1240 = vmatprep.subr.bf16.mxu0 0
      %1241 = vmatpush1.bf16.msra.mxu0 %v1223
      %1242 = vmatprep.subr.bf16.mxu0 0
      %1243 = vmatpush1.bf16.msra.mxu0 %v1224
      %1244 = vmatprep.subr.bf16.mxu0 0
      %1245 = vmatpush1.bf16.msra.mxu0 %v1225
      %1246 = vmatprep.subr.bf16.mxu0 0
      %1247 = vmatpush1.bf16.msra.mxu0 %v1226
      %1248 = vmatprep.subr.bf16.mxu0 0
      %1249 = vmatpush1.bf16.msra.mxu0 %v1227
      %1250 = vmatprep.subr.bf16.mxu0 0
      %1251 = vmatpush1.bf16.msra.mxu0 %v1228
      %1252 = vmatprep.subr.bf16.mxu0 0
      %1253 = vmatpush1.bf16.msra.mxu0 %v1229
      %1254 = vmatprep.subr.bf16.mxu0 0
      %1255 = vmatpush1.bf16.msra.mxu0 0
      %1256 = vmatprep.subr.bf16.mxu0 0
      %1257 = vmatpush1.bf16.msra.mxu0 0
      %1258 = vmatprep.subr.bf16.mxu0 0
      %1259 = vmatpush1.bf16.msra.mxu0 0
      %1260 = vmatprep.subr.bf16.mxu0 0
      %1261 = vmatpush1.bf16.msra.mxu0 0
      %1262 = vmatprep.subr.bf16.mxu0 0
      %1263 = vmatpush1.bf16.msra.mxu0 0
      %1264 = vmatprep.subr.bf16.mxu0 0
      %1265 = vmatpush1.bf16.msra.mxu0 0
      %1266 = vmatprep.subr.bf16.mxu0 0
      %1267 = vmatpush1.bf16.msra.mxu0 0
      %1268 = vmatprep.subr.bf16.mxu0 0
      %1269 = vmatpush1.bf16.msra.mxu0 0
      %1270 = vmatprep.mubr.bf16.mxu0 0
      %1271 = vmatmul.mubr.bf16.gmra.mrb[0].mxu0 %v1166
      %v1272 = vpop.f32.mrb[0].mxu0
      %v1273 = vadd.f32 %v1188, %v1272
      %v1274 = vpop.f32.mrb[0].mxu0
      %v1275 = vpop.f32.mrb[0].mxu0
      %v1276 = vpop.f32.mrb[0].mxu0
      %1277 = vdwg.mxu0
      %v1278 = vadd.f32 %v1059, %v1273
      %1279 = vst.msk [vmem:[%s510] sm:$0xff] %vm1015, %v1278
      %p1280 = scmp.lt.s32.totalorder %s27, 1
      %s1281 = scalar_select %p1280, %s27, 1
      %p1282 = scmp.lt.s32.totalorder %s28, 0
      %s1283 = scalar_select %p1282, %s28, 0
      %s1284 = sadd.s32 %s1283, %s1281
      %s1285 = smul.addr %s1284, 8
      %s1286 = scalar_lea.vmem %s12, %s1285
      // Predicated region
      $region69: #{gpt_forward.7} parent=67 // pred_check
        %p1287 = pneg %p331
      $region70: #{gpt_forward.7} parent=67 // pred_check_branch
        %1289 = sbr.rel (%p1287) target = $region72
      $region71: #{gpt_forward.7} parent=67 // pred_region
        _
      $region72: #{gpt_forward.7} parent=67 // pred_fallthru
        _
    $region68: #{gpt_forward.7} parent=5 // pred_fallthru
      _
    %p1290 = scmp.le.s32.totalorder 2, %s18
    // Predicated region
    $region73: #{gpt_forward.7} parent=5 // pred_check
      %p1291 = pneg %p1290
    $region74: #{gpt_forward.7} parent=5 // pred_check_branch
      %1293 = sbr.rel (%p1291) target = $region76
    $region75: #{gpt_forward.7} parent=5 // pred_region
      %s1294 = ssub.s32 %s18, 2
      // Predicated region
      $region77: #{gpt_forward.7} parent=75 // pred_check
        %p1295 = pneg %p337
      $region78: #{gpt_forward.7} parent=75 // pred_check_branch
        %1297 = sbr.rel (%p1295) target = $region80
      $region79: #{gpt_forward.7} parent=75 // pred_region
        %p1298 = scmp.lt.s32.totalorder %s29, 1
        %s1299 = scalar_select %p1298, %s29, 1
        %p1300 = scmp.lt.s32.totalorder %s30, 0
        %s1301 = scalar_select %p1300, %s30, 0
        %s1302 = sadd.s32 %s1301, %s1299
        %s1303 = smul.addr %s1302, 8
        %s1304 = scalar_lea.vmem %s12, %s1303
      $region80: #{gpt_forward.7} parent=75 // pred_fallthru
        _
    $region76: #{gpt_forward.7} parent=5 // pred_fallthru
      _
  $region6: #{gpt_forward.7} parent=0 // loop_footer
    %s22 = sadd.s32 1, %s18
  $region7: #{gpt_forward.7} parent=0 // loop_footer_branch
    %17 = sbr.rel target = $region3
  $region8: #{gpt_forward.7} parent=0 // loop_exit
    _

</llo_original>
